<compile_context>
chip_gen: v5e
topology: v5e:2x2
jax: 0.10.0
libtpu: 0.0.40
codegen_flags: <defaults>
</compile_context>

<pallas_src>
import jax
import jax.numpy as jnp
from jax.experimental import pallas as pl
from jax.experimental.pallas import tpu as pltpu

IN_DIM = 768
HID_DIM = 1024
NUM_CLASSES = 128   # stand-in for len(os.listdir(EMBEDS))
BN_EPS = 1e-5


def _round_up(x, m):
    return (x + m - 1) // m * m


def _device_kind():
    try:
        return jax.devices()[0].device_kind.lower()
    except Exception:
        return ""


# ---------------- Pass-1 kernels: h = x @ W1 (+ per-tile BN partial statistics) ----------------

def stats_spill_kernel(x_ref, w1_ref, h_ref, stats_ref):
    # v5e / v7x path: also spill h (bf16) so pass 2 does not redo x@W1.
    h = jnp.dot(x_ref[...], w1_ref[...], preferred_element_type=jnp.float32)  # (TM, HID) f32
    h_ref[...] = h.astype(jnp.bfloat16)
    # Direct row stores into the (1, 2, HID) stats block (no concatenate relayout).
    stats_ref[0, 0:1, :] = jnp.sum(h, axis=0, keepdims=True)       # column sums
    stats_ref[0, 1:2, :] = jnp.sum(h * h, axis=0, keepdims=True)   # column sums of squares


def stats_recompute_kernel(x_ref, w1_ref, stats_ref):
    # v6e path: statistics only; pass 2 recomputes x@W1 (cheaper than the HBM round-trip there).
    h = jnp.dot(x_ref[...], w1_ref[...], preferred_element_type=jnp.float32)
    stats_ref[0, 0:1, :] = jnp.sum(h, axis=0, keepdims=True)
    stats_ref[0, 1:2, :] = jnp.sum(h * h, axis=0, keepdims=True)


# ---------------- Pass-2 kernels: folded BN + ReLU + W2 ----------------

def mlp_spill_kernel(h_ref, scale_ref, shift_ref, w2_ref, b2_ref, o_ref):
    h = h_ref[...].astype(jnp.float32)                                       # spilled h (bf16)
    y = jnp.maximum(h * scale_ref[...] + shift_ref[...], 0.0)
    out = jnp.dot(y.astype(jnp.bfloat16), w2_ref[...],
                  preferred_element_type=jnp.float32)                         # (TM, C) f32
    o_ref[...] = (out + b2_ref[...]).astype(o_ref.dtype)


def mlp_recompute_kernel(x_ref, w1_ref, scale_ref, shift_ref, w2_ref, b2_ref, o_ref):
    h = jnp.dot(x_ref[...], w1_ref[...], preferred_element_type=jnp.float32)  # recompute h
    y = jnp.maximum(h * scale_ref[...] + shift_ref[...], 0.0)
    out = jnp.dot(y.astype(jnp.bfloat16), w2_ref[...],
                  preferred_element_type=jnp.float32)
    o_ref[...] = (out + b2_ref[...]).astype(o_ref.dtype)


# ---------------- Wrapper ----------------

def mlp_forward(xb, w1, b1, gamma, beta, w2, b2, *, tm=None):
    # Mirror xb.reshape(-1, 768).  b1 is accepted for parity with the module's parameters
    # but is mathematically a no-op under train-mode BatchNorm mean subtraction.
    del b1
    x = xb.reshape(-1, IN_DIM)
    n = x.shape[0]

    kind = _device_kind()
    is_v6 = ("v6" in kind) or ("6e" in kind)
    is_v7 = ("v7" in kind) or ("7x" in kind)
    use_spill = not is_v6                      # spill h on v5e/v7x/unknown; recompute on v6e
    tm_cap = 2048 if is_v7 else 4096           # 64 MiB VMEM on v7x vs 128 MiB on v5e/v6e
    vmem_limit = (48 << 20) if is_v7 else (96 << 20)

    # Row tile: multiple of 16 (bf16 sublane tile), capped per generation.
    if tm is None:
        tm = tm_cap
    n16 = _round_up(max(n, 1), 16)
    tm = max(16, min(_round_up(tm, 16), n16))
    n_pad = _round_up(n, tm)
    num_tiles = n_pad // tm
    # v7x megacore: prefer an even tile count so both TensorCores stay busy.
    if is_v7 and num_tiles % 2 == 1 and tm >= 32:
        tm = max(16, _round_up(tm // 2, 16))
        n_pad = _round_up(n, tm)
        num_tiles = n_pad // tm

    # Class dim: pad to a 128-lane multiple so output stores stay unmasked.
    c = w2.shape[1]
    c_pad = _round_up(c, 128)

    # bf16 operands for the MXU; zero-padded rows contribute 0 to the statistics.
    x_bf = x.astype(jnp.bfloat16)
    if n_pad != n:
        x_bf = jnp.pad(x_bf, ((0, n_pad - n), (0, 0)))
    w1_bf = w1.astype(jnp.bfloat16)
    w2_p = w2
    b2_p = b2.reshape(1, c)
    if c_pad != c:
        w2_p = jnp.pad(w2_p, ((0, 0), (0, c_pad - c)))
        b2_p = jnp.pad(b2_p, ((0, 0), (0, c_pad - c)))
    w2_bf = w2_p.astype(jnp.bfloat16)
    b2_f = b2_p.astype(jnp.float32)

    cparams = pltpu.CompilerParams(
        dimension_semantics=("parallel",),     # independent row tiles
        vmem_limit_bytes=vmem_limit,
    )

    x_spec = pl.BlockSpec((tm, IN_DIM), lambda i: (i, 0))
    w1_spec = pl.BlockSpec((IN_DIM, HID_DIM), lambda i: (0, 0))        # VMEM-resident
    stats_spec = pl.BlockSpec((1, 2, HID_DIM), lambda i: (i, 0, 0))
    stats_shape = jax.ShapeDtypeStruct((num_tiles, 2, HID_DIM), jnp.float32)
    h_spec = pl.BlockSpec((tm, HID_DIM), lambda i: (i, 0))

    # ---- Pass 1: h = x @ W1 and per-tile partial sums / sums-of-squares ----
    if use_spill:
        h_bf, stats = pl.pallas_call(
            stats_spill_kernel,
            out_shape=(jax.ShapeDtypeStruct((n_pad, HID_DIM), jnp.bfloat16), stats_shape),
            grid=(num_tiles,),
            in_specs=[x_spec, w1_spec],
            out_specs=(h_spec, stats_spec),
            compiler_params=cparams,
        )(x_bf, w1_bf)
    else:
        stats = pl.pallas_call(
            stats_recompute_kernel,
            out_shape=stats_shape,
            grid=(num_tiles,),
            in_specs=[x_spec, w1_spec],
            out_specs=stats_spec,
            compiler_params=cparams,
        )(x_bf, w1_bf)
        h_bf = None

    # ---- Finalize BN stats (tiny (1024,) vectors) and fold into scale/shift ----
    sums = jnp.sum(stats[:, 0, :], axis=0)
    sqs = jnp.sum(stats[:, 1, :], axis=0)
    mean = sums / n
    var = jnp.maximum(sqs / n - mean * mean, 0.0)      # biased (train-mode) variance
    inv_std = jax.lax.rsqrt(var + BN_EPS)
    g = gamma.reshape(-1).astype(jnp.float32)
    b = beta.reshape(-1).astype(jnp.float32)
    scale = (g * inv_std).reshape(1, HID_DIM)
    shift = (b - mean * g * inv_std).reshape(1, HID_DIM)

    vec_spec = pl.BlockSpec((1, HID_DIM), lambda i: (0, 0))
    w2_spec = pl.BlockSpec((HID_DIM, c_pad), lambda i: (0, 0))         # VMEM-resident
    b2_spec = pl.BlockSpec((1, c_pad), lambda i: (0, 0))
    out_spec = pl.BlockSpec((tm, c_pad), lambda i: (i, 0))
    out_shape = jax.ShapeDtypeStruct((n_pad, c_pad), jnp.float32)

    # ---- Pass 2: folded BN + ReLU, then @W2 + b2 ----
    if use_spill:
        out = pl.pallas_call(
            mlp_spill_kernel,
            out_shape=out_shape,
            grid=(num_tiles,),
            in_specs=[h_spec, vec_spec, vec_spec, w2_spec, b2_spec],
            out_specs=out_spec,
            compiler_params=cparams,
        )(h_bf, scale, shift, w2_bf, b2_f)
    else:
        out = pl.pallas_call(
            mlp_recompute_kernel,
            out_shape=out_shape,
            grid=(num_tiles,),
            in_specs=[x_spec, w1_spec, vec_spec, vec_spec, w2_spec, b2_spec],
            out_specs=out_spec,
            compiler_params=cparams,
        )(x_bf, w1_bf, scale, shift, w2_bf, b2_f)

    return out[:n, :c]


def init_params(key):
    k1, k2, k3, k4 = jax.random.split(key, 4)
    # Deterministic init, roughly matching nn.Linear's uniform(-1/sqrt(fan_in), 1/sqrt(fan_in)).
    lim1 = 1.0 / jnp.sqrt(IN_DIM)
    lim2 = 1.0 / jnp.sqrt(HID_DIM)
    w1 = jax.random.uniform(k1, (IN_DIM, HID_DIM), jnp.float32, -lim1, lim1)
    b1 = jax.random.uniform(k2, (1, HID_DIM), jnp.float32, -lim1, lim1)
    w2 = jax.random.uniform(k3, (HID_DIM, NUM_CLASSES), jnp.float32, -lim2, lim2)
    b2 = jax.random.uniform(k4, (1, NUM_CLASSES), jnp.float32, -lim2, lim2)
    # BatchNorm1d affine params: gamma=1, beta=0 (PyTorch default init).
    gamma = jnp.ones((1, HID_DIM), jnp.float32)
    beta = jnp.zeros((1, HID_DIM), jnp.float32)
    return w1, b1, gamma, beta, w2, b2


def reference_forward(xb, w1, b1, gamma, beta, w2, b2):
    x = xb.reshape(-1, IN_DIM)
    h = x @ w1 + b1
    mean = h.mean(axis=0, keepdims=True)
    var = ((h - mean) ** 2).mean(axis=0, keepdims=True)
    h = (h - mean) / jnp.sqrt(var + BN_EPS) * gamma + beta
    h = jnp.maximum(h, 0.0)
    return h @ w2 + b2


if __name__ == "__main__":
    key = jax.random.PRNGKey(0)
    kx, kp = jax.random.split(key)
    # Small input consistent with forward's reshape(-1, 768): (B=2, S=4, 768) -> 8 rows.
    xb = jax.random.normal(kx, (2, 4, IN_DIM), jnp.float32)
    params = init_params(kp)

    fwd = jax.jit(mlp_forward)
    out = jax.block_until_ready(fwd(xb, *params))

    ref = reference_forward(xb, *params)
    assert out.shape == (8, NUM_CLASSES)
    # bf16 MXU matmuls (and bf16 spill of h) vs pure-f32 reference -> bf16-appropriate tolerance.
    assert jnp.allclose(out, ref, atol=2e-2, rtol=2e-2), float(jnp.max(jnp.abs(out - ref)))
    print("KERNEL_OK")
</pallas_src>

<mosaic_0001>
module attributes {stable_mosaic.version = 11 : i64} {
  func.func @stats_spill_kernel(%arg0: i32, %arg1: memref<16x768xbf16, #tpu.memory_space<vmem>>, %arg2: memref<768x1024xbf16, #tpu.memory_space<vmem>>, %arg3: memref<16x1024xbf16, #tpu.memory_space<vmem>>, %arg4: memref<1x2x1024xf32, #tpu.memory_space<vmem>>) attributes {dimension_semantics = [#tpu.dimension_semantics<parallel>], iteration_bounds = array<i64: 1>, scalar_prefetch = 0 : i64, scratch_operands = 0 : i64, tpu.core_type = #tpu.core_type<tc>, window_params = [{transform_indices = @transform_0, window_bounds = array<i64: 16, 768>}, {pipeline_mode = #tpu.pipeline_mode<synchronous>, transform_indices = @transform_1, window_bounds = array<i64: 768, 1024>}, {transform_indices = @transform_2, window_bounds = array<i64: 16, 1024>}, {transform_indices = @transform_3, window_bounds = array<i64: 1, 2, 1024>}]} {
    %c0 = arith.constant 0 : index
    %c0_0 = arith.constant 0 : index
    %0 = vector.load %arg1[%c0, %c0_0] : memref<16x768xbf16, #tpu.memory_space<vmem>>, vector<16x768xbf16>
    %c0_1 = arith.constant 0 : index
    %c0_2 = arith.constant 0 : index
    %1 = vector.load %arg2[%c0_1, %c0_2] : memref<768x1024xbf16, #tpu.memory_space<vmem>>, vector<768x1024xbf16>
    %cst = arith.constant dense<0.000000e+00> : vector<16x1024xf32>
    %2 = tpu.matmul %0, %1, %cst {dimension_numbers = #tpu.dot_dimension_numbers<[1], [0], [0], [1], [0, 0, 1, 1], [], []>} : vector<16x768xbf16>, vector<768x1024xbf16>, vector<16x1024xf32> -> vector<16x1024xf32>
    %3 = arith.truncf %2 : vector<16x1024xf32> to vector<16x1024xbf16>
    %c0_3 = arith.constant 0 : index
    %c0_4 = arith.constant 0 : index
    %4 = vector.load %arg3[%c0_3, %c0_4] : memref<16x1024xbf16, #tpu.memory_space<vmem>>, vector<16x1024xbf16>
    tpu.vector_store %arg3[%c0_3, %c0_4], %3 {strides = array<i32>} : memref<16x1024xbf16, #tpu.memory_space<vmem>>, vector<16x1024xbf16>,
    %cst_5 = arith.constant dense<0.000000e+00> : vector<1024xf32>
    %5 = vector.multi_reduction <add>, %2, %cst_5 [0] : vector<16x1024xf32> to vector<1024xf32>
    %6 = vector.shape_cast %5 : vector<1024xf32> to vector<1x1024xf32>
    %c0_6 = arith.constant 0 : index
    %c0_7 = arith.constant 0 : index
    %c0_8 = arith.constant 0 : index
    %7 = vector.load %arg4[%c0_6, %c0_7, %c0_8] : memref<1x2x1024xf32, #tpu.memory_space<vmem>>, vector<1x1x1024xf32>
    %8 = vector.shape_cast %7 : vector<1x1x1024xf32> to vector<1x1024xf32>
    %9 = vector.shape_cast %6 : vector<1x1024xf32> to vector<1x1x1024xf32>
    tpu.vector_store %arg4[%c0_6, %c0_7, %c0_8], %9 {strides = array<i32>} : memref<1x2x1024xf32, #tpu.memory_space<vmem>>, vector<1x1x1024xf32>,
    %10 = arith.mulf %2, %2 : vector<16x1024xf32>
    %cst_9 = arith.constant dense<0.000000e+00> : vector<1024xf32>
    %11 = vector.multi_reduction <add>, %10, %cst_9 [0] : vector<16x1024xf32> to vector<1024xf32>
    %12 = vector.shape_cast %11 : vector<1024xf32> to vector<1x1024xf32>
    %c0_10 = arith.constant 0 : index
    %c1 = arith.constant 1 : index
    %c0_11 = arith.constant 0 : index
    %13 = vector.load %arg4[%c0_10, %c1, %c0_11] : memref<1x2x1024xf32, #tpu.memory_space<vmem>>, vector<1x1x1024xf32>
    %14 = vector.shape_cast %13 : vector<1x1x1024xf32> to vector<1x1024xf32>
    %15 = vector.shape_cast %12 : vector<1x1024xf32> to vector<1x1x1024xf32>
    tpu.vector_store %arg4[%c0_10, %c1, %c0_11], %15 {strides = array<i32>} : memref<1x2x1024xf32, #tpu.memory_space<vmem>>, vector<1x1x1024xf32>,
    return
  }
  func.func @transform_0(%arg0: i32) -> (i32, i32) {
    %c0_i32 = arith.constant 0 : i32
    %c0_i32_0 = arith.constant 0 : i32
    return %arg0, %c0_i32 : i32, i32
  }
  func.func @transform_1(%arg0: i32) -> (i32, i32) {
    %c0_i32 = arith.constant 0 : i32
    %c0_i32_0 = arith.constant 0 : i32
    %c0_i32_1 = arith.constant 0 : i32
    return %c0_i32, %c0_i32_0 : i32, i32
  }
  func.func @transform_2(%arg0: i32) -> (i32, i32) {
    %c0_i32 = arith.constant 0 : i32
    %c0_i32_0 = arith.constant 0 : i32
    return %arg0, %c0_i32 : i32, i32
  }
  func.func @transform_3(%arg0: i32) -> (i32, i32, i32) {
    %c0_i32 = arith.constant 0 : i32
    %c0_i32_0 = arith.constant 0 : i32
    %c0_i32_1 = arith.constant 0 : i32
    return %arg0, %c0_i32, %c0_i32_0 : i32, i32, i32
  }
}

module attributes {stable_mosaic.version = 11 : i64} {
  func.func @mlp_spill_kernel(%arg0: i32, %arg1: memref<16x1024xbf16, #tpu.memory_space<vmem>>, %arg2: memref<1x1024xf32, #tpu.memory_space<vmem>>, %arg3: memref<1x1024xf32, #tpu.memory_space<vmem>>, %arg4: memref<1024x128xbf16, #tpu.memory_space<vmem>>, %arg5: memref<1x128xf32, #tpu.memory_space<vmem>>, %arg6: memref<16x128xf32, #tpu.memory_space<vmem>>) attributes {dimension_semantics = [#tpu.dimension_semantics<parallel>], iteration_bounds = array<i64: 1>, scalar_prefetch = 0 : i64, scratch_operands = 0 : i64, tpu.core_type = #tpu.core_type<tc>, window_params = [{transform_indices = @transform_0, window_bounds = array<i64: 16, 1024>}, {pipeline_mode = #tpu.pipeline_mode<synchronous>, transform_indices = @transform_1, window_bounds = array<i64: 1, 1024>}, {pipeline_mode = #tpu.pipeline_mode<synchronous>, transform_indices = @transform_2, window_bounds = array<i64: 1, 1024>}, {pipeline_mode = #tpu.pipeline_mode<synchronous>, transform_indices = @transform_3, window_bounds = array<i64: 1024, 128>}, {pipeline_mode = #tpu.pipeline_mode<synchronous>, transform_indices = @transform_4, window_bounds = array<i64: 1, 128>}, {transform_indices = @transform_5, window_bounds = array<i64: 16, 128>}]} {
    %c0 = arith.constant 0 : index
    %c0_0 = arith.constant 0 : index
    %0 = vector.load %arg1[%c0, %c0_0] : memref<16x1024xbf16, #tpu.memory_space<vmem>>, vector<16x1024xbf16>
    %1 = arith.extf %0 : vector<16x1024xbf16> to vector<16x1024xf32>
    %c0_1 = arith.constant 0 : index
    %c0_2 = arith.constant 0 : index
    %2 = vector.load %arg2[%c0_1, %c0_2] : memref<1x1024xf32, #tpu.memory_space<vmem>>, vector<1x1024xf32>
    %3 = vector.broadcast %2 : vector<1x1024xf32> to vector<16x1024xf32>
    %4 = arith.mulf %1, %3 : vector<16x1024xf32>
    %c0_3 = arith.constant 0 : index
    %c0_4 = arith.constant 0 : index
    %5 = vector.load %arg3[%c0_3, %c0_4] : memref<1x1024xf32, #tpu.memory_space<vmem>>, vector<1x1024xf32>
    %6 = vector.broadcast %5 : vector<1x1024xf32> to vector<16x1024xf32>
    %7 = arith.addf %4, %6 : vector<16x1024xf32>
    %cst = arith.constant 0.000000e+00 : f32
    %8 = vector.broadcast %cst : f32 to vector<16x1024xf32>
    %9 = arith.maximumf %7, %8 : vector<16x1024xf32>
    %10 = arith.truncf %9 : vector<16x1024xf32> to vector<16x1024xbf16>
    %c0_5 = arith.constant 0 : index
    %c0_6 = arith.constant 0 : index
    %11 = vector.load %arg4[%c0_5, %c0_6] : memref<1024x128xbf16, #tpu.memory_space<vmem>>, vector<1024x128xbf16>
    %cst_7 = arith.constant dense<0.000000e+00> : vector<16x128xf32>
    %12 = tpu.matmul %10, %11, %cst_7 {dimension_numbers = #tpu.dot_dimension_numbers<[1], [0], [0], [1], [0, 0, 1, 1], [], []>} : vector<16x1024xbf16>, vector<1024x128xbf16>, vector<16x128xf32> -> vector<16x128xf32>
    %c0_8 = arith.constant 0 : index
    %c0_9 = arith.constant 0 : index
    %13 = vector.load %arg5[%c0_8, %c0_9] : memref<1x128xf32, #tpu.memory_space<vmem>>, vector<1x128xf32>
    %14 = vector.broadcast %13 : vector<1x128xf32> to vector<16x128xf32>
    %15 = arith.addf %12, %14 : vector<16x128xf32>
    %c0_10 = arith.constant 0 : index
    %c0_11 = arith.constant 0 : index
    %16 = vector.load %arg6[%c0_10, %c0_11] : memref<16x128xf32, #tpu.memory_space<vmem>>, vector<16x128xf32>
    tpu.vector_store %arg6[%c0_10, %c0_11], %15 {strides = array<i32>} : memref<16x128xf32, #tpu.memory_space<vmem>>, vector<16x128xf32>,
    return
  }
  func.func @transform_0(%arg0: i32) -> (i32, i32) {
    %c0_i32 = arith.constant 0 : i32
    %c0_i32_0 = arith.constant 0 : i32
    return %arg0, %c0_i32 : i32, i32
  }
  func.func @transform_1(%arg0: i32) -> (i32, i32) {
    %c0_i32 = arith.constant 0 : i32
    %c0_i32_0 = arith.constant 0 : i32
    %c0_i32_1 = arith.constant 0 : i32
    return %c0_i32, %c0_i32_0 : i32, i32
  }
  func.func @transform_2(%arg0: i32) -> (i32, i32) {
    %c0_i32 = arith.constant 0 : i32
    %c0_i32_0 = arith.constant 0 : i32
    %c0_i32_1 = arith.constant 0 : i32
    return %c0_i32, %c0_i32_0 : i32, i32
  }
  func.func @transform_3(%arg0: i32) -> (i32, i32) {
    %c0_i32 = arith.constant 0 : i32
    %c0_i32_0 = arith.constant 0 : i32
    %c0_i32_1 = arith.constant 0 : i32
    return %c0_i32, %c0_i32_0 : i32, i32
  }
  func.func @transform_4(%arg0: i32) -> (i32, i32) {
    %c0_i32 = arith.constant 0 : i32
    %c0_i32_0 = arith.constant 0 : i32
    %c0_i32_1 = arith.constant 0 : i32
    return %c0_i32, %c0_i32_0 : i32, i32
  }
  func.func @transform_5(%arg0: i32) -> (i32, i32) {
    %c0_i32 = arith.constant 0 : i32
    %c0_i32_0 = arith.constant 0 : i32
    return %arg0, %c0_i32 : i32, i32
  }
}

</mosaic_0001>

<llo_original>
// kernel: mlp_forward.3
$region0: #{mlp_forward.3}
  #allocation0 [shape = 'u32[]', space=smem, size = 0x4, offset = 0x4, fixed_abs, tag = 'smem constant byte address 0x4 - core index']
  #allocation1 [shape = 'u32[72,128]{1,0:T(1,128)}', space=vmem, size = 0x9000, scoped, tag = 'internal scratch']
  %s0 = inlined_call_operand.vmem [shape: bf16[16,1024], index: 0, kind: input, shape index: {}]
  %s1 = inlined_call_operand.vmem [shape: f32[1,1024], index: 1, kind: input, shape index: {}]
  %s2 = inlined_call_operand.vmem [shape: f32[1,1024], index: 2, kind: input, shape index: {}]
  %s3 = inlined_call_operand.vmem [shape: bf16[1024,128], index: 3, kind: input, shape index: {}]
  %s4 = inlined_call_operand.vmem [shape: f32[1,128], index: 4, kind: input, shape index: {}]
  %s5 = inlined_call_operand.vmem [shape: f32[16,128], index: 5, kind: output, shape index: {}]
  %s6 = sld [smem:[#allocation0]]
  $region30: #{mlp_forward.3} parent=0
    _
  %s8 = ssub.s32 1, %s6
  %s9 = scalar_select 0, %s8, %s6
  // Predicated region
  $region2: #{mlp_forward.3} parent=0 // pred_check
    _
  $region3: #{mlp_forward.3} parent=0 // pred_check_branch
    %11 = sbr.rel (0) target = $region5
  $region4: #{mlp_forward.3} parent=0 // pred_region
    _
  $region5: #{mlp_forward.3} parent=0 // pred_fallthru
    _
  // Predicated region
  $region6: #{mlp_forward.3} parent=0 // pred_check
    _
  $region7: #{mlp_forward.3} parent=0 // pred_check_branch
    %13 = sbr.rel (0) target = $region9
  $region8: #{mlp_forward.3} parent=0 // pred_region
    _
  $region9: #{mlp_forward.3} parent=0 // pred_fallthru
    _
  // Predicated region
  $region10: #{mlp_forward.3} parent=0 // pred_check
    _
  $region11: #{mlp_forward.3} parent=0 // pred_check_branch
    %15 = sbr.rel (0) target = $region13
  $region12: #{mlp_forward.3} parent=0 // pred_region
    _
  $region13: #{mlp_forward.3} parent=0 // pred_fallthru
    _
  // Predicated region
  $region14: #{mlp_forward.3} parent=0 // pred_check
    _
  $region15: #{mlp_forward.3} parent=0 // pred_check_branch
    %17 = sbr.rel (0) target = $region17
  $region16: #{mlp_forward.3} parent=0 // pred_region
    _
  $region17: #{mlp_forward.3} parent=0 // pred_fallthru
    _
  // Predicated region
  $region18: #{mlp_forward.3} parent=0 // pred_check
    _
  $region19: #{mlp_forward.3} parent=0 // pred_check_branch
    %19 = sbr.rel (0) target = $region21
  $region20: #{mlp_forward.3} parent=0 // pred_region
    _
  $region21: #{mlp_forward.3} parent=0 // pred_fallthru
    _
  %v20 = vld [vmem:[%s0] sm:$0xff]
  %v21 = vld [vmem:[%s0 + $0x8] sm:$0xff]
  %v22 = vld [vmem:[%s0 + $0x10] sm:$0xff]
  %v23 = vld [vmem:[%s0 + $0x18] sm:$0xff]
  %v24 = vld [vmem:[%s0 + $0x20] sm:$0xff]
  %v25 = vld [vmem:[%s0 + $0x28] sm:$0xff]
  %v26 = vld [vmem:[%s0 + $0x30] sm:$0xff]
  %v27 = vld [vmem:[%s0 + $0x38] sm:$0xff]
  %v28 = vunpack.c.l.bf16 %v20
  %v29 = vunpack.c.h.bf16 %v20
  %v30 = vunpack.c.l.bf16 %v21
  %v31 = vunpack.c.h.bf16 %v21
  %v32 = vunpack.c.l.bf16 %v22
  %v33 = vunpack.c.h.bf16 %v22
  %v34 = vunpack.c.l.bf16 %v23
  %v35 = vunpack.c.h.bf16 %v23
  %v36 = vunpack.c.l.bf16 %v24
  %v37 = vunpack.c.h.bf16 %v24
  %v38 = vunpack.c.l.bf16 %v25
  %v39 = vunpack.c.h.bf16 %v25
  %v40 = vunpack.c.l.bf16 %v26
  %v41 = vunpack.c.h.bf16 %v26
  %v42 = vunpack.c.l.bf16 %v27
  %v43 = vunpack.c.h.bf16 %v27
  %v44 = vld [vmem:[%s1] sm:$0xff]
  %v46 = vperm.slane %v44, 0
  %v47 = vperm.slane %v44, 1
  %v48 = vperm.slane %v44, 2
  %v49 = vperm.slane %v44, 3
  %v50 = vperm.slane %v44, 4
  %v51 = vperm.slane %v44, 5
  %v52 = vperm.slane %v44, 6
  %v53 = vperm.slane %v44, 7
  %v62 = vmul.f32 %v28, %v46
  %v63 = vmul.f32 %v29, %v47
  %v64 = vmul.f32 %v30, %v48
  %v65 = vmul.f32 %v31, %v49
  %v66 = vmul.f32 %v32, %v50
  %v67 = vmul.f32 %v33, %v51
  %v68 = vmul.f32 %v34, %v52
  %v69 = vmul.f32 %v35, %v53
  %v70 = vmul.f32 %v36, %v46
  %v71 = vmul.f32 %v37, %v47
  %v72 = vmul.f32 %v38, %v48
  %v73 = vmul.f32 %v39, %v49
  %v74 = vmul.f32 %v40, %v50
  %v75 = vmul.f32 %v41, %v51
  %v76 = vmul.f32 %v42, %v52
  %v77 = vmul.f32 %v43, %v53
  %v78 = vld [vmem:[%s2] sm:$0xff]
  %v80 = vperm.slane %v78, 0
  %v81 = vperm.slane %v78, 1
  %v82 = vperm.slane %v78, 2
  %v83 = vperm.slane %v78, 3
  %v84 = vperm.slane %v78, 4
  %v85 = vperm.slane %v78, 5
  %v86 = vperm.slane %v78, 6
  %v87 = vperm.slane %v78, 7
  %v96 = vadd.f32 %v62, %v80
  %v97 = vadd.f32 %v63, %v81
  %v98 = vadd.f32 %v64, %v82
  %v99 = vadd.f32 %v65, %v83
  %v100 = vadd.f32 %v66, %v84
  %v101 = vadd.f32 %v67, %v85
  %v102 = vadd.f32 %v68, %v86
  %v103 = vadd.f32 %v69, %v87
  %v104 = vadd.f32 %v70, %v80
  %v105 = vadd.f32 %v71, %v81
  %v106 = vadd.f32 %v72, %v82
  %v107 = vadd.f32 %v73, %v83
  %v108 = vadd.f32 %v74, %v84
  %v109 = vadd.f32 %v75, %v85
  %v110 = vadd.f32 %v76, %v86
  %v111 = vadd.f32 %v77, %v87
  %v112 = vmax.f32 %v96, 0.0
  %v113 = vmax.f32 %v97, 0.0
  %v114 = vmax.f32 %v98, 0.0
  %v115 = vmax.f32 %v99, 0.0
  %v116 = vmax.f32 %v100, 0.0
  %v117 = vmax.f32 %v101, 0.0
  %v118 = vmax.f32 %v102, 0.0
  %v119 = vmax.f32 %v103, 0.0
  %v120 = vmax.f32 %v104, 0.0
  %v121 = vmax.f32 %v105, 0.0
  %v122 = vmax.f32 %v106, 0.0
  %v123 = vmax.f32 %v107, 0.0
  %v124 = vmax.f32 %v108, 0.0
  %v125 = vmax.f32 %v109, 0.0
  %v126 = vmax.f32 %v110, 0.0
  %v127 = vmax.f32 %v111, 0.0
  %v128 = vpack.c.bf16 %v120, %v112
  %v129 = vpack.c.bf16 %v121, %v113
  %v130 = vpack.c.bf16 %v122, %v114
  %v131 = vpack.c.bf16 %v123, %v115
  %v132 = vpack.c.bf16 %v124, %v116
  %v133 = vpack.c.bf16 %v125, %v117
  %v134 = vpack.c.bf16 %v126, %v118
  %v135 = vpack.c.bf16 %v127, %v119
  %v136 = vld [vmem:[%s3] sm:$0xf]
  %v137 = vld [vmem:[%s3 + $0x4] sm:$0xf]
  %v138 = vld [vmem:[%s3 + $0x8] sm:$0xf]
  %v139 = vld [vmem:[%s3 + $0xc] sm:$0xf]
  %v140 = vld [vmem:[%s3 + $0x10] sm:$0xf]
  %v141 = vld [vmem:[%s3 + $0x14] sm:$0xf]
  %v142 = vld [vmem:[%s3 + $0x18] sm:$0xf]
  %v143 = vld [vmem:[%s3 + $0x1c] sm:$0xf]
  %v144 = vld [vmem:[%s3 + $0x20] sm:$0xf]
  %v145 = vld [vmem:[%s3 + $0x24] sm:$0xf]
  %v146 = vld [vmem:[%s3 + $0x28] sm:$0xf]
  %v147 = vld [vmem:[%s3 + $0x2c] sm:$0xf]
  %v148 = vld [vmem:[%s3 + $0x30] sm:$0xf]
  %v149 = vld [vmem:[%s3 + $0x34] sm:$0xf]
  %v150 = vld [vmem:[%s3 + $0x38] sm:$0xf]
  %v151 = vld [vmem:[%s3 + $0x3c] sm:$0xf]
  %v152 = vld [vmem:[%s3 + $0x40] sm:$0xf]
  %v153 = vld [vmem:[%s3 + $0x44] sm:$0xf]
  %v154 = vld [vmem:[%s3 + $0x48] sm:$0xf]
  %v155 = vld [vmem:[%s3 + $0x4c] sm:$0xf]
  %v156 = vld [vmem:[%s3 + $0x50] sm:$0xf]
  %v157 = vld [vmem:[%s3 + $0x54] sm:$0xf]
  %v158 = vld [vmem:[%s3 + $0x58] sm:$0xf]
  %v159 = vld [vmem:[%s3 + $0x5c] sm:$0xf]
  %v160 = vld [vmem:[%s3 + $0x60] sm:$0xf]
  %v161 = vld [vmem:[%s3 + $0x64] sm:$0xf]
  %v162 = vld [vmem:[%s3 + $0x68] sm:$0xf]
  %v163 = vld [vmem:[%s3 + $0x6c] sm:$0xf]
  %v164 = vld [vmem:[%s3 + $0x70] sm:$0xf]
  %v165 = vld [vmem:[%s3 + $0x74] sm:$0xf]
  %v166 = vld [vmem:[%s3 + $0x78] sm:$0xf]
  %v167 = vld [vmem:[%s3 + $0x7c] sm:$0xf]
  %v168 = vld [vmem:[%s3 + $0x80] sm:$0xf]
  %v169 = vld [vmem:[%s3 + $0x84] sm:$0xf]
  %v170 = vld [vmem:[%s3 + $0x88] sm:$0xf]
  %v171 = vld [vmem:[%s3 + $0x8c] sm:$0xf]
  %v172 = vld [vmem:[%s3 + $0x90] sm:$0xf]
  %v173 = vld [vmem:[%s3 + $0x94] sm:$0xf]
  %v174 = vld [vmem:[%s3 + $0x98] sm:$0xf]
  %v175 = vld [vmem:[%s3 + $0x9c] sm:$0xf]
  %v176 = vld [vmem:[%s3 + $0xa0] sm:$0xf]
  %v177 = vld [vmem:[%s3 + $0xa4] sm:$0xf]
  %v178 = vld [vmem:[%s3 + $0xa8] sm:$0xf]
  %v179 = vld [vmem:[%s3 + $0xac] sm:$0xf]
  %v180 = vld [vmem:[%s3 + $0xb0] sm:$0xf]
  %v181 = vld [vmem:[%s3 + $0xb4] sm:$0xf]
  %v182 = vld [vmem:[%s3 + $0xb8] sm:$0xf]
  %v183 = vld [vmem:[%s3 + $0xbc] sm:$0xf]
  %v184 = vld [vmem:[%s3 + $0xc0] sm:$0xf]
  %v185 = vld [vmem:[%s3 + $0xc4] sm:$0xf]
  %v186 = vld [vmem:[%s3 + $0xc8] sm:$0xf]
  %v187 = vld [vmem:[%s3 + $0xcc] sm:$0xf]
  %v188 = vld [vmem:[%s3 + $0xd0] sm:$0xf]
  %v189 = vld [vmem:[%s3 + $0xd4] sm:$0xf]
  %v190 = vld [vmem:[%s3 + $0xd8] sm:$0xf]
  %v191 = vld [vmem:[%s3 + $0xdc] sm:$0xf]
  %v192 = vld [vmem:[%s3 + $0xe0] sm:$0xf]
  %v193 = vld [vmem:[%s3 + $0xe4] sm:$0xf]
  %v194 = vld [vmem:[%s3 + $0xe8] sm:$0xf]
  %v195 = vld [vmem:[%s3 + $0xec] sm:$0xf]
  %v196 = vld [vmem:[%s3 + $0xf0] sm:$0xf]
  %v197 = vld [vmem:[%s3 + $0xf4] sm:$0xf]
  %v198 = vld [vmem:[%s3 + $0xf8] sm:$0xf]
  %v199 = vld [vmem:[%s3 + $0xfc] sm:$0xf]
  %v200 = vld [vmem:[%s3 + $0x100] sm:$0xf]
  %v201 = vld [vmem:[%s3 + $0x104] sm:$0xf]
  %v202 = vld [vmem:[%s3 + $0x108] sm:$0xf]
  %v203 = vld [vmem:[%s3 + $0x10c] sm:$0xf]
  %v204 = vld [vmem:[%s3 + $0x110] sm:$0xf]
  %v205 = vld [vmem:[%s3 + $0x114] sm:$0xf]
  %v206 = vld [vmem:[%s3 + $0x118] sm:$0xf]
  %v207 = vld [vmem:[%s3 + $0x11c] sm:$0xf]
  %v208 = vld [vmem:[%s3 + $0x120] sm:$0xf]
  %v209 = vld [vmem:[%s3 + $0x124] sm:$0xf]
  %v210 = vld [vmem:[%s3 + $0x128] sm:$0xf]
  %v211 = vld [vmem:[%s3 + $0x12c] sm:$0xf]
  %v212 = vld [vmem:[%s3 + $0x130] sm:$0xf]
  %v213 = vld [vmem:[%s3 + $0x134] sm:$0xf]
  %v214 = vld [vmem:[%s3 + $0x138] sm:$0xf]
  %v215 = vld [vmem:[%s3 + $0x13c] sm:$0xf]
  %v216 = vld [vmem:[%s3 + $0x140] sm:$0xf]
  %v217 = vld [vmem:[%s3 + $0x144] sm:$0xf]
  %v218 = vld [vmem:[%s3 + $0x148] sm:$0xf]
  %v219 = vld [vmem:[%s3 + $0x14c] sm:$0xf]
  %v220 = vld [vmem:[%s3 + $0x150] sm:$0xf]
  %v221 = vld [vmem:[%s3 + $0x154] sm:$0xf]
  %v222 = vld [vmem:[%s3 + $0x158] sm:$0xf]
  %v223 = vld [vmem:[%s3 + $0x15c] sm:$0xf]
  %v224 = vld [vmem:[%s3 + $0x160] sm:$0xf]
  %v225 = vld [vmem:[%s3 + $0x164] sm:$0xf]
  %v226 = vld [vmem:[%s3 + $0x168] sm:$0xf]
  %v227 = vld [vmem:[%s3 + $0x16c] sm:$0xf]
  %v228 = vld [vmem:[%s3 + $0x170] sm:$0xf]
  %v229 = vld [vmem:[%s3 + $0x174] sm:$0xf]
  %v230 = vld [vmem:[%s3 + $0x178] sm:$0xf]
  %v231 = vld [vmem:[%s3 + $0x17c] sm:$0xf]
  %v232 = vld [vmem:[%s3 + $0x180] sm:$0xf]
  %v233 = vld [vmem:[%s3 + $0x184] sm:$0xf]
  %v234 = vld [vmem:[%s3 + $0x188] sm:$0xf]
  %v235 = vld [vmem:[%s3 + $0x18c] sm:$0xf]
  %v236 = vld [vmem:[%s3 + $0x190] sm:$0xf]
  %v237 = vld [vmem:[%s3 + $0x194] sm:$0xf]
  %v238 = vld [vmem:[%s3 + $0x198] sm:$0xf]
  %v239 = vld [vmem:[%s3 + $0x19c] sm:$0xf]
  %v240 = vld [vmem:[%s3 + $0x1a0] sm:$0xf]
  %v241 = vld [vmem:[%s3 + $0x1a4] sm:$0xf]
  %v242 = vld [vmem:[%s3 + $0x1a8] sm:$0xf]
  %v243 = vld [vmem:[%s3 + $0x1ac] sm:$0xf]
  %v244 = vld [vmem:[%s3 + $0x1b0] sm:$0xf]
  %v245 = vld [vmem:[%s3 + $0x1b4] sm:$0xf]
  %v246 = vld [vmem:[%s3 + $0x1b8] sm:$0xf]
  %v247 = vld [vmem:[%s3 + $0x1bc] sm:$0xf]
  %v248 = vld [vmem:[%s3 + $0x1c0] sm:$0xf]
  %v249 = vld [vmem:[%s3 + $0x1c4] sm:$0xf]
  %v250 = vld [vmem:[%s3 + $0x1c8] sm:$0xf]
  %v251 = vld [vmem:[%s3 + $0x1cc] sm:$0xf]
  %v252 = vld [vmem:[%s3 + $0x1d0] sm:$0xf]
  %v253 = vld [vmem:[%s3 + $0x1d4] sm:$0xf]
  %v254 = vld [vmem:[%s3 + $0x1d8] sm:$0xf]
  %v255 = vld [vmem:[%s3 + $0x1dc] sm:$0xf]
  %v256 = vld [vmem:[%s3 + $0x1e0] sm:$0xf]
  %v257 = vld [vmem:[%s3 + $0x1e4] sm:$0xf]
  %v258 = vld [vmem:[%s3 + $0x1e8] sm:$0xf]
  %v259 = vld [vmem:[%s3 + $0x1ec] sm:$0xf]
  %v260 = vld [vmem:[%s3 + $0x1f0] sm:$0xf]
  %v261 = vld [vmem:[%s3 + $0x1f4] sm:$0xf]
  %v262 = vld [vmem:[%s3 + $0x1f8] sm:$0xf]
  %v263 = vld [vmem:[%s3 + $0x1fc] sm:$0xf]
  %v264 = vld [vmem:[%s4] sm:$0x1]
  %v266 = vperm.slane %v264, 0
  %v396 = vunpack.c.l.b16 %v136
  %v397 = vunpack.c.l.b16 %v137
  %v398 = vunpack.c.l.b16 %v138
  %v399 = vunpack.c.l.b16 %v139
  %v400 = vunpack.c.l.b16 %v140
  %v401 = vunpack.c.l.b16 %v141
  %v402 = vunpack.c.l.b16 %v142
  %v403 = vunpack.c.l.b16 %v143
  %v404 = vunpack.c.l.b16 %v144
  %v405 = vunpack.c.l.b16 %v145
  %v406 = vunpack.c.l.b16 %v146
  %v407 = vunpack.c.l.b16 %v147
  %v408 = vunpack.c.l.b16 %v148
  %v409 = vunpack.c.l.b16 %v149
  %v410 = vunpack.c.l.b16 %v150
  %v411 = vunpack.c.l.b16 %v151
  %v412 = vunpack.c.l.b16 %v152
  %v413 = vunpack.c.l.b16 %v153
  %v414 = vunpack.c.l.b16 %v154
  %v415 = vunpack.c.l.b16 %v155
  %v416 = vunpack.c.l.b16 %v156
  %v417 = vunpack.c.l.b16 %v157
  %v418 = vunpack.c.l.b16 %v158
  %v419 = vunpack.c.l.b16 %v159
  %v420 = vunpack.c.l.b16 %v160
  %v421 = vunpack.c.l.b16 %v161
  %v422 = vunpack.c.l.b16 %v162
  %v423 = vunpack.c.l.b16 %v163
  %v424 = vunpack.c.l.b16 %v164
  %v425 = vunpack.c.l.b16 %v165
  %v426 = vunpack.c.l.b16 %v166
  %v427 = vunpack.c.l.b16 %v167
  %v428 = vunpack.c.l.b16 %v168
  %v429 = vunpack.c.l.b16 %v169
  %v430 = vunpack.c.l.b16 %v170
  %v431 = vunpack.c.l.b16 %v171
  %v432 = vunpack.c.l.b16 %v172
  %v433 = vunpack.c.l.b16 %v173
  %v434 = vunpack.c.l.b16 %v174
  %v435 = vunpack.c.l.b16 %v175
  %v436 = vunpack.c.l.b16 %v176
  %v437 = vunpack.c.l.b16 %v177
  %v438 = vunpack.c.l.b16 %v178
  %v439 = vunpack.c.l.b16 %v179
  %v440 = vunpack.c.l.b16 %v180
  %v441 = vunpack.c.l.b16 %v181
  %v442 = vunpack.c.l.b16 %v182
  %v443 = vunpack.c.l.b16 %v183
  %v444 = vunpack.c.l.b16 %v184
  %v445 = vunpack.c.l.b16 %v185
  %v446 = vunpack.c.l.b16 %v186
  %v447 = vunpack.c.l.b16 %v187
  %v448 = vunpack.c.l.b16 %v188
  %v449 = vunpack.c.l.b16 %v189
  %v450 = vunpack.c.l.b16 %v190
  %v451 = vunpack.c.l.b16 %v191
  %v452 = vunpack.c.l.b16 %v192
  %v453 = vunpack.c.l.b16 %v193
  %v454 = vunpack.c.l.b16 %v194
  %v455 = vunpack.c.l.b16 %v195
  %v456 = vunpack.c.l.b16 %v196
  %v457 = vunpack.c.l.b16 %v197
  %v458 = vunpack.c.l.b16 %v198
  %v459 = vunpack.c.l.b16 %v199
  %v460 = vunpack.c.l.b16 %v200
  %v461 = vunpack.c.l.b16 %v201
  %v462 = vunpack.c.l.b16 %v202
  %v463 = vunpack.c.l.b16 %v203
  %v464 = vunpack.c.l.b16 %v204
  %v465 = vunpack.c.l.b16 %v205
  %v466 = vunpack.c.l.b16 %v206
  %v467 = vunpack.c.l.b16 %v207
  %v468 = vunpack.c.l.b16 %v208
  %v469 = vunpack.c.l.b16 %v209
  %v470 = vunpack.c.l.b16 %v210
  %v471 = vunpack.c.l.b16 %v211
  %v472 = vunpack.c.l.b16 %v212
  %v473 = vunpack.c.l.b16 %v213
  %v474 = vunpack.c.l.b16 %v214
  %v475 = vunpack.c.l.b16 %v215
  %v476 = vunpack.c.l.b16 %v216
  %v477 = vunpack.c.l.b16 %v217
  %v478 = vunpack.c.l.b16 %v218
  %v479 = vunpack.c.l.b16 %v219
  %v480 = vunpack.c.l.b16 %v220
  %v481 = vunpack.c.l.b16 %v221
  %v482 = vunpack.c.l.b16 %v222
  %v483 = vunpack.c.l.b16 %v223
  %v484 = vunpack.c.l.b16 %v224
  %v485 = vunpack.c.l.b16 %v225
  %v486 = vunpack.c.l.b16 %v226
  %v487 = vunpack.c.l.b16 %v227
  %v488 = vunpack.c.l.b16 %v228
  %v489 = vunpack.c.l.b16 %v229
  %v490 = vunpack.c.l.b16 %v230
  %v491 = vunpack.c.l.b16 %v231
  %v492 = vunpack.c.l.b16 %v232
  %v493 = vunpack.c.l.b16 %v233
  %v494 = vunpack.c.l.b16 %v234
  %v495 = vunpack.c.l.b16 %v235
  %v496 = vunpack.c.l.b16 %v236
  %v497 = vunpack.c.l.b16 %v237
  %v498 = vunpack.c.l.b16 %v238
  %v499 = vunpack.c.l.b16 %v239
  %v500 = vunpack.c.l.b16 %v240
  %v501 = vunpack.c.l.b16 %v241
  %v502 = vunpack.c.l.b16 %v242
  %v503 = vunpack.c.l.b16 %v243
  %v504 = vunpack.c.l.b16 %v244
  %v505 = vunpack.c.l.b16 %v245
  %v506 = vunpack.c.l.b16 %v246
  %v507 = vunpack.c.l.b16 %v247
  %v508 = vunpack.c.l.b16 %v248
  %v509 = vunpack.c.l.b16 %v249
  %v510 = vunpack.c.l.b16 %v250
  %v511 = vunpack.c.l.b16 %v251
  %v512 = vunpack.c.l.b16 %v252
  %v513 = vunpack.c.l.b16 %v253
  %v514 = vunpack.c.l.b16 %v254
  %v515 = vunpack.c.l.b16 %v255
  %v516 = vunpack.c.l.b16 %v256
  %v517 = vunpack.c.l.b16 %v257
  %v518 = vunpack.c.l.b16 %v258
  %v519 = vunpack.c.l.b16 %v259
  %v520 = vunpack.c.l.b16 %v260
  %v521 = vunpack.c.l.b16 %v261
  %v522 = vunpack.c.l.b16 %v262
  %v523 = vunpack.c.l.b16 %v263
  %v524 = vpack.c.b16 %v397, %v396
  %v525 = vpack.c.b16 %v399, %v398
  %v526 = vpack.c.b16 %v401, %v400
  %v527 = vpack.c.b16 %v403, %v402
  %v528 = vpack.c.b16 %v405, %v404
  %v529 = vpack.c.b16 %v407, %v406
  %v530 = vpack.c.b16 %v409, %v408
  %v531 = vpack.c.b16 %v411, %v410
  %v532 = vpack.c.b16 %v413, %v412
  %v533 = vpack.c.b16 %v415, %v414
  %v534 = vpack.c.b16 %v417, %v416
  %v535 = vpack.c.b16 %v419, %v418
  %v536 = vpack.c.b16 %v421, %v420
  %v537 = vpack.c.b16 %v423, %v422
  %v538 = vpack.c.b16 %v425, %v424
  %v539 = vpack.c.b16 %v427, %v426
  %v540 = vpack.c.b16 %v429, %v428
  %v541 = vpack.c.b16 %v431, %v430
  %v542 = vpack.c.b16 %v433, %v432
  %v543 = vpack.c.b16 %v435, %v434
  %v544 = vpack.c.b16 %v437, %v436
  %v545 = vpack.c.b16 %v439, %v438
  %v546 = vpack.c.b16 %v441, %v440
  %v547 = vpack.c.b16 %v443, %v442
  %v548 = vpack.c.b16 %v445, %v444
  %v549 = vpack.c.b16 %v447, %v446
  %v550 = vpack.c.b16 %v449, %v448
  %v551 = vpack.c.b16 %v451, %v450
  %v552 = vpack.c.b16 %v453, %v452
  %v553 = vpack.c.b16 %v455, %v454
  %v554 = vpack.c.b16 %v457, %v456
  %v555 = vpack.c.b16 %v459, %v458
  %v556 = vpack.c.b16 %v461, %v460
  %v557 = vpack.c.b16 %v463, %v462
  %v558 = vpack.c.b16 %v465, %v464
  %v559 = vpack.c.b16 %v467, %v466
  %v560 = vpack.c.b16 %v469, %v468
  %v561 = vpack.c.b16 %v471, %v470
  %v562 = vpack.c.b16 %v473, %v472
  %v563 = vpack.c.b16 %v475, %v474
  %v564 = vpack.c.b16 %v477, %v476
  %v565 = vpack.c.b16 %v479, %v478
  %v566 = vpack.c.b16 %v481, %v480
  %v567 = vpack.c.b16 %v483, %v482
  %v568 = vpack.c.b16 %v485, %v484
  %v569 = vpack.c.b16 %v487, %v486
  %v570 = vpack.c.b16 %v489, %v488
  %v571 = vpack.c.b16 %v491, %v490
  %v572 = vpack.c.b16 %v493, %v492
  %v573 = vpack.c.b16 %v495, %v494
  %v574 = vpack.c.b16 %v497, %v496
  %v575 = vpack.c.b16 %v499, %v498
  %v576 = vpack.c.b16 %v501, %v500
  %v577 = vpack.c.b16 %v503, %v502
  %v578 = vpack.c.b16 %v505, %v504
  %v579 = vpack.c.b16 %v507, %v506
  %v580 = vpack.c.b16 %v509, %v508
  %v581 = vpack.c.b16 %v511, %v510
  %v582 = vpack.c.b16 %v513, %v512
  %v583 = vpack.c.b16 %v515, %v514
  %v584 = vpack.c.b16 %v517, %v516
  %v585 = vpack.c.b16 %v519, %v518
  %v586 = vpack.c.b16 %v521, %v520
  %v587 = vpack.c.b16 %v523, %v522
  %652 = vmatpush.bf16.msra.mxu0 %v531
  %653 = vmatpush.bf16.msra.mxu0 %v530
  %654 = vmatpush.bf16.msra.mxu0 %v529
  %655 = vmatpush.bf16.msra.mxu0 %v528
  %656 = vmatpush.bf16.msra.mxu0 %v527
  %657 = vmatpush.bf16.msra.mxu0 %v526
  %658 = vmatpush.bf16.msra.mxu0 %v525
  %659 = vmatpush.bf16.msra.mxu0 %v524
  %660 = vmatmul.bf16.gmra.mxu0 %v128
  %v661 = vpop.f32.mrf.mxu0
  %v662 = vadd.f32 %v266, %v661
  %v663 = vpop.f32.mrf.mxu0
  %v664 = vadd.f32 %v266, %v663
  %665 = vdwg.mxu0
  %666 = vmatpush.bf16.msra.mxu0 %v539
  %667 = vmatpush.bf16.msra.mxu0 %v538
  %668 = vmatpush.bf16.msra.mxu0 %v537
  %669 = vmatpush.bf16.msra.mxu0 %v536
  %670 = vmatpush.bf16.msra.mxu0 %v535
  %671 = vmatpush.bf16.msra.mxu0 %v534
  %672 = vmatpush.bf16.msra.mxu0 %v533
  %673 = vmatpush.bf16.msra.mxu0 %v532
  %674 = vmatmul.bf16.gmra.mxu0 %v129
  %v675 = vpop.f32.mrf.mxu0
  %v676 = vadd.f32 %v662, %v675
  %v677 = vpop.f32.mrf.mxu0
  %v678 = vadd.f32 %v664, %v677
  %679 = vdwg.mxu0
  %680 = vmatpush.bf16.msra.mxu0 %v547
  %681 = vmatpush.bf16.msra.mxu0 %v546
  %682 = vmatpush.bf16.msra.mxu0 %v545
  %683 = vmatpush.bf16.msra.mxu0 %v544
  %684 = vmatpush.bf16.msra.mxu0 %v543
  %685 = vmatpush.bf16.msra.mxu0 %v542
  %686 = vmatpush.bf16.msra.mxu0 %v541
  %687 = vmatpush.bf16.msra.mxu0 %v540
  %688 = vmatmul.bf16.gmra.mxu0 %v130
  %v689 = vpop.f32.mrf.mxu0
  %v690 = vadd.f32 %v676, %v689
  %v691 = vpop.f32.mrf.mxu0
  %v692 = vadd.f32 %v678, %v691
  %693 = vdwg.mxu0
  %694 = vmatpush.bf16.msra.mxu0 %v555
  %695 = vmatpush.bf16.msra.mxu0 %v554
  %696 = vmatpush.bf16.msra.mxu0 %v553
  %697 = vmatpush.bf16.msra.mxu0 %v552
  %698 = vmatpush.bf16.msra.mxu0 %v551
  %699 = vmatpush.bf16.msra.mxu0 %v550
  %700 = vmatpush.bf16.msra.mxu0 %v549
  %701 = vmatpush.bf16.msra.mxu0 %v548
  %702 = vmatmul.bf16.gmra.mxu0 %v131
  %v703 = vpop.f32.mrf.mxu0
  %v704 = vadd.f32 %v690, %v703
  %v705 = vpop.f32.mrf.mxu0
  %v706 = vadd.f32 %v692, %v705
  %707 = vdwg.mxu0
  %708 = vmatpush.bf16.msra.mxu0 %v563
  %709 = vmatpush.bf16.msra.mxu0 %v562
  %710 = vmatpush.bf16.msra.mxu0 %v561
  %711 = vmatpush.bf16.msra.mxu0 %v560
  %712 = vmatpush.bf16.msra.mxu0 %v559
  %713 = vmatpush.bf16.msra.mxu0 %v558
  %714 = vmatpush.bf16.msra.mxu0 %v557
  %715 = vmatpush.bf16.msra.mxu0 %v556
  %716 = vmatmul.bf16.gmra.mxu0 %v132
  %v717 = vpop.f32.mrf.mxu0
  %v718 = vadd.f32 %v704, %v717
  %v719 = vpop.f32.mrf.mxu0
  %v720 = vadd.f32 %v706, %v719
  %721 = vdwg.mxu0
  %722 = vmatpush.bf16.msra.mxu0 %v571
  %723 = vmatpush.bf16.msra.mxu0 %v570
  %724 = vmatpush.bf16.msra.mxu0 %v569
  %725 = vmatpush.bf16.msra.mxu0 %v568
  %726 = vmatpush.bf16.msra.mxu0 %v567
  %727 = vmatpush.bf16.msra.mxu0 %v566
  %728 = vmatpush.bf16.msra.mxu0 %v565
  %729 = vmatpush.bf16.msra.mxu0 %v564
  %730 = vmatmul.bf16.gmra.mxu0 %v133
  %v731 = vpop.f32.mrf.mxu0
  %v732 = vadd.f32 %v718, %v731
  %v733 = vpop.f32.mrf.mxu0
  %v734 = vadd.f32 %v720, %v733
  %735 = vdwg.mxu0
  %736 = vmatpush.bf16.msra.mxu0 %v579
  %737 = vmatpush.bf16.msra.mxu0 %v578
  %738 = vmatpush.bf16.msra.mxu0 %v577
  %739 = vmatpush.bf16.msra.mxu0 %v576
  %740 = vmatpush.bf16.msra.mxu0 %v575
  %741 = vmatpush.bf16.msra.mxu0 %v574
  %742 = vmatpush.bf16.msra.mxu0 %v573
  %743 = vmatpush.bf16.msra.mxu0 %v572
  %744 = vmatmul.bf16.gmra.mxu0 %v134
  %v745 = vpop.f32.mrf.mxu0
  %v746 = vadd.f32 %v732, %v745
  %v747 = vpop.f32.mrf.mxu0
  %v748 = vadd.f32 %v734, %v747
  %749 = vdwg.mxu0
  %750 = vmatpush.bf16.msra.mxu0 %v587
  %751 = vmatpush.bf16.msra.mxu0 %v586
  %752 = vmatpush.bf16.msra.mxu0 %v585
  %753 = vmatpush.bf16.msra.mxu0 %v584
  %754 = vmatpush.bf16.msra.mxu0 %v583
  %755 = vmatpush.bf16.msra.mxu0 %v582
  %756 = vmatpush.bf16.msra.mxu0 %v581
  %757 = vmatpush.bf16.msra.mxu0 %v580
  %758 = vmatmul.bf16.gmra.mxu0 %v135
  %v759 = vpop.f32.mrf.mxu0
  %v760 = vadd.f32 %v746, %v759
  %v761 = vpop.f32.mrf.mxu0
  %v762 = vadd.f32 %v748, %v761
  %763 = vdwg.mxu0
  %764 = vst [vmem:[%s5] sm:$0xff] %v760
  %765 = vst [vmem:[%s5 + $0x8] sm:$0xff] %v762
  // Predicated region
  $region22: #{mlp_forward.3} parent=0 // pred_check
    _
  $region23: #{mlp_forward.3} parent=0 // pred_check_branch
    %767 = sbr.rel (0) target = $region25
  $region24: #{mlp_forward.3} parent=0 // pred_region
    _
  $region25: #{mlp_forward.3} parent=0 // pred_fallthru
    _
  // Predicated region
  $region26: #{mlp_forward.3} parent=0 // pred_check
    _
  $region27: #{mlp_forward.3} parent=0 // pred_check_branch
    %769 = sbr.rel (0) target = $region29
  $region28: #{mlp_forward.3} parent=0 // pred_region
    _
  $region29: #{mlp_forward.3} parent=0 // pred_fallthru
    _

// kernel: mlp_forward.2
$region0: #{mlp_forward.2}
  #allocation0 [shape = 'u32[]', space=smem, size = 0x4, offset = 0x4, fixed_abs, tag = 'smem constant byte address 0x4 - core index']
  #allocation1 [shape = 'u32[72,128]{1,0:T(1,128)}', space=vmem, size = 0x9000, scoped, tag = 'internal scratch']
  %s0 = inlined_call_operand.vmem [shape: bf16[16,768], index: 0, kind: input, shape index: {}]
  %s1 = inlined_call_operand.vmem [shape: bf16[768,1024], index: 1, kind: input, shape index: {}]
  %s2 = inlined_call_operand.vmem [shape: bf16[16,1024], index: 2, kind: output, shape index: {0}]
  %s3 = inlined_call_operand.vmem [shape: f32[1,2,1024], index: 3, kind: output, shape index: {1}]
  %4 = xla_tuple %s2, %s3
  %s5 = sld [smem:[#allocation0]]
  $region26: #{mlp_forward.2} parent=0
    _
  %s7 = ssub.s32 1, %s5
  %s8 = scalar_select 0, %s7, %s5
  // Predicated region
  $region2: #{mlp_forward.2} parent=0 // pred_check
    _
  $region3: #{mlp_forward.2} parent=0 // pred_check_branch
    %10 = sbr.rel (0) target = $region5
  $region4: #{mlp_forward.2} parent=0 // pred_region
    _
  $region5: #{mlp_forward.2} parent=0 // pred_fallthru
    _
  // Predicated region
  $region6: #{mlp_forward.2} parent=0 // pred_check
    _
  $region7: #{mlp_forward.2} parent=0 // pred_check_branch
    %12 = sbr.rel (0) target = $region9
  $region8: #{mlp_forward.2} parent=0 // pred_region
    _
  $region9: #{mlp_forward.2} parent=0 // pred_fallthru
    _
  %v13 = vld [vmem:[%s0] sm:$0xff]
  %v14 = vld [vmem:[%s0 + $0x8] sm:$0xff]
  %v15 = vld [vmem:[%s0 + $0x10] sm:$0xff]
  %v16 = vld [vmem:[%s0 + $0x18] sm:$0xff]
  %v17 = vld [vmem:[%s0 + $0x20] sm:$0xff]
  %v18 = vld [vmem:[%s0 + $0x28] sm:$0xff]
  %v19 = vld [vmem:[%s1] sm:$0xff]
  %v20 = vld [vmem:[%s1 + $0x8] sm:$0xff]
  %v21 = vld [vmem:[%s1 + $0x10] sm:$0xff]
  %v22 = vld [vmem:[%s1 + $0x18] sm:$0xff]
  %v23 = vld [vmem:[%s1 + $0x20] sm:$0xff]
  %v24 = vld [vmem:[%s1 + $0x28] sm:$0xff]
  %v25 = vld [vmem:[%s1 + $0x30] sm:$0xff]
  %v26 = vld [vmem:[%s1 + $0x38] sm:$0xff]
  %v27 = vld [vmem:[%s1 + $0x40] sm:$0xff]
  %v28 = vld [vmem:[%s1 + $0x48] sm:$0xff]
  %v29 = vld [vmem:[%s1 + $0x50] sm:$0xff]
  %v30 = vld [vmem:[%s1 + $0x58] sm:$0xff]
  %v31 = vld [vmem:[%s1 + $0x60] sm:$0xff]
  %v32 = vld [vmem:[%s1 + $0x68] sm:$0xff]
  %v33 = vld [vmem:[%s1 + $0x70] sm:$0xff]
  %v34 = vld [vmem:[%s1 + $0x78] sm:$0xff]
  %v35 = vld [vmem:[%s1 + $0x80] sm:$0xff]
  %v36 = vld [vmem:[%s1 + $0x88] sm:$0xff]
  %v37 = vld [vmem:[%s1 + $0x90] sm:$0xff]
  %v38 = vld [vmem:[%s1 + $0x98] sm:$0xff]
  %v39 = vld [vmem:[%s1 + $0xa0] sm:$0xff]
  %v40 = vld [vmem:[%s1 + $0xa8] sm:$0xff]
  %v41 = vld [vmem:[%s1 + $0xb0] sm:$0xff]
  %v42 = vld [vmem:[%s1 + $0xb8] sm:$0xff]
  %v43 = vld [vmem:[%s1 + $0xc0] sm:$0xff]
  %v44 = vld [vmem:[%s1 + $0xc8] sm:$0xff]
  %v45 = vld [vmem:[%s1 + $0xd0] sm:$0xff]
  %v46 = vld [vmem:[%s1 + $0xd8] sm:$0xff]
  %v47 = vld [vmem:[%s1 + $0xe0] sm:$0xff]
  %v48 = vld [vmem:[%s1 + $0xe8] sm:$0xff]
  %v49 = vld [vmem:[%s1 + $0xf0] sm:$0xff]
  %v50 = vld [vmem:[%s1 + $0xf8] sm:$0xff]
  %v51 = vld [vmem:[%s1 + $0x100] sm:$0xff]
  %v52 = vld [vmem:[%s1 + $0x108] sm:$0xff]
  %v53 = vld [vmem:[%s1 + $0x110] sm:$0xff]
  %v54 = vld [vmem:[%s1 + $0x118] sm:$0xff]
  %v55 = vld [vmem:[%s1 + $0x120] sm:$0xff]
  %v56 = vld [vmem:[%s1 + $0x128] sm:$0xff]
  %v57 = vld [vmem:[%s1 + $0x130] sm:$0xff]
  %v58 = vld [vmem:[%s1 + $0x138] sm:$0xff]
  %v59 = vld [vmem:[%s1 + $0x140] sm:$0xff]
  %v60 = vld [vmem:[%s1 + $0x148] sm:$0xff]
  %v61 = vld [vmem:[%s1 + $0x150] sm:$0xff]
  %v62 = vld [vmem:[%s1 + $0x158] sm:$0xff]
  %v63 = vld [vmem:[%s1 + $0x160] sm:$0xff]
  %v64 = vld [vmem:[%s1 + $0x168] sm:$0xff]
  %v65 = vld [vmem:[%s1 + $0x170] sm:$0xff]
  %v66 = vld [vmem:[%s1 + $0x178] sm:$0xff]
  %v67 = vld [vmem:[%s1 + $0x180] sm:$0xff]
  %v68 = vld [vmem:[%s1 + $0x188] sm:$0xff]
  %v69 = vld [vmem:[%s1 + $0x190] sm:$0xff]
  %v70 = vld [vmem:[%s1 + $0x198] sm:$0xff]
  %v71 = vld [vmem:[%s1 + $0x1a0] sm:$0xff]
  %v72 = vld [vmem:[%s1 + $0x1a8] sm:$0xff]
  %v73 = vld [vmem:[%s1 + $0x1b0] sm:$0xff]
  %v74 = vld [vmem:[%s1 + $0x1b8] sm:$0xff]
  %v75 = vld [vmem:[%s1 + $0x1c0] sm:$0xff]
  %v76 = vld [vmem:[%s1 + $0x1c8] sm:$0xff]
  %v77 = vld [vmem:[%s1 + $0x1d0] sm:$0xff]
  %v78 = vld [vmem:[%s1 + $0x1d8] sm:$0xff]
  %v79 = vld [vmem:[%s1 + $0x1e0] sm:$0xff]
  %v80 = vld [vmem:[%s1 + $0x1e8] sm:$0xff]
  %v81 = vld [vmem:[%s1 + $0x1f0] sm:$0xff]
  %v82 = vld [vmem:[%s1 + $0x1f8] sm:$0xff]
  %v83 = vld [vmem:[%s1 + $0x200] sm:$0xff]
  %v84 = vld [vmem:[%s1 + $0x208] sm:$0xff]
  %v85 = vld [vmem:[%s1 + $0x210] sm:$0xff]
  %v86 = vld [vmem:[%s1 + $0x218] sm:$0xff]
  %v87 = vld [vmem:[%s1 + $0x220] sm:$0xff]
  %v88 = vld [vmem:[%s1 + $0x228] sm:$0xff]
  %v89 = vld [vmem:[%s1 + $0x230] sm:$0xff]
  %v90 = vld [vmem:[%s1 + $0x238] sm:$0xff]
  %v91 = vld [vmem:[%s1 + $0x240] sm:$0xff]
  %v92 = vld [vmem:[%s1 + $0x248] sm:$0xff]
  %v93 = vld [vmem:[%s1 + $0x250] sm:$0xff]
  %v94 = vld [vmem:[%s1 + $0x258] sm:$0xff]
  %v95 = vld [vmem:[%s1 + $0x260] sm:$0xff]
  %v96 = vld [vmem:[%s1 + $0x268] sm:$0xff]
  %v97 = vld [vmem:[%s1 + $0x270] sm:$0xff]
  %v98 = vld [vmem:[%s1 + $0x278] sm:$0xff]
  %v99 = vld [vmem:[%s1 + $0x280] sm:$0xff]
  %v100 = vld [vmem:[%s1 + $0x288] sm:$0xff]
  %v101 = vld [vmem:[%s1 + $0x290] sm:$0xff]
  %v102 = vld [vmem:[%s1 + $0x298] sm:$0xff]
  %v103 = vld [vmem:[%s1 + $0x2a0] sm:$0xff]
  %v104 = vld [vmem:[%s1 + $0x2a8] sm:$0xff]
  %v105 = vld [vmem:[%s1 + $0x2b0] sm:$0xff]
  %v106 = vld [vmem:[%s1 + $0x2b8] sm:$0xff]
  %v107 = vld [vmem:[%s1 + $0x2c0] sm:$0xff]
  %v108 = vld [vmem:[%s1 + $0x2c8] sm:$0xff]
  %v109 = vld [vmem:[%s1 + $0x2d0] sm:$0xff]
  %v110 = vld [vmem:[%s1 + $0x2d8] sm:$0xff]
  %v111 = vld [vmem:[%s1 + $0x2e0] sm:$0xff]
  %v112 = vld [vmem:[%s1 + $0x2e8] sm:$0xff]
  %v113 = vld [vmem:[%s1 + $0x2f0] sm:$0xff]
  %v114 = vld [vmem:[%s1 + $0x2f8] sm:$0xff]
  %v115 = vld [vmem:[%s1 + $0x300] sm:$0xff]
  %v116 = vld [vmem:[%s1 + $0x308] sm:$0xff]
  %v117 = vld [vmem:[%s1 + $0x310] sm:$0xff]
  %v118 = vld [vmem:[%s1 + $0x318] sm:$0xff]
  %v119 = vld [vmem:[%s1 + $0x320] sm:$0xff]
  %v120 = vld [vmem:[%s1 + $0x328] sm:$0xff]
  %v121 = vld [vmem:[%s1 + $0x330] sm:$0xff]
  %v122 = vld [vmem:[%s1 + $0x338] sm:$0xff]
  %v123 = vld [vmem:[%s1 + $0x340] sm:$0xff]
  %v124 = vld [vmem:[%s1 + $0x348] sm:$0xff]
  %v125 = vld [vmem:[%s1 + $0x350] sm:$0xff]
  %v126 = vld [vmem:[%s1 + $0x358] sm:$0xff]
  %v127 = vld [vmem:[%s1 + $0x360] sm:$0xff]
  %v128 = vld [vmem:[%s1 + $0x368] sm:$0xff]
  %v129 = vld [vmem:[%s1 + $0x370] sm:$0xff]
  %v130 = vld [vmem:[%s1 + $0x378] sm:$0xff]
  %v131 = vld [vmem:[%s1 + $0x380] sm:$0xff]
  %v132 = vld [vmem:[%s1 + $0x388] sm:$0xff]
  %v133 = vld [vmem:[%s1 + $0x390] sm:$0xff]
  %v134 = vld [vmem:[%s1 + $0x398] sm:$0xff]
  %v135 = vld [vmem:[%s1 + $0x3a0] sm:$0xff]
  %v136 = vld [vmem:[%s1 + $0x3a8] sm:$0xff]
  %v137 = vld [vmem:[%s1 + $0x3b0] sm:$0xff]
  %v138 = vld [vmem:[%s1 + $0x3b8] sm:$0xff]
  %v139 = vld [vmem:[%s1 + $0x3c0] sm:$0xff]
  %v140 = vld [vmem:[%s1 + $0x3c8] sm:$0xff]
  %v141 = vld [vmem:[%s1 + $0x3d0] sm:$0xff]
  %v142 = vld [vmem:[%s1 + $0x3d8] sm:$0xff]
  %v143 = vld [vmem:[%s1 + $0x3e0] sm:$0xff]
  %v144 = vld [vmem:[%s1 + $0x3e8] sm:$0xff]
  %v145 = vld [vmem:[%s1 + $0x3f0] sm:$0xff]
  %v146 = vld [vmem:[%s1 + $0x3f8] sm:$0xff]
  %v147 = vld [vmem:[%s1 + $0x400] sm:$0xff]
  %v148 = vld [vmem:[%s1 + $0x408] sm:$0xff]
  %v149 = vld [vmem:[%s1 + $0x410] sm:$0xff]
  %v150 = vld [vmem:[%s1 + $0x418] sm:$0xff]
  %v151 = vld [vmem:[%s1 + $0x420] sm:$0xff]
  %v152 = vld [vmem:[%s1 + $0x428] sm:$0xff]
  %v153 = vld [vmem:[%s1 + $0x430] sm:$0xff]
  %v154 = vld [vmem:[%s1 + $0x438] sm:$0xff]
  %v155 = vld [vmem:[%s1 + $0x440] sm:$0xff]
  %v156 = vld [vmem:[%s1 + $0x448] sm:$0xff]
  %v157 = vld [vmem:[%s1 + $0x450] sm:$0xff]
  %v158 = vld [vmem:[%s1 + $0x458] sm:$0xff]
  %v159 = vld [vmem:[%s1 + $0x460] sm:$0xff]
  %v160 = vld [vmem:[%s1 + $0x468] sm:$0xff]
  %v161 = vld [vmem:[%s1 + $0x470] sm:$0xff]
  %v162 = vld [vmem:[%s1 + $0x478] sm:$0xff]
  %v163 = vld [vmem:[%s1 + $0x480] sm:$0xff]
  %v164 = vld [vmem:[%s1 + $0x488] sm:$0xff]
  %v165 = vld [vmem:[%s1 + $0x490] sm:$0xff]
  %v166 = vld [vmem:[%s1 + $0x498] sm:$0xff]
  %v167 = vld [vmem:[%s1 + $0x4a0] sm:$0xff]
  %v168 = vld [vmem:[%s1 + $0x4a8] sm:$0xff]
  %v169 = vld [vmem:[%s1 + $0x4b0] sm:$0xff]
  %v170 = vld [vmem:[%s1 + $0x4b8] sm:$0xff]
  %v171 = vld [vmem:[%s1 + $0x4c0] sm:$0xff]
  %v172 = vld [vmem:[%s1 + $0x4c8] sm:$0xff]
  %v173 = vld [vmem:[%s1 + $0x4d0] sm:$0xff]
  %v174 = vld [vmem:[%s1 + $0x4d8] sm:$0xff]
  %v175 = vld [vmem:[%s1 + $0x4e0] sm:$0xff]
  %v176 = vld [vmem:[%s1 + $0x4e8] sm:$0xff]
  %v177 = vld [vmem:[%s1 + $0x4f0] sm:$0xff]
  %v178 = vld [vmem:[%s1 + $0x4f8] sm:$0xff]
  %v179 = vld [vmem:[%s1 + $0x500] sm:$0xff]
  %v180 = vld [vmem:[%s1 + $0x508] sm:$0xff]
  %v181 = vld [vmem:[%s1 + $0x510] sm:$0xff]
  %v182 = vld [vmem:[%s1 + $0x518] sm:$0xff]
  %v183 = vld [vmem:[%s1 + $0x520] sm:$0xff]
  %v184 = vld [vmem:[%s1 + $0x528] sm:$0xff]
  %v185 = vld [vmem:[%s1 + $0x530] sm:$0xff]
  %v186 = vld [vmem:[%s1 + $0x538] sm:$0xff]
  %v187 = vld [vmem:[%s1 + $0x540] sm:$0xff]
  %v188 = vld [vmem:[%s1 + $0x548] sm:$0xff]
  %v189 = vld [vmem:[%s1 + $0x550] sm:$0xff]
  %v190 = vld [vmem:[%s1 + $0x558] sm:$0xff]
  %v191 = vld [vmem:[%s1 + $0x560] sm:$0xff]
  %v192 = vld [vmem:[%s1 + $0x568] sm:$0xff]
  %v193 = vld [vmem:[%s1 + $0x570] sm:$0xff]
  %v194 = vld [vmem:[%s1 + $0x578] sm:$0xff]
  %v195 = vld [vmem:[%s1 + $0x580] sm:$0xff]
  %v196 = vld [vmem:[%s1 + $0x588] sm:$0xff]
  %v197 = vld [vmem:[%s1 + $0x590] sm:$0xff]
  %v198 = vld [vmem:[%s1 + $0x598] sm:$0xff]
  %v199 = vld [vmem:[%s1 + $0x5a0] sm:$0xff]
  %v200 = vld [vmem:[%s1 + $0x5a8] sm:$0xff]
  %v201 = vld [vmem:[%s1 + $0x5b0] sm:$0xff]
  %v202 = vld [vmem:[%s1 + $0x5b8] sm:$0xff]
  %v203 = vld [vmem:[%s1 + $0x5c0] sm:$0xff]
  %v204 = vld [vmem:[%s1 + $0x5c8] sm:$0xff]
  %v205 = vld [vmem:[%s1 + $0x5d0] sm:$0xff]
  %v206 = vld [vmem:[%s1 + $0x5d8] sm:$0xff]
  %v207 = vld [vmem:[%s1 + $0x5e0] sm:$0xff]
  %v208 = vld [vmem:[%s1 + $0x5e8] sm:$0xff]
  %v209 = vld [vmem:[%s1 + $0x5f0] sm:$0xff]
  %v210 = vld [vmem:[%s1 + $0x5f8] sm:$0xff]
  %v211 = vld [vmem:[%s1 + $0x600] sm:$0xff]
  %v212 = vld [vmem:[%s1 + $0x608] sm:$0xff]
  %v213 = vld [vmem:[%s1 + $0x610] sm:$0xff]
  %v214 = vld [vmem:[%s1 + $0x618] sm:$0xff]
  %v215 = vld [vmem:[%s1 + $0x620] sm:$0xff]
  %v216 = vld [vmem:[%s1 + $0x628] sm:$0xff]
  %v217 = vld [vmem:[%s1 + $0x630] sm:$0xff]
  %v218 = vld [vmem:[%s1 + $0x638] sm:$0xff]
  %v219 = vld [vmem:[%s1 + $0x640] sm:$0xff]
  %v220 = vld [vmem:[%s1 + $0x648] sm:$0xff]
  %v221 = vld [vmem:[%s1 + $0x650] sm:$0xff]
  %v222 = vld [vmem:[%s1 + $0x658] sm:$0xff]
  %v223 = vld [vmem:[%s1 + $0x660] sm:$0xff]
  %v224 = vld [vmem:[%s1 + $0x668] sm:$0xff]
  %v225 = vld [vmem:[%s1 + $0x670] sm:$0xff]
  %v226 = vld [vmem:[%s1 + $0x678] sm:$0xff]
  %v227 = vld [vmem:[%s1 + $0x680] sm:$0xff]
  %v228 = vld [vmem:[%s1 + $0x688] sm:$0xff]
  %v229 = vld [vmem:[%s1 + $0x690] sm:$0xff]
  %v230 = vld [vmem:[%s1 + $0x698] sm:$0xff]
  %v231 = vld [vmem:[%s1 + $0x6a0] sm:$0xff]
  %v232 = vld [vmem:[%s1 + $0x6a8] sm:$0xff]
  %v233 = vld [vmem:[%s1 + $0x6b0] sm:$0xff]
  %v234 = vld [vmem:[%s1 + $0x6b8] sm:$0xff]
  %v235 = vld [vmem:[%s1 + $0x6c0] sm:$0xff]
  %v236 = vld [vmem:[%s1 + $0x6c8] sm:$0xff]
  %v237 = vld [vmem:[%s1 + $0x6d0] sm:$0xff]
  %v238 = vld [vmem:[%s1 + $0x6d8] sm:$0xff]
  %v239 = vld [vmem:[%s1 + $0x6e0] sm:$0xff]
  %v240 = vld [vmem:[%s1 + $0x6e8] sm:$0xff]
  %v241 = vld [vmem:[%s1 + $0x6f0] sm:$0xff]
  %v242 = vld [vmem:[%s1 + $0x6f8] sm:$0xff]
  %v243 = vld [vmem:[%s1 + $0x700] sm:$0xff]
  %v244 = vld [vmem:[%s1 + $0x708] sm:$0xff]
  %v245 = vld [vmem:[%s1 + $0x710] sm:$0xff]
  %v246 = vld [vmem:[%s1 + $0x718] sm:$0xff]
  %v247 = vld [vmem:[%s1 + $0x720] sm:$0xff]
  %v248 = vld [vmem:[%s1 + $0x728] sm:$0xff]
  %v249 = vld [vmem:[%s1 + $0x730] sm:$0xff]
  %v250 = vld [vmem:[%s1 + $0x738] sm:$0xff]
  %v251 = vld [vmem:[%s1 + $0x740] sm:$0xff]
  %v252 = vld [vmem:[%s1 + $0x748] sm:$0xff]
  %v253 = vld [vmem:[%s1 + $0x750] sm:$0xff]
  %v254 = vld [vmem:[%s1 + $0x758] sm:$0xff]
  %v255 = vld [vmem:[%s1 + $0x760] sm:$0xff]
  %v256 = vld [vmem:[%s1 + $0x768] sm:$0xff]
  %v257 = vld [vmem:[%s1 + $0x770] sm:$0xff]
  %v258 = vld [vmem:[%s1 + $0x778] sm:$0xff]
  %v259 = vld [vmem:[%s1 + $0x780] sm:$0xff]
  %v260 = vld [vmem:[%s1 + $0x788] sm:$0xff]
  %v261 = vld [vmem:[%s1 + $0x790] sm:$0xff]
  %v262 = vld [vmem:[%s1 + $0x798] sm:$0xff]
  %v263 = vld [vmem:[%s1 + $0x7a0] sm:$0xff]
  %v264 = vld [vmem:[%s1 + $0x7a8] sm:$0xff]
  %v265 = vld [vmem:[%s1 + $0x7b0] sm:$0xff]
  %v266 = vld [vmem:[%s1 + $0x7b8] sm:$0xff]
  %v267 = vld [vmem:[%s1 + $0x7c0] sm:$0xff]
  %v268 = vld [vmem:[%s1 + $0x7c8] sm:$0xff]
  %v269 = vld [vmem:[%s1 + $0x7d0] sm:$0xff]
  %v270 = vld [vmem:[%s1 + $0x7d8] sm:$0xff]
  %v271 = vld [vmem:[%s1 + $0x7e0] sm:$0xff]
  %v272 = vld [vmem:[%s1 + $0x7e8] sm:$0xff]
  %v273 = vld [vmem:[%s1 + $0x7f0] sm:$0xff]
  %v274 = vld [vmem:[%s1 + $0x7f8] sm:$0xff]
  %v275 = vld [vmem:[%s1 + $0x800] sm:$0xff]
  %v276 = vld [vmem:[%s1 + $0x808] sm:$0xff]
  %v277 = vld [vmem:[%s1 + $0x810] sm:$0xff]
  %v278 = vld [vmem:[%s1 + $0x818] sm:$0xff]
  %v279 = vld [vmem:[%s1 + $0x820] sm:$0xff]
  %v280 = vld [vmem:[%s1 + $0x828] sm:$0xff]
  %v281 = vld [vmem:[%s1 + $0x830] sm:$0xff]
  %v282 = vld [vmem:[%s1 + $0x838] sm:$0xff]
  %v283 = vld [vmem:[%s1 + $0x840] sm:$0xff]
  %v284 = vld [vmem:[%s1 + $0x848] sm:$0xff]
  %v285 = vld [vmem:[%s1 + $0x850] sm:$0xff]
  %v286 = vld [vmem:[%s1 + $0x858] sm:$0xff]
  %v287 = vld [vmem:[%s1 + $0x860] sm:$0xff]
  %v288 = vld [vmem:[%s1 + $0x868] sm:$0xff]
  %v289 = vld [vmem:[%s1 + $0x870] sm:$0xff]
  %v290 = vld [vmem:[%s1 + $0x878] sm:$0xff]
  %v291 = vld [vmem:[%s1 + $0x880] sm:$0xff]
  %v292 = vld [vmem:[%s1 + $0x888] sm:$0xff]
  %v293 = vld [vmem:[%s1 + $0x890] sm:$0xff]
  %v294 = vld [vmem:[%s1 + $0x898] sm:$0xff]
  %v295 = vld [vmem:[%s1 + $0x8a0] sm:$0xff]
  %v296 = vld [vmem:[%s1 + $0x8a8] sm:$0xff]
  %v297 = vld [vmem:[%s1 + $0x8b0] sm:$0xff]
  %v298 = vld [vmem:[%s1 + $0x8b8] sm:$0xff]
  %v299 = vld [vmem:[%s1 + $0x8c0] sm:$0xff]
  %v300 = vld [vmem:[%s1 + $0x8c8] sm:$0xff]
  %v301 = vld [vmem:[%s1 + $0x8d0] sm:$0xff]
  %v302 = vld [vmem:[%s1 + $0x8d8] sm:$0xff]
  %v303 = vld [vmem:[%s1 + $0x8e0] sm:$0xff]
  %v304 = vld [vmem:[%s1 + $0x8e8] sm:$0xff]
  %v305 = vld [vmem:[%s1 + $0x8f0] sm:$0xff]
  %v306 = vld [vmem:[%s1 + $0x8f8] sm:$0xff]
  %v307 = vld [vmem:[%s1 + $0x900] sm:$0xff]
  %v308 = vld [vmem:[%s1 + $0x908] sm:$0xff]
  %v309 = vld [vmem:[%s1 + $0x910] sm:$0xff]
  %v310 = vld [vmem:[%s1 + $0x918] sm:$0xff]
  %v311 = vld [vmem:[%s1 + $0x920] sm:$0xff]
  %v312 = vld [vmem:[%s1 + $0x928] sm:$0xff]
  %v313 = vld [vmem:[%s1 + $0x930] sm:$0xff]
  %v314 = vld [vmem:[%s1 + $0x938] sm:$0xff]
  %v315 = vld [vmem:[%s1 + $0x940] sm:$0xff]
  %v316 = vld [vmem:[%s1 + $0x948] sm:$0xff]
  %v317 = vld [vmem:[%s1 + $0x950] sm:$0xff]
  %v318 = vld [vmem:[%s1 + $0x958] sm:$0xff]
  %v319 = vld [vmem:[%s1 + $0x960] sm:$0xff]
  %v320 = vld [vmem:[%s1 + $0x968] sm:$0xff]
  %v321 = vld [vmem:[%s1 + $0x970] sm:$0xff]
  %v322 = vld [vmem:[%s1 + $0x978] sm:$0xff]
  %v323 = vld [vmem:[%s1 + $0x980] sm:$0xff]
  %v324 = vld [vmem:[%s1 + $0x988] sm:$0xff]
  %v325 = vld [vmem:[%s1 + $0x990] sm:$0xff]
  %v326 = vld [vmem:[%s1 + $0x998] sm:$0xff]
  %v327 = vld [vmem:[%s1 + $0x9a0] sm:$0xff]
  %v328 = vld [vmem:[%s1 + $0x9a8] sm:$0xff]
  %v329 = vld [vmem:[%s1 + $0x9b0] sm:$0xff]
  %v330 = vld [vmem:[%s1 + $0x9b8] sm:$0xff]
  %v331 = vld [vmem:[%s1 + $0x9c0] sm:$0xff]
  %v332 = vld [vmem:[%s1 + $0x9c8] sm:$0xff]
  %v333 = vld [vmem:[%s1 + $0x9d0] sm:$0xff]
  %v334 = vld [vmem:[%s1 + $0x9d8] sm:$0xff]
  %v335 = vld [vmem:[%s1 + $0x9e0] sm:$0xff]
  %v336 = vld [vmem:[%s1 + $0x9e8] sm:$0xff]
  %v337 = vld [vmem:[%s1 + $0x9f0] sm:$0xff]
  %v338 = vld [vmem:[%s1 + $0x9f8] sm:$0xff]
  %v339 = vld [vmem:[%s1 + $0xa00] sm:$0xff]
  %v340 = vld [vmem:[%s1 + $0xa08] sm:$0xff]
  %v341 = vld [vmem:[%s1 + $0xa10] sm:$0xff]
  %v342 = vld [vmem:[%s1 + $0xa18] sm:$0xff]
  %v343 = vld [vmem:[%s1 + $0xa20] sm:$0xff]
  %v344 = vld [vmem:[%s1 + $0xa28] sm:$0xff]
  %v345 = vld [vmem:[%s1 + $0xa30] sm:$0xff]
  %v346 = vld [vmem:[%s1 + $0xa38] sm:$0xff]
  %v347 = vld [vmem:[%s1 + $0xa40] sm:$0xff]
  %v348 = vld [vmem:[%s1 + $0xa48] sm:$0xff]
  %v349 = vld [vmem:[%s1 + $0xa50] sm:$0xff]
  %v350 = vld [vmem:[%s1 + $0xa58] sm:$0xff]
  %v351 = vld [vmem:[%s1 + $0xa60] sm:$0xff]
  %v352 = vld [vmem:[%s1 + $0xa68] sm:$0xff]
  %v353 = vld [vmem:[%s1 + $0xa70] sm:$0xff]
  %v354 = vld [vmem:[%s1 + $0xa78] sm:$0xff]
  %v355 = vld [vmem:[%s1 + $0xa80] sm:$0xff]
  %v356 = vld [vmem:[%s1 + $0xa88] sm:$0xff]
  %v357 = vld [vmem:[%s1 + $0xa90] sm:$0xff]
  %v358 = vld [vmem:[%s1 + $0xa98] sm:$0xff]
  %v359 = vld [vmem:[%s1 + $0xaa0] sm:$0xff]
  %v360 = vld [vmem:[%s1 + $0xaa8] sm:$0xff]
  %v361 = vld [vmem:[%s1 + $0xab0] sm:$0xff]
  %v362 = vld [vmem:[%s1 + $0xab8] sm:$0xff]
  %v363 = vld [vmem:[%s1 + $0xac0] sm:$0xff]
  %v364 = vld [vmem:[%s1 + $0xac8] sm:$0xff]
  %v365 = vld [vmem:[%s1 + $0xad0] sm:$0xff]
  %v366 = vld [vmem:[%s1 + $0xad8] sm:$0xff]
  %v367 = vld [vmem:[%s1 + $0xae0] sm:$0xff]
  %v368 = vld [vmem:[%s1 + $0xae8] sm:$0xff]
  %v369 = vld [vmem:[%s1 + $0xaf0] sm:$0xff]
  %v370 = vld [vmem:[%s1 + $0xaf8] sm:$0xff]
  %v371 = vld [vmem:[%s1 + $0xb00] sm:$0xff]
  %v372 = vld [vmem:[%s1 + $0xb08] sm:$0xff]
  %v373 = vld [vmem:[%s1 + $0xb10] sm:$0xff]
  %v374 = vld [vmem:[%s1 + $0xb18] sm:$0xff]
  %v375 = vld [vmem:[%s1 + $0xb20] sm:$0xff]
  %v376 = vld [vmem:[%s1 + $0xb28] sm:$0xff]
  %v377 = vld [vmem:[%s1 + $0xb30] sm:$0xff]
  %v378 = vld [vmem:[%s1 + $0xb38] sm:$0xff]
  %v379 = vld [vmem:[%s1 + $0xb40] sm:$0xff]
  %v380 = vld [vmem:[%s1 + $0xb48] sm:$0xff]
  %v381 = vld [vmem:[%s1 + $0xb50] sm:$0xff]
  %v382 = vld [vmem:[%s1 + $0xb58] sm:$0xff]
  %v383 = vld [vmem:[%s1 + $0xb60] sm:$0xff]
  %v384 = vld [vmem:[%s1 + $0xb68] sm:$0xff]
  %v385 = vld [vmem:[%s1 + $0xb70] sm:$0xff]
  %v386 = vld [vmem:[%s1 + $0xb78] sm:$0xff]
  %v387 = vld [vmem:[%s1 + $0xb80] sm:$0xff]
  %v388 = vld [vmem:[%s1 + $0xb88] sm:$0xff]
  %v389 = vld [vmem:[%s1 + $0xb90] sm:$0xff]
  %v390 = vld [vmem:[%s1 + $0xb98] sm:$0xff]
  %v391 = vld [vmem:[%s1 + $0xba0] sm:$0xff]
  %v392 = vld [vmem:[%s1 + $0xba8] sm:$0xff]
  %v393 = vld [vmem:[%s1 + $0xbb0] sm:$0xff]
  %v394 = vld [vmem:[%s1 + $0xbb8] sm:$0xff]
  %v395 = vld [vmem:[%s1 + $0xbc0] sm:$0xff]
  %v396 = vld [vmem:[%s1 + $0xbc8] sm:$0xff]
  %v397 = vld [vmem:[%s1 + $0xbd0] sm:$0xff]
  %v398 = vld [vmem:[%s1 + $0xbd8] sm:$0xff]
  %v399 = vld [vmem:[%s1 + $0xbe0] sm:$0xff]
  %v400 = vld [vmem:[%s1 + $0xbe8] sm:$0xff]
  %v401 = vld [vmem:[%s1 + $0xbf0] sm:$0xff]
  %v402 = vld [vmem:[%s1 + $0xbf8] sm:$0xff]
  %v409 = vunpack.c.l.b16 %v13
  %v410 = vunpack.c.h.b16 %v13
  %v411 = vunpack.c.l.b16 %v14
  %v412 = vunpack.c.h.b16 %v14
  %v413 = vunpack.c.l.b16 %v15
  %v414 = vunpack.c.h.b16 %v15
  %v415 = vunpack.c.l.b16 %v16
  %v416 = vunpack.c.h.b16 %v16
  %v417 = vunpack.c.l.b16 %v17
  %v418 = vunpack.c.h.b16 %v17
  %v419 = vunpack.c.l.b16 %v18
  %v420 = vunpack.c.h.b16 %v18
  %v421 = vpack.c.b16 %v415, %v409
  %v422 = vpack.c.b16 %v416, %v410
  %v423 = vpack.c.b16 %v417, %v411
  %v424 = vpack.c.b16 %v418, %v412
  %v425 = vpack.c.b16 %v419, %v413
  %v426 = vpack.c.b16 %v420, %v414
  %v817 = vunpack.c.l.b16 %v19
  %v818 = vunpack.c.h.b16 %v19
  %v819 = vunpack.c.l.b16 %v20
  %v820 = vunpack.c.h.b16 %v20
  %v821 = vunpack.c.l.b16 %v21
  %v822 = vunpack.c.h.b16 %v21
  %v823 = vunpack.c.l.b16 %v22
  %v824 = vunpack.c.h.b16 %v22
  %v825 = vunpack.c.l.b16 %v23
  %v826 = vunpack.c.h.b16 %v23
  %v827 = vunpack.c.l.b16 %v24
  %v828 = vunpack.c.h.b16 %v24
  %v829 = vunpack.c.l.b16 %v25
  %v830 = vunpack.c.h.b16 %v25
  %v831 = vunpack.c.l.b16 %v26
  %v832 = vunpack.c.h.b16 %v26
  %v833 = vunpack.c.l.b16 %v27
  %v834 = vunpack.c.h.b16 %v27
  %v835 = vunpack.c.l.b16 %v28
  %v836 = vunpack.c.h.b16 %v28
  %v837 = vunpack.c.l.b16 %v29
  %v838 = vunpack.c.h.b16 %v29
  %v839 = vunpack.c.l.b16 %v30
  %v840 = vunpack.c.h.b16 %v30
  %v841 = vunpack.c.l.b16 %v31
  %v842 = vunpack.c.h.b16 %v31
  %v843 = vunpack.c.l.b16 %v32
  %v844 = vunpack.c.h.b16 %v32
  %v845 = vunpack.c.l.b16 %v33
  %v846 = vunpack.c.h.b16 %v33
  %v847 = vunpack.c.l.b16 %v34
  %v848 = vunpack.c.h.b16 %v34
  %v849 = vunpack.c.l.b16 %v35
  %v850 = vunpack.c.h.b16 %v35
  %v851 = vunpack.c.l.b16 %v36
  %v852 = vunpack.c.h.b16 %v36
  %v853 = vunpack.c.l.b16 %v37
  %v854 = vunpack.c.h.b16 %v37
  %v855 = vunpack.c.l.b16 %v38
  %v856 = vunpack.c.h.b16 %v38
  %v857 = vunpack.c.l.b16 %v39
  %v858 = vunpack.c.h.b16 %v39
  %v859 = vunpack.c.l.b16 %v40
  %v860 = vunpack.c.h.b16 %v40
  %v861 = vunpack.c.l.b16 %v41
  %v862 = vunpack.c.h.b16 %v41
  %v863 = vunpack.c.l.b16 %v42
  %v864 = vunpack.c.h.b16 %v42
  %v865 = vunpack.c.l.b16 %v43
  %v866 = vunpack.c.h.b16 %v43
  %v867 = vunpack.c.l.b16 %v44
  %v868 = vunpack.c.h.b16 %v44
  %v869 = vunpack.c.l.b16 %v45
  %v870 = vunpack.c.h.b16 %v45
  %v871 = vunpack.c.l.b16 %v46
  %v872 = vunpack.c.h.b16 %v46
  %v873 = vunpack.c.l.b16 %v47
  %v874 = vunpack.c.h.b16 %v47
  %v875 = vunpack.c.l.b16 %v48
  %v876 = vunpack.c.h.b16 %v48
  %v877 = vunpack.c.l.b16 %v49
  %v878 = vunpack.c.h.b16 %v49
  %v879 = vunpack.c.l.b16 %v50
  %v880 = vunpack.c.h.b16 %v50
  %v881 = vunpack.c.l.b16 %v51
  %v882 = vunpack.c.h.b16 %v51
  %v883 = vunpack.c.l.b16 %v52
  %v884 = vunpack.c.h.b16 %v52
  %v885 = vunpack.c.l.b16 %v53
  %v886 = vunpack.c.h.b16 %v53
  %v887 = vunpack.c.l.b16 %v54
  %v888 = vunpack.c.h.b16 %v54
  %v889 = vunpack.c.l.b16 %v55
  %v890 = vunpack.c.h.b16 %v55
  %v891 = vunpack.c.l.b16 %v56
  %v892 = vunpack.c.h.b16 %v56
  %v893 = vunpack.c.l.b16 %v57
  %v894 = vunpack.c.h.b16 %v57
  %v895 = vunpack.c.l.b16 %v58
  %v896 = vunpack.c.h.b16 %v58
  %v897 = vunpack.c.l.b16 %v59
  %v898 = vunpack.c.h.b16 %v59
  %v899 = vunpack.c.l.b16 %v60
  %v900 = vunpack.c.h.b16 %v60
  %v901 = vunpack.c.l.b16 %v61
  %v902 = vunpack.c.h.b16 %v61
  %v903 = vunpack.c.l.b16 %v62
  %v904 = vunpack.c.h.b16 %v62
  %v905 = vunpack.c.l.b16 %v63
  %v906 = vunpack.c.h.b16 %v63
  %v907 = vunpack.c.l.b16 %v64
  %v908 = vunpack.c.h.b16 %v64
  %v909 = vunpack.c.l.b16 %v65
  %v910 = vunpack.c.h.b16 %v65
  %v911 = vunpack.c.l.b16 %v66
  %v912 = vunpack.c.h.b16 %v66
  %v913 = vunpack.c.l.b16 %v67
  %v914 = vunpack.c.h.b16 %v67
  %v915 = vunpack.c.l.b16 %v68
  %v916 = vunpack.c.h.b16 %v68
  %v917 = vunpack.c.l.b16 %v69
  %v918 = vunpack.c.h.b16 %v69
  %v919 = vunpack.c.l.b16 %v70
  %v920 = vunpack.c.h.b16 %v70
  %v921 = vunpack.c.l.b16 %v71
  %v922 = vunpack.c.h.b16 %v71
  %v923 = vunpack.c.l.b16 %v72
  %v924 = vunpack.c.h.b16 %v72
  %v925 = vunpack.c.l.b16 %v73
  %v926 = vunpack.c.h.b16 %v73
  %v927 = vunpack.c.l.b16 %v74
  %v928 = vunpack.c.h.b16 %v74
  %v929 = vunpack.c.l.b16 %v75
  %v930 = vunpack.c.h.b16 %v75
  %v931 = vunpack.c.l.b16 %v76
  %v932 = vunpack.c.h.b16 %v76
  %v933 = vunpack.c.l.b16 %v77
  %v934 = vunpack.c.h.b16 %v77
  %v935 = vunpack.c.l.b16 %v78
  %v936 = vunpack.c.h.b16 %v78
  %v937 = vunpack.c.l.b16 %v79
  %v938 = vunpack.c.h.b16 %v79
  %v939 = vunpack.c.l.b16 %v80
  %v940 = vunpack.c.h.b16 %v80
  %v941 = vunpack.c.l.b16 %v81
  %v942 = vunpack.c.h.b16 %v81
  %v943 = vunpack.c.l.b16 %v82
  %v944 = vunpack.c.h.b16 %v82
  %v945 = vunpack.c.l.b16 %v83
  %v946 = vunpack.c.h.b16 %v83
  %v947 = vunpack.c.l.b16 %v84
  %v948 = vunpack.c.h.b16 %v84
  %v949 = vunpack.c.l.b16 %v85
  %v950 = vunpack.c.h.b16 %v85
  %v951 = vunpack.c.l.b16 %v86
  %v952 = vunpack.c.h.b16 %v86
  %v953 = vunpack.c.l.b16 %v87
  %v954 = vunpack.c.h.b16 %v87
  %v955 = vunpack.c.l.b16 %v88
  %v956 = vunpack.c.h.b16 %v88
  %v957 = vunpack.c.l.b16 %v89
  %v958 = vunpack.c.h.b16 %v89
  %v959 = vunpack.c.l.b16 %v90
  %v960 = vunpack.c.h.b16 %v90
  %v961 = vunpack.c.l.b16 %v91
  %v962 = vunpack.c.h.b16 %v91
  %v963 = vunpack.c.l.b16 %v92
  %v964 = vunpack.c.h.b16 %v92
  %v965 = vunpack.c.l.b16 %v93
  %v966 = vunpack.c.h.b16 %v93
  %v967 = vunpack.c.l.b16 %v94
  %v968 = vunpack.c.h.b16 %v94
  %v969 = vunpack.c.l.b16 %v95
  %v970 = vunpack.c.h.b16 %v95
  %v971 = vunpack.c.l.b16 %v96
  %v972 = vunpack.c.h.b16 %v96
  %v973 = vunpack.c.l.b16 %v97
  %v974 = vunpack.c.h.b16 %v97
  %v975 = vunpack.c.l.b16 %v98
  %v976 = vunpack.c.h.b16 %v98
  %v977 = vunpack.c.l.b16 %v99
  %v978 = vunpack.c.h.b16 %v99
  %v979 = vunpack.c.l.b16 %v100
  %v980 = vunpack.c.h.b16 %v100
  %v981 = vunpack.c.l.b16 %v101
  %v982 = vunpack.c.h.b16 %v101
  %v983 = vunpack.c.l.b16 %v102
  %v984 = vunpack.c.h.b16 %v102
  %v985 = vunpack.c.l.b16 %v103
  %v986 = vunpack.c.h.b16 %v103
  %v987 = vunpack.c.l.b16 %v104
  %v988 = vunpack.c.h.b16 %v104
  %v989 = vunpack.c.l.b16 %v105
  %v990 = vunpack.c.h.b16 %v105
  %v991 = vunpack.c.l.b16 %v106
  %v992 = vunpack.c.h.b16 %v106
  %v993 = vunpack.c.l.b16 %v107
  %v994 = vunpack.c.h.b16 %v107
  %v995 = vunpack.c.l.b16 %v108
  %v996 = vunpack.c.h.b16 %v108
  %v997 = vunpack.c.l.b16 %v109
  %v998 = vunpack.c.h.b16 %v109
  %v999 = vunpack.c.l.b16 %v110
  %v1000 = vunpack.c.h.b16 %v110
  %v1001 = vunpack.c.l.b16 %v111
  %v1002 = vunpack.c.h.b16 %v111
  %v1003 = vunpack.c.l.b16 %v112
  %v1004 = vunpack.c.h.b16 %v112
  %v1005 = vunpack.c.l.b16 %v113
  %v1006 = vunpack.c.h.b16 %v113
  %v1007 = vunpack.c.l.b16 %v114
  %v1008 = vunpack.c.h.b16 %v114
  %v1009 = vunpack.c.l.b16 %v115
  %v1010 = vunpack.c.h.b16 %v115
  %v1011 = vunpack.c.l.b16 %v116
  %v1012 = vunpack.c.h.b16 %v116
  %v1013 = vunpack.c.l.b16 %v117
  %v1014 = vunpack.c.h.b16 %v117
  %v1015 = vunpack.c.l.b16 %v118
  %v1016 = vunpack.c.h.b16 %v118
  %v1017 = vunpack.c.l.b16 %v119
  %v1018 = vunpack.c.h.b16 %v119
  %v1019 = vunpack.c.l.b16 %v120
  %v1020 = vunpack.c.h.b16 %v120
  %v1021 = vunpack.c.l.b16 %v121
  %v1022 = vunpack.c.h.b16 %v121
  %v1023 = vunpack.c.l.b16 %v122
  %v1024 = vunpack.c.h.b16 %v122
  %v1025 = vunpack.c.l.b16 %v123
  %v1026 = vunpack.c.h.b16 %v123
  %v1027 = vunpack.c.l.b16 %v124
  %v1028 = vunpack.c.h.b16 %v124
  %v1029 = vunpack.c.l.b16 %v125
  %v1030 = vunpack.c.h.b16 %v125
  %v1031 = vunpack.c.l.b16 %v126
  %v1032 = vunpack.c.h.b16 %v126
  %v1033 = vunpack.c.l.b16 %v127
  %v1034 = vunpack.c.h.b16 %v127
  %v1035 = vunpack.c.l.b16 %v128
  %v1036 = vunpack.c.h.b16 %v128
  %v1037 = vunpack.c.l.b16 %v129
  %v1038 = vunpack.c.h.b16 %v129
  %v1039 = vunpack.c.l.b16 %v130
  %v1040 = vunpack.c.h.b16 %v130
  %v1041 = vunpack.c.l.b16 %v131
  %v1042 = vunpack.c.h.b16 %v131
  %v1043 = vunpack.c.l.b16 %v132
  %v1044 = vunpack.c.h.b16 %v132
  %v1045 = vunpack.c.l.b16 %v133
  %v1046 = vunpack.c.h.b16 %v133
  %v1047 = vunpack.c.l.b16 %v134
  %v1048 = vunpack.c.h.b16 %v134
  %v1049 = vunpack.c.l.b16 %v135
  %v1050 = vunpack.c.h.b16 %v135
  %v1051 = vunpack.c.l.b16 %v136
  %v1052 = vunpack.c.h.b16 %v136
  %v1053 = vunpack.c.l.b16 %v137
  %v1054 = vunpack.c.h.b16 %v137
  %v1055 = vunpack.c.l.b16 %v138
  %v1056 = vunpack.c.h.b16 %v138
  %v1057 = vunpack.c.l.b16 %v139
  %v1058 = vunpack.c.h.b16 %v139
  %v1059 = vunpack.c.l.b16 %v140
  %v1060 = vunpack.c.h.b16 %v140
  %v1061 = vunpack.c.l.b16 %v141
  %v1062 = vunpack.c.h.b16 %v141
  %v1063 = vunpack.c.l.b16 %v142
  %v1064 = vunpack.c.h.b16 %v142
  %v1065 = vunpack.c.l.b16 %v143
  %v1066 = vunpack.c.h.b16 %v143
  %v1067 = vunpack.c.l.b16 %v144
  %v1068 = vunpack.c.h.b16 %v144
  %v1069 = vunpack.c.l.b16 %v145
  %v1070 = vunpack.c.h.b16 %v145
  %v1071 = vunpack.c.l.b16 %v146
  %v1072 = vunpack.c.h.b16 %v146
  %v1073 = vunpack.c.l.b16 %v147
  %v1074 = vunpack.c.h.b16 %v147
  %v1075 = vunpack.c.l.b16 %v148
  %v1076 = vunpack.c.h.b16 %v148
  %v1077 = vunpack.c.l.b16 %v149
  %v1078 = vunpack.c.h.b16 %v149
  %v1079 = vunpack.c.l.b16 %v150
  %v1080 = vunpack.c.h.b16 %v150
  %v1081 = vunpack.c.l.b16 %v151
  %v1082 = vunpack.c.h.b16 %v151
  %v1083 = vunpack.c.l.b16 %v152
  %v1084 = vunpack.c.h.b16 %v152
  %v1085 = vunpack.c.l.b16 %v153
  %v1086 = vunpack.c.h.b16 %v153
  %v1087 = vunpack.c.l.b16 %v154
  %v1088 = vunpack.c.h.b16 %v154
  %v1089 = vunpack.c.l.b16 %v155
  %v1090 = vunpack.c.h.b16 %v155
  %v1091 = vunpack.c.l.b16 %v156
  %v1092 = vunpack.c.h.b16 %v156
  %v1093 = vunpack.c.l.b16 %v157
  %v1094 = vunpack.c.h.b16 %v157
  %v1095 = vunpack.c.l.b16 %v158
  %v1096 = vunpack.c.h.b16 %v158
  %v1097 = vunpack.c.l.b16 %v159
  %v1098 = vunpack.c.h.b16 %v159
  %v1099 = vunpack.c.l.b16 %v160
  %v1100 = vunpack.c.h.b16 %v160
  %v1101 = vunpack.c.l.b16 %v161
  %v1102 = vunpack.c.h.b16 %v161
  %v1103 = vunpack.c.l.b16 %v162
  %v1104 = vunpack.c.h.b16 %v162
  %v1105 = vunpack.c.l.b16 %v163
  %v1106 = vunpack.c.h.b16 %v163
  %v1107 = vunpack.c.l.b16 %v164
  %v1108 = vunpack.c.h.b16 %v164
  %v1109 = vunpack.c.l.b16 %v165
  %v1110 = vunpack.c.h.b16 %v165
  %v1111 = vunpack.c.l.b16 %v166
  %v1112 = vunpack.c.h.b16 %v166
  %v1113 = vunpack.c.l.b16 %v167
  %v1114 = vunpack.c.h.b16 %v167
  %v1115 = vunpack.c.l.b16 %v168
  %v1116 = vunpack.c.h.b16 %v168
  %v1117 = vunpack.c.l.b16 %v169
  %v1118 = vunpack.c.h.b16 %v169
  %v1119 = vunpack.c.l.b16 %v170
  %v1120 = vunpack.c.h.b16 %v170
  %v1121 = vunpack.c.l.b16 %v171
  %v1122 = vunpack.c.h.b16 %v171
  %v1123 = vunpack.c.l.b16 %v172
  %v1124 = vunpack.c.h.b16 %v172
  %v1125 = vunpack.c.l.b16 %v173
  %v1126 = vunpack.c.h.b16 %v173
  %v1127 = vunpack.c.l.b16 %v174
  %v1128 = vunpack.c.h.b16 %v174
  %v1129 = vunpack.c.l.b16 %v175
  %v1130 = vunpack.c.h.b16 %v175
  %v1131 = vunpack.c.l.b16 %v176
  %v1132 = vunpack.c.h.b16 %v176
  %v1133 = vunpack.c.l.b16 %v177
  %v1134 = vunpack.c.h.b16 %v177
  %v1135 = vunpack.c.l.b16 %v178
  %v1136 = vunpack.c.h.b16 %v178
  %v1137 = vunpack.c.l.b16 %v179
  %v1138 = vunpack.c.h.b16 %v179
  %v1139 = vunpack.c.l.b16 %v180
  %v1140 = vunpack.c.h.b16 %v180
  %v1141 = vunpack.c.l.b16 %v181
  %v1142 = vunpack.c.h.b16 %v181
  %v1143 = vunpack.c.l.b16 %v182
  %v1144 = vunpack.c.h.b16 %v182
  %v1145 = vunpack.c.l.b16 %v183
  %v1146 = vunpack.c.h.b16 %v183
  %v1147 = vunpack.c.l.b16 %v184
  %v1148 = vunpack.c.h.b16 %v184
  %v1149 = vunpack.c.l.b16 %v185
  %v1150 = vunpack.c.h.b16 %v185
  %v1151 = vunpack.c.l.b16 %v186
  %v1152 = vunpack.c.h.b16 %v186
  %v1153 = vunpack.c.l.b16 %v187
  %v1154 = vunpack.c.h.b16 %v187
  %v1155 = vunpack.c.l.b16 %v188
  %v1156 = vunpack.c.h.b16 %v188
  %v1157 = vunpack.c.l.b16 %v189
  %v1158 = vunpack.c.h.b16 %v189
  %v1159 = vunpack.c.l.b16 %v190
  %v1160 = vunpack.c.h.b16 %v190
  %v1161 = vunpack.c.l.b16 %v191
  %v1162 = vunpack.c.h.b16 %v191
  %v1163 = vunpack.c.l.b16 %v192
  %v1164 = vunpack.c.h.b16 %v192
  %v1165 = vunpack.c.l.b16 %v193
  %v1166 = vunpack.c.h.b16 %v193
  %v1167 = vunpack.c.l.b16 %v194
  %v1168 = vunpack.c.h.b16 %v194
  %v1169 = vunpack.c.l.b16 %v195
  %v1170 = vunpack.c.h.b16 %v195
  %v1171 = vunpack.c.l.b16 %v196
  %v1172 = vunpack.c.h.b16 %v196
  %v1173 = vunpack.c.l.b16 %v197
  %v1174 = vunpack.c.h.b16 %v197
  %v1175 = vunpack.c.l.b16 %v198
  %v1176 = vunpack.c.h.b16 %v198
  %v1177 = vunpack.c.l.b16 %v199
  %v1178 = vunpack.c.h.b16 %v199
  %v1179 = vunpack.c.l.b16 %v200
  %v1180 = vunpack.c.h.b16 %v200
  %v1181 = vunpack.c.l.b16 %v201
  %v1182 = vunpack.c.h.b16 %v201
  %v1183 = vunpack.c.l.b16 %v202
  %v1184 = vunpack.c.h.b16 %v202
  %v1185 = vunpack.c.l.b16 %v203
  %v1186 = vunpack.c.h.b16 %v203
  %v1187 = vunpack.c.l.b16 %v204
  %v1188 = vunpack.c.h.b16 %v204
  %v1189 = vunpack.c.l.b16 %v205
  %v1190 = vunpack.c.h.b16 %v205
  %v1191 = vunpack.c.l.b16 %v206
  %v1192 = vunpack.c.h.b16 %v206
  %v1193 = vunpack.c.l.b16 %v207
  %v1194 = vunpack.c.h.b16 %v207
  %v1195 = vunpack.c.l.b16 %v208
  %v1196 = vunpack.c.h.b16 %v208
  %v1197 = vunpack.c.l.b16 %v209
  %v1198 = vunpack.c.h.b16 %v209
  %v1199 = vunpack.c.l.b16 %v210
  %v1200 = vunpack.c.h.b16 %v210
  %v1201 = vunpack.c.l.b16 %v211
  %v1202 = vunpack.c.h.b16 %v211
  %v1203 = vunpack.c.l.b16 %v212
  %v1204 = vunpack.c.h.b16 %v212
  %v1205 = vunpack.c.l.b16 %v213
  %v1206 = vunpack.c.h.b16 %v213
  %v1207 = vunpack.c.l.b16 %v214
  %v1208 = vunpack.c.h.b16 %v214
  %v1209 = vunpack.c.l.b16 %v215
  %v1210 = vunpack.c.h.b16 %v215
  %v1211 = vunpack.c.l.b16 %v216
  %v1212 = vunpack.c.h.b16 %v216
  %v1213 = vunpack.c.l.b16 %v217
  %v1214 = vunpack.c.h.b16 %v217
  %v1215 = vunpack.c.l.b16 %v218
  %v1216 = vunpack.c.h.b16 %v218
  %v1217 = vunpack.c.l.b16 %v219
  %v1218 = vunpack.c.h.b16 %v219
  %v1219 = vunpack.c.l.b16 %v220
  %v1220 = vunpack.c.h.b16 %v220
  %v1221 = vunpack.c.l.b16 %v221
  %v1222 = vunpack.c.h.b16 %v221
  %v1223 = vunpack.c.l.b16 %v222
  %v1224 = vunpack.c.h.b16 %v222
  %v1225 = vunpack.c.l.b16 %v223
  %v1226 = vunpack.c.h.b16 %v223
  %v1227 = vunpack.c.l.b16 %v224
  %v1228 = vunpack.c.h.b16 %v224
  %v1229 = vunpack.c.l.b16 %v225
  %v1230 = vunpack.c.h.b16 %v225
  %v1231 = vunpack.c.l.b16 %v226
  %v1232 = vunpack.c.h.b16 %v226
  %v1233 = vunpack.c.l.b16 %v227
  %v1234 = vunpack.c.h.b16 %v227
  %v1235 = vunpack.c.l.b16 %v228
  %v1236 = vunpack.c.h.b16 %v228
  %v1237 = vunpack.c.l.b16 %v229
  %v1238 = vunpack.c.h.b16 %v229
  %v1239 = vunpack.c.l.b16 %v230
  %v1240 = vunpack.c.h.b16 %v230
  %v1241 = vunpack.c.l.b16 %v231
  %v1242 = vunpack.c.h.b16 %v231
  %v1243 = vunpack.c.l.b16 %v232
  %v1244 = vunpack.c.h.b16 %v232
  %v1245 = vunpack.c.l.b16 %v233
  %v1246 = vunpack.c.h.b16 %v233
  %v1247 = vunpack.c.l.b16 %v234
  %v1248 = vunpack.c.h.b16 %v234
  %v1249 = vunpack.c.l.b16 %v235
  %v1250 = vunpack.c.h.b16 %v235
  %v1251 = vunpack.c.l.b16 %v236
  %v1252 = vunpack.c.h.b16 %v236
  %v1253 = vunpack.c.l.b16 %v237
  %v1254 = vunpack.c.h.b16 %v237
  %v1255 = vunpack.c.l.b16 %v238
  %v1256 = vunpack.c.h.b16 %v238
  %v1257 = vunpack.c.l.b16 %v239
  %v1258 = vunpack.c.h.b16 %v239
  %v1259 = vunpack.c.l.b16 %v240
  %v1260 = vunpack.c.h.b16 %v240
  %v1261 = vunpack.c.l.b16 %v241
  %v1262 = vunpack.c.h.b16 %v241
  %v1263 = vunpack.c.l.b16 %v242
  %v1264 = vunpack.c.h.b16 %v242
  %v1265 = vunpack.c.l.b16 %v243
  %v1266 = vunpack.c.h.b16 %v243
  %v1267 = vunpack.c.l.b16 %v244
  %v1268 = vunpack.c.h.b16 %v244
  %v1269 = vunpack.c.l.b16 %v245
  %v1270 = vunpack.c.h.b16 %v245
  %v1271 = vunpack.c.l.b16 %v246
  %v1272 = vunpack.c.h.b16 %v246
  %v1273 = vunpack.c.l.b16 %v247
  %v1274 = vunpack.c.h.b16 %v247
  %v1275 = vunpack.c.l.b16 %v248
  %v1276 = vunpack.c.h.b16 %v248
  %v1277 = vunpack.c.l.b16 %v249
  %v1278 = vunpack.c.h.b16 %v249
  %v1279 = vunpack.c.l.b16 %v250
  %v1280 = vunpack.c.h.b16 %v250
  %v1281 = vunpack.c.l.b16 %v251
  %v1282 = vunpack.c.h.b16 %v251
  %v1283 = vunpack.c.l.b16 %v252
  %v1284 = vunpack.c.h.b16 %v252
  %v1285 = vunpack.c.l.b16 %v253
  %v1286 = vunpack.c.h.b16 %v253
  %v1287 = vunpack.c.l.b16 %v254
  %v1288 = vunpack.c.h.b16 %v254
  %v1289 = vunpack.c.l.b16 %v255
  %v1290 = vunpack.c.h.b16 %v255
  %v1291 = vunpack.c.l.b16 %v256
  %v1292 = vunpack.c.h.b16 %v256
  %v1293 = vunpack.c.l.b16 %v257
  %v1294 = vunpack.c.h.b16 %v257
  %v1295 = vunpack.c.l.b16 %v258
  %v1296 = vunpack.c.h.b16 %v258
  %v1297 = vunpack.c.l.b16 %v259
  %v1298 = vunpack.c.h.b16 %v259
  %v1299 = vunpack.c.l.b16 %v260
  %v1300 = vunpack.c.h.b16 %v260
  %v1301 = vunpack.c.l.b16 %v261
  %v1302 = vunpack.c.h.b16 %v261
  %v1303 = vunpack.c.l.b16 %v262
  %v1304 = vunpack.c.h.b16 %v262
  %v1305 = vunpack.c.l.b16 %v263
  %v1306 = vunpack.c.h.b16 %v263
  %v1307 = vunpack.c.l.b16 %v264
  %v1308 = vunpack.c.h.b16 %v264
  %v1309 = vunpack.c.l.b16 %v265
  %v1310 = vunpack.c.h.b16 %v265
  %v1311 = vunpack.c.l.b16 %v266
  %v1312 = vunpack.c.h.b16 %v266
  %v1313 = vunpack.c.l.b16 %v267
  %v1314 = vunpack.c.h.b16 %v267
  %v1315 = vunpack.c.l.b16 %v268
  %v1316 = vunpack.c.h.b16 %v268
  %v1317 = vunpack.c.l.b16 %v269
  %v1318 = vunpack.c.h.b16 %v269
  %v1319 = vunpack.c.l.b16 %v270
  %v1320 = vunpack.c.h.b16 %v270
  %v1321 = vunpack.c.l.b16 %v271
  %v1322 = vunpack.c.h.b16 %v271
  %v1323 = vunpack.c.l.b16 %v272
  %v1324 = vunpack.c.h.b16 %v272
  %v1325 = vunpack.c.l.b16 %v273
  %v1326 = vunpack.c.h.b16 %v273
  %v1327 = vunpack.c.l.b16 %v274
  %v1328 = vunpack.c.h.b16 %v274
  %v1329 = vunpack.c.l.b16 %v275
  %v1330 = vunpack.c.h.b16 %v275
  %v1331 = vunpack.c.l.b16 %v276
  %v1332 = vunpack.c.h.b16 %v276
  %v1333 = vunpack.c.l.b16 %v277
  %v1334 = vunpack.c.h.b16 %v277
  %v1335 = vunpack.c.l.b16 %v278
  %v1336 = vunpack.c.h.b16 %v278
  %v1337 = vunpack.c.l.b16 %v279
  %v1338 = vunpack.c.h.b16 %v279
  %v1339 = vunpack.c.l.b16 %v280
  %v1340 = vunpack.c.h.b16 %v280
  %v1341 = vunpack.c.l.b16 %v281
  %v1342 = vunpack.c.h.b16 %v281
  %v1343 = vunpack.c.l.b16 %v282
  %v1344 = vunpack.c.h.b16 %v282
  %v1345 = vunpack.c.l.b16 %v283
  %v1346 = vunpack.c.h.b16 %v283
  %v1347 = vunpack.c.l.b16 %v284
  %v1348 = vunpack.c.h.b16 %v284
  %v1349 = vunpack.c.l.b16 %v285
  %v1350 = vunpack.c.h.b16 %v285
  %v1351 = vunpack.c.l.b16 %v286
  %v1352 = vunpack.c.h.b16 %v286
  %v1353 = vunpack.c.l.b16 %v287
  %v1354 = vunpack.c.h.b16 %v287
  %v1355 = vunpack.c.l.b16 %v288
  %v1356 = vunpack.c.h.b16 %v288
  %v1357 = vunpack.c.l.b16 %v289
  %v1358 = vunpack.c.h.b16 %v289
  %v1359 = vunpack.c.l.b16 %v290
  %v1360 = vunpack.c.h.b16 %v290
  %v1361 = vunpack.c.l.b16 %v291
  %v1362 = vunpack.c.h.b16 %v291
  %v1363 = vunpack.c.l.b16 %v292
  %v1364 = vunpack.c.h.b16 %v292
  %v1365 = vunpack.c.l.b16 %v293
  %v1366 = vunpack.c.h.b16 %v293
  %v1367 = vunpack.c.l.b16 %v294
  %v1368 = vunpack.c.h.b16 %v294
  %v1369 = vunpack.c.l.b16 %v295
  %v1370 = vunpack.c.h.b16 %v295
  %v1371 = vunpack.c.l.b16 %v296
  %v1372 = vunpack.c.h.b16 %v296
  %v1373 = vunpack.c.l.b16 %v297
  %v1374 = vunpack.c.h.b16 %v297
  %v1375 = vunpack.c.l.b16 %v298
  %v1376 = vunpack.c.h.b16 %v298
  %v1377 = vunpack.c.l.b16 %v299
  %v1378 = vunpack.c.h.b16 %v299
  %v1379 = vunpack.c.l.b16 %v300
  %v1380 = vunpack.c.h.b16 %v300
  %v1381 = vunpack.c.l.b16 %v301
  %v1382 = vunpack.c.h.b16 %v301
  %v1383 = vunpack.c.l.b16 %v302
  %v1384 = vunpack.c.h.b16 %v302
  %v1385 = vunpack.c.l.b16 %v303
  %v1386 = vunpack.c.h.b16 %v303
  %v1387 = vunpack.c.l.b16 %v304
  %v1388 = vunpack.c.h.b16 %v304
  %v1389 = vunpack.c.l.b16 %v305
  %v1390 = vunpack.c.h.b16 %v305
  %v1391 = vunpack.c.l.b16 %v306
  %v1392 = vunpack.c.h.b16 %v306
  %v1393 = vunpack.c.l.b16 %v307
  %v1394 = vunpack.c.h.b16 %v307
  %v1395 = vunpack.c.l.b16 %v308
  %v1396 = vunpack.c.h.b16 %v308
  %v1397 = vunpack.c.l.b16 %v309
  %v1398 = vunpack.c.h.b16 %v309
  %v1399 = vunpack.c.l.b16 %v310
  %v1400 = vunpack.c.h.b16 %v310
  %v1401 = vunpack.c.l.b16 %v311
  %v1402 = vunpack.c.h.b16 %v311
  %v1403 = vunpack.c.l.b16 %v312
  %v1404 = vunpack.c.h.b16 %v312
  %v1405 = vunpack.c.l.b16 %v313
  %v1406 = vunpack.c.h.b16 %v313
  %v1407 = vunpack.c.l.b16 %v314
  %v1408 = vunpack.c.h.b16 %v314
  %v1409 = vunpack.c.l.b16 %v315
  %v1410 = vunpack.c.h.b16 %v315
  %v1411 = vunpack.c.l.b16 %v316
  %v1412 = vunpack.c.h.b16 %v316
  %v1413 = vunpack.c.l.b16 %v317
  %v1414 = vunpack.c.h.b16 %v317
  %v1415 = vunpack.c.l.b16 %v318
  %v1416 = vunpack.c.h.b16 %v318
  %v1417 = vunpack.c.l.b16 %v319
  %v1418 = vunpack.c.h.b16 %v319
  %v1419 = vunpack.c.l.b16 %v320
  %v1420 = vunpack.c.h.b16 %v320
  %v1421 = vunpack.c.l.b16 %v321
  %v1422 = vunpack.c.h.b16 %v321
  %v1423 = vunpack.c.l.b16 %v322
  %v1424 = vunpack.c.h.b16 %v322
  %v1425 = vunpack.c.l.b16 %v323
  %v1426 = vunpack.c.h.b16 %v323
  %v1427 = vunpack.c.l.b16 %v324
  %v1428 = vunpack.c.h.b16 %v324
  %v1429 = vunpack.c.l.b16 %v325
  %v1430 = vunpack.c.h.b16 %v325
  %v1431 = vunpack.c.l.b16 %v326
  %v1432 = vunpack.c.h.b16 %v326
  %v1433 = vunpack.c.l.b16 %v327
  %v1434 = vunpack.c.h.b16 %v327
  %v1435 = vunpack.c.l.b16 %v328
  %v1436 = vunpack.c.h.b16 %v328
  %v1437 = vunpack.c.l.b16 %v329
  %v1438 = vunpack.c.h.b16 %v329
  %v1439 = vunpack.c.l.b16 %v330
  %v1440 = vunpack.c.h.b16 %v330
  %v1441 = vunpack.c.l.b16 %v331
  %v1442 = vunpack.c.h.b16 %v331
  %v1443 = vunpack.c.l.b16 %v332
  %v1444 = vunpack.c.h.b16 %v332
  %v1445 = vunpack.c.l.b16 %v333
  %v1446 = vunpack.c.h.b16 %v333
  %v1447 = vunpack.c.l.b16 %v334
  %v1448 = vunpack.c.h.b16 %v334
  %v1449 = vunpack.c.l.b16 %v335
  %v1450 = vunpack.c.h.b16 %v335
  %v1451 = vunpack.c.l.b16 %v336
  %v1452 = vunpack.c.h.b16 %v336
  %v1453 = vunpack.c.l.b16 %v337
  %v1454 = vunpack.c.h.b16 %v337
  %v1455 = vunpack.c.l.b16 %v338
  %v1456 = vunpack.c.h.b16 %v338
  %v1457 = vunpack.c.l.b16 %v339
  %v1458 = vunpack.c.h.b16 %v339
  %v1459 = vunpack.c.l.b16 %v340
  %v1460 = vunpack.c.h.b16 %v340
  %v1461 = vunpack.c.l.b16 %v341
  %v1462 = vunpack.c.h.b16 %v341
  %v1463 = vunpack.c.l.b16 %v342
  %v1464 = vunpack.c.h.b16 %v342
  %v1465 = vunpack.c.l.b16 %v343
  %v1466 = vunpack.c.h.b16 %v343
  %v1467 = vunpack.c.l.b16 %v344
  %v1468 = vunpack.c.h.b16 %v344
  %v1469 = vunpack.c.l.b16 %v345
  %v1470 = vunpack.c.h.b16 %v345
  %v1471 = vunpack.c.l.b16 %v346
  %v1472 = vunpack.c.h.b16 %v346
  %v1473 = vunpack.c.l.b16 %v347
  %v1474 = vunpack.c.h.b16 %v347
  %v1475 = vunpack.c.l.b16 %v348
  %v1476 = vunpack.c.h.b16 %v348
  %v1477 = vunpack.c.l.b16 %v349
  %v1478 = vunpack.c.h.b16 %v349
  %v1479 = vunpack.c.l.b16 %v350
  %v1480 = vunpack.c.h.b16 %v350
  %v1481 = vunpack.c.l.b16 %v351
  %v1482 = vunpack.c.h.b16 %v351
  %v1483 = vunpack.c.l.b16 %v352
  %v1484 = vunpack.c.h.b16 %v352
  %v1485 = vunpack.c.l.b16 %v353
  %v1486 = vunpack.c.h.b16 %v353
  %v1487 = vunpack.c.l.b16 %v354
  %v1488 = vunpack.c.h.b16 %v354
  %v1489 = vunpack.c.l.b16 %v355
  %v1490 = vunpack.c.h.b16 %v355
  %v1491 = vunpack.c.l.b16 %v356
  %v1492 = vunpack.c.h.b16 %v356
  %v1493 = vunpack.c.l.b16 %v357
  %v1494 = vunpack.c.h.b16 %v357
  %v1495 = vunpack.c.l.b16 %v358
  %v1496 = vunpack.c.h.b16 %v358
  %v1497 = vunpack.c.l.b16 %v359
  %v1498 = vunpack.c.h.b16 %v359
  %v1499 = vunpack.c.l.b16 %v360
  %v1500 = vunpack.c.h.b16 %v360
  %v1501 = vunpack.c.l.b16 %v361
  %v1502 = vunpack.c.h.b16 %v361
  %v1503 = vunpack.c.l.b16 %v362
  %v1504 = vunpack.c.h.b16 %v362
  %v1505 = vunpack.c.l.b16 %v363
  %v1506 = vunpack.c.h.b16 %v363
  %v1507 = vunpack.c.l.b16 %v364
  %v1508 = vunpack.c.h.b16 %v364
  %v1509 = vunpack.c.l.b16 %v365
  %v1510 = vunpack.c.h.b16 %v365
  %v1511 = vunpack.c.l.b16 %v366
  %v1512 = vunpack.c.h.b16 %v366
  %v1513 = vunpack.c.l.b16 %v367
  %v1514 = vunpack.c.h.b16 %v367
  %v1515 = vunpack.c.l.b16 %v368
  %v1516 = vunpack.c.h.b16 %v368
  %v1517 = vunpack.c.l.b16 %v369
  %v1518 = vunpack.c.h.b16 %v369
  %v1519 = vunpack.c.l.b16 %v370
  %v1520 = vunpack.c.h.b16 %v370
  %v1521 = vunpack.c.l.b16 %v371
  %v1522 = vunpack.c.h.b16 %v371
  %v1523 = vunpack.c.l.b16 %v372
  %v1524 = vunpack.c.h.b16 %v372
  %v1525 = vunpack.c.l.b16 %v373
  %v1526 = vunpack.c.h.b16 %v373
  %v1527 = vunpack.c.l.b16 %v374
  %v1528 = vunpack.c.h.b16 %v374
  %v1529 = vunpack.c.l.b16 %v375
  %v1530 = vunpack.c.h.b16 %v375
  %v1531 = vunpack.c.l.b16 %v376
  %v1532 = vunpack.c.h.b16 %v376
  %v1533 = vunpack.c.l.b16 %v377
  %v1534 = vunpack.c.h.b16 %v377
  %v1535 = vunpack.c.l.b16 %v378
  %v1536 = vunpack.c.h.b16 %v378
  %v1537 = vunpack.c.l.b16 %v379
  %v1538 = vunpack.c.h.b16 %v379
  %v1539 = vunpack.c.l.b16 %v380
  %v1540 = vunpack.c.h.b16 %v380
  %v1541 = vunpack.c.l.b16 %v381
  %v1542 = vunpack.c.h.b16 %v381
  %v1543 = vunpack.c.l.b16 %v382
  %v1544 = vunpack.c.h.b16 %v382
  %v1545 = vunpack.c.l.b16 %v383
  %v1546 = vunpack.c.h.b16 %v383
  %v1547 = vunpack.c.l.b16 %v384
  %v1548 = vunpack.c.h.b16 %v384
  %v1549 = vunpack.c.l.b16 %v385
  %v1550 = vunpack.c.h.b16 %v385
  %v1551 = vunpack.c.l.b16 %v386
  %v1552 = vunpack.c.h.b16 %v386
  %v1553 = vunpack.c.l.b16 %v387
  %v1554 = vunpack.c.h.b16 %v387
  %v1555 = vunpack.c.l.b16 %v388
  %v1556 = vunpack.c.h.b16 %v388
  %v1557 = vunpack.c.l.b16 %v389
  %v1558 = vunpack.c.h.b16 %v389
  %v1559 = vunpack.c.l.b16 %v390
  %v1560 = vunpack.c.h.b16 %v390
  %v1561 = vunpack.c.l.b16 %v391
  %v1562 = vunpack.c.h.b16 %v391
  %v1563 = vunpack.c.l.b16 %v392
  %v1564 = vunpack.c.h.b16 %v392
  %v1565 = vunpack.c.l.b16 %v393
  %v1566 = vunpack.c.h.b16 %v393
  %v1567 = vunpack.c.l.b16 %v394
  %v1568 = vunpack.c.h.b16 %v394
  %v1569 = vunpack.c.l.b16 %v395
  %v1570 = vunpack.c.h.b16 %v395
  %v1571 = vunpack.c.l.b16 %v396
  %v1572 = vunpack.c.h.b16 %v396
  %v1573 = vunpack.c.l.b16 %v397
  %v1574 = vunpack.c.h.b16 %v397
  %v1575 = vunpack.c.l.b16 %v398
  %v1576 = vunpack.c.h.b16 %v398
  %v1577 = vunpack.c.l.b16 %v399
  %v1578 = vunpack.c.h.b16 %v399
  %v1579 = vunpack.c.l.b16 %v400
  %v1580 = vunpack.c.h.b16 %v400
  %v1581 = vunpack.c.l.b16 %v401
  %v1582 = vunpack.c.h.b16 %v401
  %v1583 = vunpack.c.l.b16 %v402
  %v1584 = vunpack.c.h.b16 %v402
  %v1585 = vpack.c.b16 %v825, %v817
  %v1586 = vpack.c.b16 %v826, %v818
  %v1587 = vpack.c.b16 %v827, %v819
  %v1588 = vpack.c.b16 %v828, %v820
  %v1589 = vpack.c.b16 %v829, %v821
  %v1590 = vpack.c.b16 %v830, %v822
  %v1591 = vpack.c.b16 %v831, %v823
  %v1592 = vpack.c.b16 %v832, %v824
  %v1593 = vpack.c.b16 %v841, %v833
  %v1594 = vpack.c.b16 %v842, %v834
  %v1595 = vpack.c.b16 %v843, %v835
  %v1596 = vpack.c.b16 %v844, %v836
  %v1597 = vpack.c.b16 %v845, %v837
  %v1598 = vpack.c.b16 %v846, %v838
  %v1599 = vpack.c.b16 %v847, %v839
  %v1600 = vpack.c.b16 %v848, %v840
  %v1601 = vpack.c.b16 %v857, %v849
  %v1602 = vpack.c.b16 %v858, %v850
  %v1603 = vpack.c.b16 %v859, %v851
  %v1604 = vpack.c.b16 %v860, %v852
  %v1605 = vpack.c.b16 %v861, %v853
  %v1606 = vpack.c.b16 %v862, %v854
  %v1607 = vpack.c.b16 %v863, %v855
  %v1608 = vpack.c.b16 %v864, %v856
  %v1609 = vpack.c.b16 %v873, %v865
  %v1610 = vpack.c.b16 %v874, %v866
  %v1611 = vpack.c.b16 %v875, %v867
  %v1612 = vpack.c.b16 %v876, %v868
  %v1613 = vpack.c.b16 %v877, %v869
  %v1614 = vpack.c.b16 %v878, %v870
  %v1615 = vpack.c.b16 %v879, %v871
  %v1616 = vpack.c.b16 %v880, %v872
  %v1617 = vpack.c.b16 %v889, %v881
  %v1618 = vpack.c.b16 %v890, %v882
  %v1619 = vpack.c.b16 %v891, %v883
  %v1620 = vpack.c.b16 %v892, %v884
  %v1621 = vpack.c.b16 %v893, %v885
  %v1622 = vpack.c.b16 %v894, %v886
  %v1623 = vpack.c.b16 %v895, %v887
  %v1624 = vpack.c.b16 %v896, %v888
  %v1625 = vpack.c.b16 %v905, %v897
  %v1626 = vpack.c.b16 %v906, %v898
  %v1627 = vpack.c.b16 %v907, %v899
  %v1628 = vpack.c.b16 %v908, %v900
  %v1629 = vpack.c.b16 %v909, %v901
  %v1630 = vpack.c.b16 %v910, %v902
  %v1631 = vpack.c.b16 %v911, %v903
  %v1632 = vpack.c.b16 %v912, %v904
  %v1633 = vpack.c.b16 %v921, %v913
  %v1634 = vpack.c.b16 %v922, %v914
  %v1635 = vpack.c.b16 %v923, %v915
  %v1636 = vpack.c.b16 %v924, %v916
  %v1637 = vpack.c.b16 %v925, %v917
  %v1638 = vpack.c.b16 %v926, %v918
  %v1639 = vpack.c.b16 %v927, %v919
  %v1640 = vpack.c.b16 %v928, %v920
  %v1641 = vpack.c.b16 %v937, %v929
  %v1642 = vpack.c.b16 %v938, %v930
  %v1643 = vpack.c.b16 %v939, %v931
  %v1644 = vpack.c.b16 %v940, %v932
  %v1645 = vpack.c.b16 %v941, %v933
  %v1646 = vpack.c.b16 %v942, %v934
  %v1647 = vpack.c.b16 %v943, %v935
  %v1648 = vpack.c.b16 %v944, %v936
  %v1649 = vpack.c.b16 %v953, %v945
  %v1650 = vpack.c.b16 %v954, %v946
  %v1651 = vpack.c.b16 %v955, %v947
  %v1652 = vpack.c.b16 %v956, %v948
  %v1653 = vpack.c.b16 %v957, %v949
  %v1654 = vpack.c.b16 %v958, %v950
  %v1655 = vpack.c.b16 %v959, %v951
  %v1656 = vpack.c.b16 %v960, %v952
  %v1657 = vpack.c.b16 %v969, %v961
  %v1658 = vpack.c.b16 %v970, %v962
  %v1659 = vpack.c.b16 %v971, %v963
  %v1660 = vpack.c.b16 %v972, %v964
  %v1661 = vpack.c.b16 %v973, %v965
  %v1662 = vpack.c.b16 %v974, %v966
  %v1663 = vpack.c.b16 %v975, %v967
  %v1664 = vpack.c.b16 %v976, %v968
  %v1665 = vpack.c.b16 %v985, %v977
  %v1666 = vpack.c.b16 %v986, %v978
  %v1667 = vpack.c.b16 %v987, %v979
  %v1668 = vpack.c.b16 %v988, %v980
  %v1669 = vpack.c.b16 %v989, %v981
  %v1670 = vpack.c.b16 %v990, %v982
  %v1671 = vpack.c.b16 %v991, %v983
  %v1672 = vpack.c.b16 %v992, %v984
  %v1673 = vpack.c.b16 %v1001, %v993
  %v1674 = vpack.c.b16 %v1002, %v994
  %v1675 = vpack.c.b16 %v1003, %v995
  %v1676 = vpack.c.b16 %v1004, %v996
  %v1677 = vpack.c.b16 %v1005, %v997
  %v1678 = vpack.c.b16 %v1006, %v998
  %v1679 = vpack.c.b16 %v1007, %v999
  %v1680 = vpack.c.b16 %v1008, %v1000
  %v1681 = vpack.c.b16 %v1017, %v1009
  %v1682 = vpack.c.b16 %v1018, %v1010
  %v1683 = vpack.c.b16 %v1019, %v1011
  %v1684 = vpack.c.b16 %v1020, %v1012
  %v1685 = vpack.c.b16 %v1021, %v1013
  %v1686 = vpack.c.b16 %v1022, %v1014
  %v1687 = vpack.c.b16 %v1023, %v1015
  %v1688 = vpack.c.b16 %v1024, %v1016
  %v1689 = vpack.c.b16 %v1033, %v1025
  %v1690 = vpack.c.b16 %v1034, %v1026
  %v1691 = vpack.c.b16 %v1035, %v1027
  %v1692 = vpack.c.b16 %v1036, %v1028
  %v1693 = vpack.c.b16 %v1037, %v1029
  %v1694 = vpack.c.b16 %v1038, %v1030
  %v1695 = vpack.c.b16 %v1039, %v1031
  %v1696 = vpack.c.b16 %v1040, %v1032
  %v1697 = vpack.c.b16 %v1049, %v1041
  %v1698 = vpack.c.b16 %v1050, %v1042
  %v1699 = vpack.c.b16 %v1051, %v1043
  %v1700 = vpack.c.b16 %v1052, %v1044
  %v1701 = vpack.c.b16 %v1053, %v1045
  %v1702 = vpack.c.b16 %v1054, %v1046
  %v1703 = vpack.c.b16 %v1055, %v1047
  %v1704 = vpack.c.b16 %v1056, %v1048
  %v1705 = vpack.c.b16 %v1065, %v1057
  %v1706 = vpack.c.b16 %v1066, %v1058
  %v1707 = vpack.c.b16 %v1067, %v1059
  %v1708 = vpack.c.b16 %v1068, %v1060
  %v1709 = vpack.c.b16 %v1069, %v1061
  %v1710 = vpack.c.b16 %v1070, %v1062
  %v1711 = vpack.c.b16 %v1071, %v1063
  %v1712 = vpack.c.b16 %v1072, %v1064
  %v1713 = vpack.c.b16 %v1081, %v1073
  %v1714 = vpack.c.b16 %v1082, %v1074
  %v1715 = vpack.c.b16 %v1083, %v1075
  %v1716 = vpack.c.b16 %v1084, %v1076
  %v1717 = vpack.c.b16 %v1085, %v1077
  %v1718 = vpack.c.b16 %v1086, %v1078
  %v1719 = vpack.c.b16 %v1087, %v1079
  %v1720 = vpack.c.b16 %v1088, %v1080
  %v1721 = vpack.c.b16 %v1097, %v1089
  %v1722 = vpack.c.b16 %v1098, %v1090
  %v1723 = vpack.c.b16 %v1099, %v1091
  %v1724 = vpack.c.b16 %v1100, %v1092
  %v1725 = vpack.c.b16 %v1101, %v1093
  %v1726 = vpack.c.b16 %v1102, %v1094
  %v1727 = vpack.c.b16 %v1103, %v1095
  %v1728 = vpack.c.b16 %v1104, %v1096
  %v1729 = vpack.c.b16 %v1113, %v1105
  %v1730 = vpack.c.b16 %v1114, %v1106
  %v1731 = vpack.c.b16 %v1115, %v1107
  %v1732 = vpack.c.b16 %v1116, %v1108
  %v1733 = vpack.c.b16 %v1117, %v1109
  %v1734 = vpack.c.b16 %v1118, %v1110
  %v1735 = vpack.c.b16 %v1119, %v1111
  %v1736 = vpack.c.b16 %v1120, %v1112
  %v1737 = vpack.c.b16 %v1129, %v1121
  %v1738 = vpack.c.b16 %v1130, %v1122
  %v1739 = vpack.c.b16 %v1131, %v1123
  %v1740 = vpack.c.b16 %v1132, %v1124
  %v1741 = vpack.c.b16 %v1133, %v1125
  %v1742 = vpack.c.b16 %v1134, %v1126
  %v1743 = vpack.c.b16 %v1135, %v1127
  %v1744 = vpack.c.b16 %v1136, %v1128
  %v1745 = vpack.c.b16 %v1145, %v1137
  %v1746 = vpack.c.b16 %v1146, %v1138
  %v1747 = vpack.c.b16 %v1147, %v1139
  %v1748 = vpack.c.b16 %v1148, %v1140
  %v1749 = vpack.c.b16 %v1149, %v1141
  %v1750 = vpack.c.b16 %v1150, %v1142
  %v1751 = vpack.c.b16 %v1151, %v1143
  %v1752 = vpack.c.b16 %v1152, %v1144
  %v1753 = vpack.c.b16 %v1161, %v1153
  %v1754 = vpack.c.b16 %v1162, %v1154
  %v1755 = vpack.c.b16 %v1163, %v1155
  %v1756 = vpack.c.b16 %v1164, %v1156
  %v1757 = vpack.c.b16 %v1165, %v1157
  %v1758 = vpack.c.b16 %v1166, %v1158
  %v1759 = vpack.c.b16 %v1167, %v1159
  %v1760 = vpack.c.b16 %v1168, %v1160
  %v1761 = vpack.c.b16 %v1177, %v1169
  %v1762 = vpack.c.b16 %v1178, %v1170
  %v1763 = vpack.c.b16 %v1179, %v1171
  %v1764 = vpack.c.b16 %v1180, %v1172
  %v1765 = vpack.c.b16 %v1181, %v1173
  %v1766 = vpack.c.b16 %v1182, %v1174
  %v1767 = vpack.c.b16 %v1183, %v1175
  %v1768 = vpack.c.b16 %v1184, %v1176
  %v1769 = vpack.c.b16 %v1193, %v1185
  %v1770 = vpack.c.b16 %v1194, %v1186
  %v1771 = vpack.c.b16 %v1195, %v1187
  %v1772 = vpack.c.b16 %v1196, %v1188
  %v1773 = vpack.c.b16 %v1197, %v1189
  %v1774 = vpack.c.b16 %v1198, %v1190
  %v1775 = vpack.c.b16 %v1199, %v1191
  %v1776 = vpack.c.b16 %v1200, %v1192
  %v1777 = vpack.c.b16 %v1209, %v1201
  %v1778 = vpack.c.b16 %v1210, %v1202
  %v1779 = vpack.c.b16 %v1211, %v1203
  %v1780 = vpack.c.b16 %v1212, %v1204
  %v1781 = vpack.c.b16 %v1213, %v1205
  %v1782 = vpack.c.b16 %v1214, %v1206
  %v1783 = vpack.c.b16 %v1215, %v1207
  %v1784 = vpack.c.b16 %v1216, %v1208
  %v1785 = vpack.c.b16 %v1225, %v1217
  %v1786 = vpack.c.b16 %v1226, %v1218
  %v1787 = vpack.c.b16 %v1227, %v1219
  %v1788 = vpack.c.b16 %v1228, %v1220
  %v1789 = vpack.c.b16 %v1229, %v1221
  %v1790 = vpack.c.b16 %v1230, %v1222
  %v1791 = vpack.c.b16 %v1231, %v1223
  %v1792 = vpack.c.b16 %v1232, %v1224
  %v1793 = vpack.c.b16 %v1241, %v1233
  %v1794 = vpack.c.b16 %v1242, %v1234
  %v1795 = vpack.c.b16 %v1243, %v1235
  %v1796 = vpack.c.b16 %v1244, %v1236
  %v1797 = vpack.c.b16 %v1245, %v1237
  %v1798 = vpack.c.b16 %v1246, %v1238
  %v1799 = vpack.c.b16 %v1247, %v1239
  %v1800 = vpack.c.b16 %v1248, %v1240
  %v1801 = vpack.c.b16 %v1257, %v1249
  %v1802 = vpack.c.b16 %v1258, %v1250
  %v1803 = vpack.c.b16 %v1259, %v1251
  %v1804 = vpack.c.b16 %v1260, %v1252
  %v1805 = vpack.c.b16 %v1261, %v1253
  %v1806 = vpack.c.b16 %v1262, %v1254
  %v1807 = vpack.c.b16 %v1263, %v1255
  %v1808 = vpack.c.b16 %v1264, %v1256
  %v1809 = vpack.c.b16 %v1273, %v1265
  %v1810 = vpack.c.b16 %v1274, %v1266
  %v1811 = vpack.c.b16 %v1275, %v1267
  %v1812 = vpack.c.b16 %v1276, %v1268
  %v1813 = vpack.c.b16 %v1277, %v1269
  %v1814 = vpack.c.b16 %v1278, %v1270
  %v1815 = vpack.c.b16 %v1279, %v1271
  %v1816 = vpack.c.b16 %v1280, %v1272
  %v1817 = vpack.c.b16 %v1289, %v1281
  %v1818 = vpack.c.b16 %v1290, %v1282
  %v1819 = vpack.c.b16 %v1291, %v1283
  %v1820 = vpack.c.b16 %v1292, %v1284
  %v1821 = vpack.c.b16 %v1293, %v1285
  %v1822 = vpack.c.b16 %v1294, %v1286
  %v1823 = vpack.c.b16 %v1295, %v1287
  %v1824 = vpack.c.b16 %v1296, %v1288
  %v1825 = vpack.c.b16 %v1305, %v1297
  %v1826 = vpack.c.b16 %v1306, %v1298
  %v1827 = vpack.c.b16 %v1307, %v1299
  %v1828 = vpack.c.b16 %v1308, %v1300
  %v1829 = vpack.c.b16 %v1309, %v1301
  %v1830 = vpack.c.b16 %v1310, %v1302
  %v1831 = vpack.c.b16 %v1311, %v1303
  %v1832 = vpack.c.b16 %v1312, %v1304
  %v1833 = vpack.c.b16 %v1321, %v1313
  %v1834 = vpack.c.b16 %v1322, %v1314
  %v1835 = vpack.c.b16 %v1323, %v1315
  %v1836 = vpack.c.b16 %v1324, %v1316
  %v1837 = vpack.c.b16 %v1325, %v1317
  %v1838 = vpack.c.b16 %v1326, %v1318
  %v1839 = vpack.c.b16 %v1327, %v1319
  %v1840 = vpack.c.b16 %v1328, %v1320
  %v1841 = vpack.c.b16 %v1337, %v1329
  %v1842 = vpack.c.b16 %v1338, %v1330
  %v1843 = vpack.c.b16 %v1339, %v1331
  %v1844 = vpack.c.b16 %v1340, %v1332
  %v1845 = vpack.c.b16 %v1341, %v1333
  %v1846 = vpack.c.b16 %v1342, %v1334
  %v1847 = vpack.c.b16 %v1343, %v1335
  %v1848 = vpack.c.b16 %v1344, %v1336
  %v1849 = vpack.c.b16 %v1353, %v1345
  %v1850 = vpack.c.b16 %v1354, %v1346
  %v1851 = vpack.c.b16 %v1355, %v1347
  %v1852 = vpack.c.b16 %v1356, %v1348
  %v1853 = vpack.c.b16 %v1357, %v1349
  %v1854 = vpack.c.b16 %v1358, %v1350
  %v1855 = vpack.c.b16 %v1359, %v1351
  %v1856 = vpack.c.b16 %v1360, %v1352
  %v1857 = vpack.c.b16 %v1369, %v1361
  %v1858 = vpack.c.b16 %v1370, %v1362
  %v1859 = vpack.c.b16 %v1371, %v1363
  %v1860 = vpack.c.b16 %v1372, %v1364
  %v1861 = vpack.c.b16 %v1373, %v1365
  %v1862 = vpack.c.b16 %v1374, %v1366
  %v1863 = vpack.c.b16 %v1375, %v1367
  %v1864 = vpack.c.b16 %v1376, %v1368
  %v1865 = vpack.c.b16 %v1385, %v1377
  %v1866 = vpack.c.b16 %v1386, %v1378
  %v1867 = vpack.c.b16 %v1387, %v1379
  %v1868 = vpack.c.b16 %v1388, %v1380
  %v1869 = vpack.c.b16 %v1389, %v1381
  %v1870 = vpack.c.b16 %v1390, %v1382
  %v1871 = vpack.c.b16 %v1391, %v1383
  %v1872 = vpack.c.b16 %v1392, %v1384
  %v1873 = vpack.c.b16 %v1401, %v1393
  %v1874 = vpack.c.b16 %v1402, %v1394
  %v1875 = vpack.c.b16 %v1403, %v1395
  %v1876 = vpack.c.b16 %v1404, %v1396
  %v1877 = vpack.c.b16 %v1405, %v1397
  %v1878 = vpack.c.b16 %v1406, %v1398
  %v1879 = vpack.c.b16 %v1407, %v1399
  %v1880 = vpack.c.b16 %v1408, %v1400
  %v1881 = vpack.c.b16 %v1417, %v1409
  %v1882 = vpack.c.b16 %v1418, %v1410
  %v1883 = vpack.c.b16 %v1419, %v1411
  %v1884 = vpack.c.b16 %v1420, %v1412
  %v1885 = vpack.c.b16 %v1421, %v1413
  %v1886 = vpack.c.b16 %v1422, %v1414
  %v1887 = vpack.c.b16 %v1423, %v1415
  %v1888 = vpack.c.b16 %v1424, %v1416
  %v1889 = vpack.c.b16 %v1433, %v1425
  %v1890 = vpack.c.b16 %v1434, %v1426
  %v1891 = vpack.c.b16 %v1435, %v1427
  %v1892 = vpack.c.b16 %v1436, %v1428
  %v1893 = vpack.c.b16 %v1437, %v1429
  %v1894 = vpack.c.b16 %v1438, %v1430
  %v1895 = vpack.c.b16 %v1439, %v1431
  %v1896 = vpack.c.b16 %v1440, %v1432
  %v1897 = vpack.c.b16 %v1449, %v1441
  %v1898 = vpack.c.b16 %v1450, %v1442
  %v1899 = vpack.c.b16 %v1451, %v1443
  %v1900 = vpack.c.b16 %v1452, %v1444
  %v1901 = vpack.c.b16 %v1453, %v1445
  %v1902 = vpack.c.b16 %v1454, %v1446
  %v1903 = vpack.c.b16 %v1455, %v1447
  %v1904 = vpack.c.b16 %v1456, %v1448
  %v1905 = vpack.c.b16 %v1465, %v1457
  %v1906 = vpack.c.b16 %v1466, %v1458
  %v1907 = vpack.c.b16 %v1467, %v1459
  %v1908 = vpack.c.b16 %v1468, %v1460
  %v1909 = vpack.c.b16 %v1469, %v1461
  %v1910 = vpack.c.b16 %v1470, %v1462
  %v1911 = vpack.c.b16 %v1471, %v1463
  %v1912 = vpack.c.b16 %v1472, %v1464
  %v1913 = vpack.c.b16 %v1481, %v1473
  %v1914 = vpack.c.b16 %v1482, %v1474
  %v1915 = vpack.c.b16 %v1483, %v1475
  %v1916 = vpack.c.b16 %v1484, %v1476
  %v1917 = vpack.c.b16 %v1485, %v1477
  %v1918 = vpack.c.b16 %v1486, %v1478
  %v1919 = vpack.c.b16 %v1487, %v1479
  %v1920 = vpack.c.b16 %v1488, %v1480
  %v1921 = vpack.c.b16 %v1497, %v1489
  %v1922 = vpack.c.b16 %v1498, %v1490
  %v1923 = vpack.c.b16 %v1499, %v1491
  %v1924 = vpack.c.b16 %v1500, %v1492
  %v1925 = vpack.c.b16 %v1501, %v1493
  %v1926 = vpack.c.b16 %v1502, %v1494
  %v1927 = vpack.c.b16 %v1503, %v1495
  %v1928 = vpack.c.b16 %v1504, %v1496
  %v1929 = vpack.c.b16 %v1513, %v1505
  %v1930 = vpack.c.b16 %v1514, %v1506
  %v1931 = vpack.c.b16 %v1515, %v1507
  %v1932 = vpack.c.b16 %v1516, %v1508
  %v1933 = vpack.c.b16 %v1517, %v1509
  %v1934 = vpack.c.b16 %v1518, %v1510
  %v1935 = vpack.c.b16 %v1519, %v1511
  %v1936 = vpack.c.b16 %v1520, %v1512
  %v1937 = vpack.c.b16 %v1529, %v1521
  %v1938 = vpack.c.b16 %v1530, %v1522
  %v1939 = vpack.c.b16 %v1531, %v1523
  %v1940 = vpack.c.b16 %v1532, %v1524
  %v1941 = vpack.c.b16 %v1533, %v1525
  %v1942 = vpack.c.b16 %v1534, %v1526
  %v1943 = vpack.c.b16 %v1535, %v1527
  %v1944 = vpack.c.b16 %v1536, %v1528
  %v1945 = vpack.c.b16 %v1545, %v1537
  %v1946 = vpack.c.b16 %v1546, %v1538
  %v1947 = vpack.c.b16 %v1547, %v1539
  %v1948 = vpack.c.b16 %v1548, %v1540
  %v1949 = vpack.c.b16 %v1549, %v1541
  %v1950 = vpack.c.b16 %v1550, %v1542
  %v1951 = vpack.c.b16 %v1551, %v1543
  %v1952 = vpack.c.b16 %v1552, %v1544
  %v1953 = vpack.c.b16 %v1561, %v1553
  %v1954 = vpack.c.b16 %v1562, %v1554
  %v1955 = vpack.c.b16 %v1563, %v1555
  %v1956 = vpack.c.b16 %v1564, %v1556
  %v1957 = vpack.c.b16 %v1565, %v1557
  %v1958 = vpack.c.b16 %v1566, %v1558
  %v1959 = vpack.c.b16 %v1567, %v1559
  %v1960 = vpack.c.b16 %v1568, %v1560
  %v1961 = vpack.c.b16 %v1577, %v1569
  %v1962 = vpack.c.b16 %v1578, %v1570
  %v1963 = vpack.c.b16 %v1579, %v1571
  %v1964 = vpack.c.b16 %v1580, %v1572
  %v1965 = vpack.c.b16 %v1581, %v1573
  %v1966 = vpack.c.b16 %v1582, %v1574
  %v1967 = vpack.c.b16 %v1583, %v1575
  %v1968 = vpack.c.b16 %v1584, %v1576
  %2353 = vmatpush.bf16.msra.mxu0 %v1641
  %2354 = vmatpush.bf16.msra.mxu0 %v1633
  %2355 = vmatpush.bf16.msra.mxu0 %v1625
  %2356 = vmatpush.bf16.msra.mxu0 %v1617
  %2357 = vmatpush.bf16.msra.mxu0 %v1609
  %2358 = vmatpush.bf16.msra.mxu0 %v1601
  %2359 = vmatpush.bf16.msra.mxu0 %v1593
  %2360 = vmatpush.bf16.msra.mxu0 %v1585
  %2361 = vmatmul.bf16.gmra.mxu0 %v421
  %v2362 = vpop.f32.mrf.mxu0
  %v2363 = vadd.f32 0.0, %v2362
  %v2364 = vpop.f32.mrf.mxu0
  %v2365 = vadd.f32 0.0, %v2364
  %2366 = vdwg.mxu0
  %2367 = vmatpush.bf16.msra.mxu0 %v1705
  %2368 = vmatpush.bf16.msra.mxu0 %v1697
  %2369 = vmatpush.bf16.msra.mxu0 %v1689
  %2370 = vmatpush.bf16.msra.mxu0 %v1681
  %2371 = vmatpush.bf16.msra.mxu0 %v1673
  %2372 = vmatpush.bf16.msra.mxu0 %v1665
  %2373 = vmatpush.bf16.msra.mxu0 %v1657
  %2374 = vmatpush.bf16.msra.mxu0 %v1649
  %2375 = vmatmul.bf16.gmra.mxu0 %v422
  %v2376 = vpop.f32.mrf.mxu0
  %v2377 = vadd.f32 %v2363, %v2376
  %v2378 = vpop.f32.mrf.mxu0
  %v2379 = vadd.f32 %v2365, %v2378
  %2380 = vdwg.mxu0
  %2381 = vmatpush.bf16.msra.mxu0 %v1769
  %2382 = vmatpush.bf16.msra.mxu0 %v1761
  %2383 = vmatpush.bf16.msra.mxu0 %v1753
  %2384 = vmatpush.bf16.msra.mxu0 %v1745
  %2385 = vmatpush.bf16.msra.mxu0 %v1737
  %2386 = vmatpush.bf16.msra.mxu0 %v1729
  %2387 = vmatpush.bf16.msra.mxu0 %v1721
  %2388 = vmatpush.bf16.msra.mxu0 %v1713
  %2389 = vmatmul.bf16.gmra.mxu0 %v423
  %v2390 = vpop.f32.mrf.mxu0
  %v2391 = vadd.f32 %v2377, %v2390
  %v2392 = vpop.f32.mrf.mxu0
  %v2393 = vadd.f32 %v2379, %v2392
  %2394 = vdwg.mxu0
  %2395 = vmatpush.bf16.msra.mxu0 %v1833
  %2396 = vmatpush.bf16.msra.mxu0 %v1825
  %2397 = vmatpush.bf16.msra.mxu0 %v1817
  %2398 = vmatpush.bf16.msra.mxu0 %v1809
  %2399 = vmatpush.bf16.msra.mxu0 %v1801
  %2400 = vmatpush.bf16.msra.mxu0 %v1793
  %2401 = vmatpush.bf16.msra.mxu0 %v1785
  %2402 = vmatpush.bf16.msra.mxu0 %v1777
  %2403 = vmatmul.bf16.gmra.mxu0 %v424
  %v2404 = vpop.f32.mrf.mxu0
  %v2405 = vadd.f32 %v2391, %v2404
  %v2406 = vpop.f32.mrf.mxu0
  %v2407 = vadd.f32 %v2393, %v2406
  %2408 = vdwg.mxu0
  %2409 = vmatpush.bf16.msra.mxu0 %v1897
  %2410 = vmatpush.bf16.msra.mxu0 %v1889
  %2411 = vmatpush.bf16.msra.mxu0 %v1881
  %2412 = vmatpush.bf16.msra.mxu0 %v1873
  %2413 = vmatpush.bf16.msra.mxu0 %v1865
  %2414 = vmatpush.bf16.msra.mxu0 %v1857
  %2415 = vmatpush.bf16.msra.mxu0 %v1849
  %2416 = vmatpush.bf16.msra.mxu0 %v1841
  %2417 = vmatmul.bf16.gmra.mxu0 %v425
  %v2418 = vpop.f32.mrf.mxu0
  %v2419 = vadd.f32 %v2405, %v2418
  %v2420 = vpop.f32.mrf.mxu0
  %v2421 = vadd.f32 %v2407, %v2420
  %2422 = vdwg.mxu0
  %2423 = vmatpush.bf16.msra.mxu0 %v1961
  %2424 = vmatpush.bf16.msra.mxu0 %v1953
  %2425 = vmatpush.bf16.msra.mxu0 %v1945
  %2426 = vmatpush.bf16.msra.mxu0 %v1937
  %2427 = vmatpush.bf16.msra.mxu0 %v1929
  %2428 = vmatpush.bf16.msra.mxu0 %v1921
  %2429 = vmatpush.bf16.msra.mxu0 %v1913
  %2430 = vmatpush.bf16.msra.mxu0 %v1905
  %2431 = vmatmul.bf16.gmra.mxu0 %v426
  %v2432 = vpop.f32.mrf.mxu0
  %v2433 = vadd.f32 %v2419, %v2432
  %v2434 = vpop.f32.mrf.mxu0
  %v2435 = vadd.f32 %v2421, %v2434
  %2436 = vdwg.mxu0
  %2437 = vmatpush.bf16.msra.mxu0 %v1642
  %2438 = vmatpush.bf16.msra.mxu0 %v1634
  %2439 = vmatpush.bf16.msra.mxu0 %v1626
  %2440 = vmatpush.bf16.msra.mxu0 %v1618
  %2441 = vmatpush.bf16.msra.mxu0 %v1610
  %2442 = vmatpush.bf16.msra.mxu0 %v1602
  %2443 = vmatpush.bf16.msra.mxu0 %v1594
  %2444 = vmatpush.bf16.msra.mxu0 %v1586
  %2445 = vmatmul.bf16.gmra.mxu0 %v421
  %v2446 = vpop.f32.mrf.mxu0
  %v2447 = vadd.f32 0.0, %v2446
  %v2448 = vpop.f32.mrf.mxu0
  %v2449 = vadd.f32 0.0, %v2448
  %2450 = vdwg.mxu0
  %2451 = vmatpush.bf16.msra.mxu0 %v1706
  %2452 = vmatpush.bf16.msra.mxu0 %v1698
  %2453 = vmatpush.bf16.msra.mxu0 %v1690
  %2454 = vmatpush.bf16.msra.mxu0 %v1682
  %2455 = vmatpush.bf16.msra.mxu0 %v1674
  %2456 = vmatpush.bf16.msra.mxu0 %v1666
  %2457 = vmatpush.bf16.msra.mxu0 %v1658
  %2458 = vmatpush.bf16.msra.mxu0 %v1650
  %2459 = vmatmul.bf16.gmra.mxu0 %v422
  %v2460 = vpop.f32.mrf.mxu0
  %v2461 = vadd.f32 %v2447, %v2460
  %v2462 = vpop.f32.mrf.mxu0
  %v2463 = vadd.f32 %v2449, %v2462
  %2464 = vdwg.mxu0
  %2465 = vmatpush.bf16.msra.mxu0 %v1770
  %2466 = vmatpush.bf16.msra.mxu0 %v1762
  %2467 = vmatpush.bf16.msra.mxu0 %v1754
  %2468 = vmatpush.bf16.msra.mxu0 %v1746
  %2469 = vmatpush.bf16.msra.mxu0 %v1738
  %2470 = vmatpush.bf16.msra.mxu0 %v1730
  %2471 = vmatpush.bf16.msra.mxu0 %v1722
  %2472 = vmatpush.bf16.msra.mxu0 %v1714
  %2473 = vmatmul.bf16.gmra.mxu0 %v423
  %v2474 = vpop.f32.mrf.mxu0
  %v2475 = vadd.f32 %v2461, %v2474
  %v2476 = vpop.f32.mrf.mxu0
  %v2477 = vadd.f32 %v2463, %v2476
  %2478 = vdwg.mxu0
  %2479 = vmatpush.bf16.msra.mxu0 %v1834
  %2480 = vmatpush.bf16.msra.mxu0 %v1826
  %2481 = vmatpush.bf16.msra.mxu0 %v1818
  %2482 = vmatpush.bf16.msra.mxu0 %v1810
  %2483 = vmatpush.bf16.msra.mxu0 %v1802
  %2484 = vmatpush.bf16.msra.mxu0 %v1794
  %2485 = vmatpush.bf16.msra.mxu0 %v1786
  %2486 = vmatpush.bf16.msra.mxu0 %v1778
  %2487 = vmatmul.bf16.gmra.mxu0 %v424
  %v2488 = vpop.f32.mrf.mxu0
  %v2489 = vadd.f32 %v2475, %v2488
  %v2490 = vpop.f32.mrf.mxu0
  %v2491 = vadd.f32 %v2477, %v2490
  %2492 = vdwg.mxu0
  %2493 = vmatpush.bf16.msra.mxu0 %v1898
  %2494 = vmatpush.bf16.msra.mxu0 %v1890
  %2495 = vmatpush.bf16.msra.mxu0 %v1882
  %2496 = vmatpush.bf16.msra.mxu0 %v1874
  %2497 = vmatpush.bf16.msra.mxu0 %v1866
  %2498 = vmatpush.bf16.msra.mxu0 %v1858
  %2499 = vmatpush.bf16.msra.mxu0 %v1850
  %2500 = vmatpush.bf16.msra.mxu0 %v1842
  %2501 = vmatmul.bf16.gmra.mxu0 %v425
  %v2502 = vpop.f32.mrf.mxu0
  %v2503 = vadd.f32 %v2489, %v2502
  %v2504 = vpop.f32.mrf.mxu0
  %v2505 = vadd.f32 %v2491, %v2504
  %2506 = vdwg.mxu0
  %2507 = vmatpush.bf16.msra.mxu0 %v1962
  %2508 = vmatpush.bf16.msra.mxu0 %v1954
  %2509 = vmatpush.bf16.msra.mxu0 %v1946
  %2510 = vmatpush.bf16.msra.mxu0 %v1938
  %2511 = vmatpush.bf16.msra.mxu0 %v1930
  %2512 = vmatpush.bf16.msra.mxu0 %v1922
  %2513 = vmatpush.bf16.msra.mxu0 %v1914
  %2514 = vmatpush.bf16.msra.mxu0 %v1906
  %2515 = vmatmul.bf16.gmra.mxu0 %v426
  %v2516 = vpop.f32.mrf.mxu0
  %v2517 = vadd.f32 %v2503, %v2516
  %v2518 = vpop.f32.mrf.mxu0
  %v2519 = vadd.f32 %v2505, %v2518
  %2520 = vdwg.mxu0
  %2521 = vmatpush.bf16.msra.mxu0 %v1643
  %2522 = vmatpush.bf16.msra.mxu0 %v1635
  %2523 = vmatpush.bf16.msra.mxu0 %v1627
  %2524 = vmatpush.bf16.msra.mxu0 %v1619
  %2525 = vmatpush.bf16.msra.mxu0 %v1611
  %2526 = vmatpush.bf16.msra.mxu0 %v1603
  %2527 = vmatpush.bf16.msra.mxu0 %v1595
  %2528 = vmatpush.bf16.msra.mxu0 %v1587
  %2529 = vmatmul.bf16.gmra.mxu0 %v421
  %v2530 = vpop.f32.mrf.mxu0
  %v2531 = vadd.f32 0.0, %v2530
  %v2532 = vpop.f32.mrf.mxu0
  %v2533 = vadd.f32 0.0, %v2532
  %2534 = vdwg.mxu0
  %2535 = vmatpush.bf16.msra.mxu0 %v1707
  %2536 = vmatpush.bf16.msra.mxu0 %v1699
  %2537 = vmatpush.bf16.msra.mxu0 %v1691
  %2538 = vmatpush.bf16.msra.mxu0 %v1683
  %2539 = vmatpush.bf16.msra.mxu0 %v1675
  %2540 = vmatpush.bf16.msra.mxu0 %v1667
  %2541 = vmatpush.bf16.msra.mxu0 %v1659
  %2542 = vmatpush.bf16.msra.mxu0 %v1651
  %2543 = vmatmul.bf16.gmra.mxu0 %v422
  %v2544 = vpop.f32.mrf.mxu0
  %v2545 = vadd.f32 %v2531, %v2544
  %v2546 = vpop.f32.mrf.mxu0
  %v2547 = vadd.f32 %v2533, %v2546
  %2548 = vdwg.mxu0
  %2549 = vmatpush.bf16.msra.mxu0 %v1771
  %2550 = vmatpush.bf16.msra.mxu0 %v1763
  %2551 = vmatpush.bf16.msra.mxu0 %v1755
  %2552 = vmatpush.bf16.msra.mxu0 %v1747
  %2553 = vmatpush.bf16.msra.mxu0 %v1739
  %2554 = vmatpush.bf16.msra.mxu0 %v1731
  %2555 = vmatpush.bf16.msra.mxu0 %v1723
  %2556 = vmatpush.bf16.msra.mxu0 %v1715
  %2557 = vmatmul.bf16.gmra.mxu0 %v423
  %v2558 = vpop.f32.mrf.mxu0
  %v2559 = vadd.f32 %v2545, %v2558
  %v2560 = vpop.f32.mrf.mxu0
  %v2561 = vadd.f32 %v2547, %v2560
  %2562 = vdwg.mxu0
  %2563 = vmatpush.bf16.msra.mxu0 %v1835
  %2564 = vmatpush.bf16.msra.mxu0 %v1827
  %2565 = vmatpush.bf16.msra.mxu0 %v1819
  %2566 = vmatpush.bf16.msra.mxu0 %v1811
  %2567 = vmatpush.bf16.msra.mxu0 %v1803
  %2568 = vmatpush.bf16.msra.mxu0 %v1795
  %2569 = vmatpush.bf16.msra.mxu0 %v1787
  %2570 = vmatpush.bf16.msra.mxu0 %v1779
  %2571 = vmatmul.bf16.gmra.mxu0 %v424
  %v2572 = vpop.f32.mrf.mxu0
  %v2573 = vadd.f32 %v2559, %v2572
  %v2574 = vpop.f32.mrf.mxu0
  %v2575 = vadd.f32 %v2561, %v2574
  %2576 = vdwg.mxu0
  %2577 = vmatpush.bf16.msra.mxu0 %v1899
  %2578 = vmatpush.bf16.msra.mxu0 %v1891
  %2579 = vmatpush.bf16.msra.mxu0 %v1883
  %2580 = vmatpush.bf16.msra.mxu0 %v1875
  %2581 = vmatpush.bf16.msra.mxu0 %v1867
  %2582 = vmatpush.bf16.msra.mxu0 %v1859
  %2583 = vmatpush.bf16.msra.mxu0 %v1851
  %2584 = vmatpush.bf16.msra.mxu0 %v1843
  %2585 = vmatmul.bf16.gmra.mxu0 %v425
  %v2586 = vpop.f32.mrf.mxu0
  %v2587 = vadd.f32 %v2573, %v2586
  %v2588 = vpop.f32.mrf.mxu0
  %v2589 = vadd.f32 %v2575, %v2588
  %2590 = vdwg.mxu0
  %2591 = vmatpush.bf16.msra.mxu0 %v1963
  %2592 = vmatpush.bf16.msra.mxu0 %v1955
  %2593 = vmatpush.bf16.msra.mxu0 %v1947
  %2594 = vmatpush.bf16.msra.mxu0 %v1939
  %2595 = vmatpush.bf16.msra.mxu0 %v1931
  %2596 = vmatpush.bf16.msra.mxu0 %v1923
  %2597 = vmatpush.bf16.msra.mxu0 %v1915
  %2598 = vmatpush.bf16.msra.mxu0 %v1907
  %2599 = vmatmul.bf16.gmra.mxu0 %v426
  %v2600 = vpop.f32.mrf.mxu0
  %v2601 = vadd.f32 %v2587, %v2600
  %v2602 = vpop.f32.mrf.mxu0
  %v2603 = vadd.f32 %v2589, %v2602
  %2604 = vdwg.mxu0
  %2605 = vmatpush.bf16.msra.mxu0 %v1644
  %2606 = vmatpush.bf16.msra.mxu0 %v1636
  %2607 = vmatpush.bf16.msra.mxu0 %v1628
  %2608 = vmatpush.bf16.msra.mxu0 %v1620
  %2609 = vmatpush.bf16.msra.mxu0 %v1612
  %2610 = vmatpush.bf16.msra.mxu0 %v1604
  %2611 = vmatpush.bf16.msra.mxu0 %v1596
  %2612 = vmatpush.bf16.msra.mxu0 %v1588
  %2613 = vmatmul.bf16.gmra.mxu0 %v421
  %v2614 = vpop.f32.mrf.mxu0
  %v2615 = vadd.f32 0.0, %v2614
  %v2616 = vpop.f32.mrf.mxu0
  %v2617 = vadd.f32 0.0, %v2616
  %2618 = vdwg.mxu0
  %2619 = vmatpush.bf16.msra.mxu0 %v1708
  %2620 = vmatpush.bf16.msra.mxu0 %v1700
  %2621 = vmatpush.bf16.msra.mxu0 %v1692
  %2622 = vmatpush.bf16.msra.mxu0 %v1684
  %2623 = vmatpush.bf16.msra.mxu0 %v1676
  %2624 = vmatpush.bf16.msra.mxu0 %v1668
  %2625 = vmatpush.bf16.msra.mxu0 %v1660
  %2626 = vmatpush.bf16.msra.mxu0 %v1652
  %2627 = vmatmul.bf16.gmra.mxu0 %v422
  %v2628 = vpop.f32.mrf.mxu0
  %v2629 = vadd.f32 %v2615, %v2628
  %v2630 = vpop.f32.mrf.mxu0
  %v2631 = vadd.f32 %v2617, %v2630
  %2632 = vdwg.mxu0
  %2633 = vmatpush.bf16.msra.mxu0 %v1772
  %2634 = vmatpush.bf16.msra.mxu0 %v1764
  %2635 = vmatpush.bf16.msra.mxu0 %v1756
  %2636 = vmatpush.bf16.msra.mxu0 %v1748
  %2637 = vmatpush.bf16.msra.mxu0 %v1740
  %2638 = vmatpush.bf16.msra.mxu0 %v1732
  %2639 = vmatpush.bf16.msra.mxu0 %v1724
  %2640 = vmatpush.bf16.msra.mxu0 %v1716
  %2641 = vmatmul.bf16.gmra.mxu0 %v423
  %v2642 = vpop.f32.mrf.mxu0
  %v2643 = vadd.f32 %v2629, %v2642
  %v2644 = vpop.f32.mrf.mxu0
  %v2645 = vadd.f32 %v2631, %v2644
  %2646 = vdwg.mxu0
  %2647 = vmatpush.bf16.msra.mxu0 %v1836
  %2648 = vmatpush.bf16.msra.mxu0 %v1828
  %2649 = vmatpush.bf16.msra.mxu0 %v1820
  %2650 = vmatpush.bf16.msra.mxu0 %v1812
  %2651 = vmatpush.bf16.msra.mxu0 %v1804
  %2652 = vmatpush.bf16.msra.mxu0 %v1796
  %2653 = vmatpush.bf16.msra.mxu0 %v1788
  %2654 = vmatpush.bf16.msra.mxu0 %v1780
  %2655 = vmatmul.bf16.gmra.mxu0 %v424
  %v2656 = vpop.f32.mrf.mxu0
  %v2657 = vadd.f32 %v2643, %v2656
  %v2658 = vpop.f32.mrf.mxu0
  %v2659 = vadd.f32 %v2645, %v2658
  %2660 = vdwg.mxu0
  %2661 = vmatpush.bf16.msra.mxu0 %v1900
  %2662 = vmatpush.bf16.msra.mxu0 %v1892
  %2663 = vmatpush.bf16.msra.mxu0 %v1884
  %2664 = vmatpush.bf16.msra.mxu0 %v1876
  %2665 = vmatpush.bf16.msra.mxu0 %v1868
  %2666 = vmatpush.bf16.msra.mxu0 %v1860
  %2667 = vmatpush.bf16.msra.mxu0 %v1852
  %2668 = vmatpush.bf16.msra.mxu0 %v1844
  %2669 = vmatmul.bf16.gmra.mxu0 %v425
  %v2670 = vpop.f32.mrf.mxu0
  %v2671 = vadd.f32 %v2657, %v2670
  %v2672 = vpop.f32.mrf.mxu0
  %v2673 = vadd.f32 %v2659, %v2672
  %2674 = vdwg.mxu0
  %2675 = vmatpush.bf16.msra.mxu0 %v1964
  %2676 = vmatpush.bf16.msra.mxu0 %v1956
  %2677 = vmatpush.bf16.msra.mxu0 %v1948
  %2678 = vmatpush.bf16.msra.mxu0 %v1940
  %2679 = vmatpush.bf16.msra.mxu0 %v1932
  %2680 = vmatpush.bf16.msra.mxu0 %v1924
  %2681 = vmatpush.bf16.msra.mxu0 %v1916
  %2682 = vmatpush.bf16.msra.mxu0 %v1908
  %2683 = vmatmul.bf16.gmra.mxu0 %v426
  %v2684 = vpop.f32.mrf.mxu0
  %v2685 = vadd.f32 %v2671, %v2684
  %v2686 = vpop.f32.mrf.mxu0
  %v2687 = vadd.f32 %v2673, %v2686
  %2688 = vdwg.mxu0
  %2689 = vmatpush.bf16.msra.mxu0 %v1645
  %2690 = vmatpush.bf16.msra.mxu0 %v1637
  %2691 = vmatpush.bf16.msra.mxu0 %v1629
  %2692 = vmatpush.bf16.msra.mxu0 %v1621
  %2693 = vmatpush.bf16.msra.mxu0 %v1613
  %2694 = vmatpush.bf16.msra.mxu0 %v1605
  %2695 = vmatpush.bf16.msra.mxu0 %v1597
  %2696 = vmatpush.bf16.msra.mxu0 %v1589
  %2697 = vmatmul.bf16.gmra.mxu0 %v421
  %v2698 = vpop.f32.mrf.mxu0
  %v2699 = vadd.f32 0.0, %v2698
  %v2700 = vpop.f32.mrf.mxu0
  %v2701 = vadd.f32 0.0, %v2700
  %2702 = vdwg.mxu0
  %2703 = vmatpush.bf16.msra.mxu0 %v1709
  %2704 = vmatpush.bf16.msra.mxu0 %v1701
  %2705 = vmatpush.bf16.msra.mxu0 %v1693
  %2706 = vmatpush.bf16.msra.mxu0 %v1685
  %2707 = vmatpush.bf16.msra.mxu0 %v1677
  %2708 = vmatpush.bf16.msra.mxu0 %v1669
  %2709 = vmatpush.bf16.msra.mxu0 %v1661
  %2710 = vmatpush.bf16.msra.mxu0 %v1653
  %2711 = vmatmul.bf16.gmra.mxu0 %v422
  %v2712 = vpop.f32.mrf.mxu0
  %v2713 = vadd.f32 %v2699, %v2712
  %v2714 = vpop.f32.mrf.mxu0
  %v2715 = vadd.f32 %v2701, %v2714
  %2716 = vdwg.mxu0
  %2717 = vmatpush.bf16.msra.mxu0 %v1773
  %2718 = vmatpush.bf16.msra.mxu0 %v1765
  %2719 = vmatpush.bf16.msra.mxu0 %v1757
  %2720 = vmatpush.bf16.msra.mxu0 %v1749
  %2721 = vmatpush.bf16.msra.mxu0 %v1741
  %2722 = vmatpush.bf16.msra.mxu0 %v1733
  %2723 = vmatpush.bf16.msra.mxu0 %v1725
  %2724 = vmatpush.bf16.msra.mxu0 %v1717
  %2725 = vmatmul.bf16.gmra.mxu0 %v423
  %v2726 = vpop.f32.mrf.mxu0
  %v2727 = vadd.f32 %v2713, %v2726
  %v2728 = vpop.f32.mrf.mxu0
  %v2729 = vadd.f32 %v2715, %v2728
  %2730 = vdwg.mxu0
  %2731 = vmatpush.bf16.msra.mxu0 %v1837
  %2732 = vmatpush.bf16.msra.mxu0 %v1829
  %2733 = vmatpush.bf16.msra.mxu0 %v1821
  %2734 = vmatpush.bf16.msra.mxu0 %v1813
  %2735 = vmatpush.bf16.msra.mxu0 %v1805
  %2736 = vmatpush.bf16.msra.mxu0 %v1797
  %2737 = vmatpush.bf16.msra.mxu0 %v1789
  %2738 = vmatpush.bf16.msra.mxu0 %v1781
  %2739 = vmatmul.bf16.gmra.mxu0 %v424
  %v2740 = vpop.f32.mrf.mxu0
  %v2741 = vadd.f32 %v2727, %v2740
  %v2742 = vpop.f32.mrf.mxu0
  %v2743 = vadd.f32 %v2729, %v2742
  %2744 = vdwg.mxu0
  %2745 = vmatpush.bf16.msra.mxu0 %v1901
  %2746 = vmatpush.bf16.msra.mxu0 %v1893
  %2747 = vmatpush.bf16.msra.mxu0 %v1885
  %2748 = vmatpush.bf16.msra.mxu0 %v1877
  %2749 = vmatpush.bf16.msra.mxu0 %v1869
  %2750 = vmatpush.bf16.msra.mxu0 %v1861
  %2751 = vmatpush.bf16.msra.mxu0 %v1853
  %2752 = vmatpush.bf16.msra.mxu0 %v1845
  %2753 = vmatmul.bf16.gmra.mxu0 %v425
  %v2754 = vpop.f32.mrf.mxu0
  %v2755 = vadd.f32 %v2741, %v2754
  %v2756 = vpop.f32.mrf.mxu0
  %v2757 = vadd.f32 %v2743, %v2756
  %2758 = vdwg.mxu0
  %2759 = vmatpush.bf16.msra.mxu0 %v1965
  %2760 = vmatpush.bf16.msra.mxu0 %v1957
  %2761 = vmatpush.bf16.msra.mxu0 %v1949
  %2762 = vmatpush.bf16.msra.mxu0 %v1941
  %2763 = vmatpush.bf16.msra.mxu0 %v1933
  %2764 = vmatpush.bf16.msra.mxu0 %v1925
  %2765 = vmatpush.bf16.msra.mxu0 %v1917
  %2766 = vmatpush.bf16.msra.mxu0 %v1909
  %2767 = vmatmul.bf16.gmra.mxu0 %v426
  %v2768 = vpop.f32.mrf.mxu0
  %v2769 = vadd.f32 %v2755, %v2768
  %v2770 = vpop.f32.mrf.mxu0
  %v2771 = vadd.f32 %v2757, %v2770
  %2772 = vdwg.mxu0
  %2773 = vmatpush.bf16.msra.mxu0 %v1646
  %2774 = vmatpush.bf16.msra.mxu0 %v1638
  %2775 = vmatpush.bf16.msra.mxu0 %v1630
  %2776 = vmatpush.bf16.msra.mxu0 %v1622
  %2777 = vmatpush.bf16.msra.mxu0 %v1614
  %2778 = vmatpush.bf16.msra.mxu0 %v1606
  %2779 = vmatpush.bf16.msra.mxu0 %v1598
  %2780 = vmatpush.bf16.msra.mxu0 %v1590
  %2781 = vmatmul.bf16.gmra.mxu0 %v421
  %v2782 = vpop.f32.mrf.mxu0
  %v2783 = vadd.f32 0.0, %v2782
  %v2784 = vpop.f32.mrf.mxu0
  %v2785 = vadd.f32 0.0, %v2784
  %2786 = vdwg.mxu0
  %2787 = vmatpush.bf16.msra.mxu0 %v1710
  %2788 = vmatpush.bf16.msra.mxu0 %v1702
  %2789 = vmatpush.bf16.msra.mxu0 %v1694
  %2790 = vmatpush.bf16.msra.mxu0 %v1686
  %2791 = vmatpush.bf16.msra.mxu0 %v1678
  %2792 = vmatpush.bf16.msra.mxu0 %v1670
  %2793 = vmatpush.bf16.msra.mxu0 %v1662
  %2794 = vmatpush.bf16.msra.mxu0 %v1654
  %2795 = vmatmul.bf16.gmra.mxu0 %v422
  %v2796 = vpop.f32.mrf.mxu0
  %v2797 = vadd.f32 %v2783, %v2796
  %v2798 = vpop.f32.mrf.mxu0
  %v2799 = vadd.f32 %v2785, %v2798
  %2800 = vdwg.mxu0
  %2801 = vmatpush.bf16.msra.mxu0 %v1774
  %2802 = vmatpush.bf16.msra.mxu0 %v1766
  %2803 = vmatpush.bf16.msra.mxu0 %v1758
  %2804 = vmatpush.bf16.msra.mxu0 %v1750
  %2805 = vmatpush.bf16.msra.mxu0 %v1742
  %2806 = vmatpush.bf16.msra.mxu0 %v1734
  %2807 = vmatpush.bf16.msra.mxu0 %v1726
  %2808 = vmatpush.bf16.msra.mxu0 %v1718
  %2809 = vmatmul.bf16.gmra.mxu0 %v423
  %v2810 = vpop.f32.mrf.mxu0
  %v2811 = vadd.f32 %v2797, %v2810
  %v2812 = vpop.f32.mrf.mxu0
  %v2813 = vadd.f32 %v2799, %v2812
  %2814 = vdwg.mxu0
  %2815 = vmatpush.bf16.msra.mxu0 %v1838
  %2816 = vmatpush.bf16.msra.mxu0 %v1830
  %2817 = vmatpush.bf16.msra.mxu0 %v1822
  %2818 = vmatpush.bf16.msra.mxu0 %v1814
  %2819 = vmatpush.bf16.msra.mxu0 %v1806
  %2820 = vmatpush.bf16.msra.mxu0 %v1798
  %2821 = vmatpush.bf16.msra.mxu0 %v1790
  %2822 = vmatpush.bf16.msra.mxu0 %v1782
  %2823 = vmatmul.bf16.gmra.mxu0 %v424
  %v2824 = vpop.f32.mrf.mxu0
  %v2825 = vadd.f32 %v2811, %v2824
  %v2826 = vpop.f32.mrf.mxu0
  %v2827 = vadd.f32 %v2813, %v2826
  %2828 = vdwg.mxu0
  %2829 = vmatpush.bf16.msra.mxu0 %v1902
  %2830 = vmatpush.bf16.msra.mxu0 %v1894
  %2831 = vmatpush.bf16.msra.mxu0 %v1886
  %2832 = vmatpush.bf16.msra.mxu0 %v1878
  %2833 = vmatpush.bf16.msra.mxu0 %v1870
  %2834 = vmatpush.bf16.msra.mxu0 %v1862
  %2835 = vmatpush.bf16.msra.mxu0 %v1854
  %2836 = vmatpush.bf16.msra.mxu0 %v1846
  %2837 = vmatmul.bf16.gmra.mxu0 %v425
  %v2838 = vpop.f32.mrf.mxu0
  %v2839 = vadd.f32 %v2825, %v2838
  %v2840 = vpop.f32.mrf.mxu0
  %v2841 = vadd.f32 %v2827, %v2840
  %2842 = vdwg.mxu0
  %2843 = vmatpush.bf16.msra.mxu0 %v1966
  %2844 = vmatpush.bf16.msra.mxu0 %v1958
  %2845 = vmatpush.bf16.msra.mxu0 %v1950
  %2846 = vmatpush.bf16.msra.mxu0 %v1942
  %2847 = vmatpush.bf16.msra.mxu0 %v1934
  %2848 = vmatpush.bf16.msra.mxu0 %v1926
  %2849 = vmatpush.bf16.msra.mxu0 %v1918
  %2850 = vmatpush.bf16.msra.mxu0 %v1910
  %2851 = vmatmul.bf16.gmra.mxu0 %v426
  %v2852 = vpop.f32.mrf.mxu0
  %v2853 = vadd.f32 %v2839, %v2852
  %v2854 = vpop.f32.mrf.mxu0
  %v2855 = vadd.f32 %v2841, %v2854
  %2856 = vdwg.mxu0
  %2857 = vmatpush.bf16.msra.mxu0 %v1647
  %2858 = vmatpush.bf16.msra.mxu0 %v1639
  %2859 = vmatpush.bf16.msra.mxu0 %v1631
  %2860 = vmatpush.bf16.msra.mxu0 %v1623
  %2861 = vmatpush.bf16.msra.mxu0 %v1615
  %2862 = vmatpush.bf16.msra.mxu0 %v1607
  %2863 = vmatpush.bf16.msra.mxu0 %v1599
  %2864 = vmatpush.bf16.msra.mxu0 %v1591
  %2865 = vmatmul.bf16.gmra.mxu0 %v421
  %v2866 = vpop.f32.mrf.mxu0
  %v2867 = vadd.f32 0.0, %v2866
  %v2868 = vpop.f32.mrf.mxu0
  %v2869 = vadd.f32 0.0, %v2868
  %2870 = vdwg.mxu0
  %2871 = vmatpush.bf16.msra.mxu0 %v1711
  %2872 = vmatpush.bf16.msra.mxu0 %v1703
  %2873 = vmatpush.bf16.msra.mxu0 %v1695
  %2874 = vmatpush.bf16.msra.mxu0 %v1687
  %2875 = vmatpush.bf16.msra.mxu0 %v1679
  %2876 = vmatpush.bf16.msra.mxu0 %v1671
  %2877 = vmatpush.bf16.msra.mxu0 %v1663
  %2878 = vmatpush.bf16.msra.mxu0 %v1655
  %2879 = vmatmul.bf16.gmra.mxu0 %v422
  %v2880 = vpop.f32.mrf.mxu0
  %v2881 = vadd.f32 %v2867, %v2880
  %v2882 = vpop.f32.mrf.mxu0
  %v2883 = vadd.f32 %v2869, %v2882
  %2884 = vdwg.mxu0
  %2885 = vmatpush.bf16.msra.mxu0 %v1775
  %2886 = vmatpush.bf16.msra.mxu0 %v1767
  %2887 = vmatpush.bf16.msra.mxu0 %v1759
  %2888 = vmatpush.bf16.msra.mxu0 %v1751
  %2889 = vmatpush.bf16.msra.mxu0 %v1743
  %2890 = vmatpush.bf16.msra.mxu0 %v1735
  %2891 = vmatpush.bf16.msra.mxu0 %v1727
  %2892 = vmatpush.bf16.msra.mxu0 %v1719
  %2893 = vmatmul.bf16.gmra.mxu0 %v423
  %v2894 = vpop.f32.mrf.mxu0
  %v2895 = vadd.f32 %v2881, %v2894
  %v2896 = vpop.f32.mrf.mxu0
  %v2897 = vadd.f32 %v2883, %v2896
  %2898 = vdwg.mxu0
  %2899 = vmatpush.bf16.msra.mxu0 %v1839
  %2900 = vmatpush.bf16.msra.mxu0 %v1831
  %2901 = vmatpush.bf16.msra.mxu0 %v1823
  %2902 = vmatpush.bf16.msra.mxu0 %v1815
  %2903 = vmatpush.bf16.msra.mxu0 %v1807
  %2904 = vmatpush.bf16.msra.mxu0 %v1799
  %2905 = vmatpush.bf16.msra.mxu0 %v1791
  %2906 = vmatpush.bf16.msra.mxu0 %v1783
  %2907 = vmatmul.bf16.gmra.mxu0 %v424
  %v2908 = vpop.f32.mrf.mxu0
  %v2909 = vadd.f32 %v2895, %v2908
  %v2910 = vpop.f32.mrf.mxu0
  %v2911 = vadd.f32 %v2897, %v2910
  %2912 = vdwg.mxu0
  %2913 = vmatpush.bf16.msra.mxu0 %v1903
  %2914 = vmatpush.bf16.msra.mxu0 %v1895
  %2915 = vmatpush.bf16.msra.mxu0 %v1887
  %2916 = vmatpush.bf16.msra.mxu0 %v1879
  %2917 = vmatpush.bf16.msra.mxu0 %v1871
  %2918 = vmatpush.bf16.msra.mxu0 %v1863
  %2919 = vmatpush.bf16.msra.mxu0 %v1855
  %2920 = vmatpush.bf16.msra.mxu0 %v1847
  %2921 = vmatmul.bf16.gmra.mxu0 %v425
  %v2922 = vpop.f32.mrf.mxu0
  %v2923 = vadd.f32 %v2909, %v2922
  %v2924 = vpop.f32.mrf.mxu0
  %v2925 = vadd.f32 %v2911, %v2924
  %2926 = vdwg.mxu0
  %2927 = vmatpush.bf16.msra.mxu0 %v1967
  %2928 = vmatpush.bf16.msra.mxu0 %v1959
  %2929 = vmatpush.bf16.msra.mxu0 %v1951
  %2930 = vmatpush.bf16.msra.mxu0 %v1943
  %2931 = vmatpush.bf16.msra.mxu0 %v1935
  %2932 = vmatpush.bf16.msra.mxu0 %v1927
  %2933 = vmatpush.bf16.msra.mxu0 %v1919
  %2934 = vmatpush.bf16.msra.mxu0 %v1911
  %2935 = vmatmul.bf16.gmra.mxu0 %v426
  %v2936 = vpop.f32.mrf.mxu0
  %v2937 = vadd.f32 %v2923, %v2936
  %v2938 = vpop.f32.mrf.mxu0
  %v2939 = vadd.f32 %v2925, %v2938
  %2940 = vdwg.mxu0
  %2941 = vmatpush.bf16.msra.mxu0 %v1648
  %2942 = vmatpush.bf16.msra.mxu0 %v1640
  %2943 = vmatpush.bf16.msra.mxu0 %v1632
  %2944 = vmatpush.bf16.msra.mxu0 %v1624
  %2945 = vmatpush.bf16.msra.mxu0 %v1616
  %2946 = vmatpush.bf16.msra.mxu0 %v1608
  %2947 = vmatpush.bf16.msra.mxu0 %v1600
  %2948 = vmatpush.bf16.msra.mxu0 %v1592
  %2949 = vmatmul.bf16.gmra.mxu0 %v421
  %v2950 = vpop.f32.mrf.mxu0
  %v2951 = vadd.f32 0.0, %v2950
  %v2952 = vpop.f32.mrf.mxu0
  %v2953 = vadd.f32 0.0, %v2952
  %2954 = vdwg.mxu0
  %2955 = vmatpush.bf16.msra.mxu0 %v1712
  %2956 = vmatpush.bf16.msra.mxu0 %v1704
  %2957 = vmatpush.bf16.msra.mxu0 %v1696
  %2958 = vmatpush.bf16.msra.mxu0 %v1688
  %2959 = vmatpush.bf16.msra.mxu0 %v1680
  %2960 = vmatpush.bf16.msra.mxu0 %v1672
  %2961 = vmatpush.bf16.msra.mxu0 %v1664
  %2962 = vmatpush.bf16.msra.mxu0 %v1656
  %2963 = vmatmul.bf16.gmra.mxu0 %v422
  %v2964 = vpop.f32.mrf.mxu0
  %v2965 = vadd.f32 %v2951, %v2964
  %v2966 = vpop.f32.mrf.mxu0
  %v2967 = vadd.f32 %v2953, %v2966
  %2968 = vdwg.mxu0
  %2969 = vmatpush.bf16.msra.mxu0 %v1776
  %2970 = vmatpush.bf16.msra.mxu0 %v1768
  %2971 = vmatpush.bf16.msra.mxu0 %v1760
  %2972 = vmatpush.bf16.msra.mxu0 %v1752
  %2973 = vmatpush.bf16.msra.mxu0 %v1744
  %2974 = vmatpush.bf16.msra.mxu0 %v1736
  %2975 = vmatpush.bf16.msra.mxu0 %v1728
  %2976 = vmatpush.bf16.msra.mxu0 %v1720
  %2977 = vmatmul.bf16.gmra.mxu0 %v423
  %v2978 = vpop.f32.mrf.mxu0
  %v2979 = vadd.f32 %v2965, %v2978
  %v2980 = vpop.f32.mrf.mxu0
  %v2981 = vadd.f32 %v2967, %v2980
  %2982 = vdwg.mxu0
  %2983 = vmatpush.bf16.msra.mxu0 %v1840
  %2984 = vmatpush.bf16.msra.mxu0 %v1832
  %2985 = vmatpush.bf16.msra.mxu0 %v1824
  %2986 = vmatpush.bf16.msra.mxu0 %v1816
  %2987 = vmatpush.bf16.msra.mxu0 %v1808
  %2988 = vmatpush.bf16.msra.mxu0 %v1800
  %2989 = vmatpush.bf16.msra.mxu0 %v1792
  %2990 = vmatpush.bf16.msra.mxu0 %v1784
  %2991 = vmatmul.bf16.gmra.mxu0 %v424
  %v2992 = vpop.f32.mrf.mxu0
  %v2993 = vadd.f32 %v2979, %v2992
  %v2994 = vpop.f32.mrf.mxu0
  %v2995 = vadd.f32 %v2981, %v2994
  %2996 = vdwg.mxu0
  %2997 = vmatpush.bf16.msra.mxu0 %v1904
  %2998 = vmatpush.bf16.msra.mxu0 %v1896
  %2999 = vmatpush.bf16.msra.mxu0 %v1888
  %3000 = vmatpush.bf16.msra.mxu0 %v1880
  %3001 = vmatpush.bf16.msra.mxu0 %v1872
  %3002 = vmatpush.bf16.msra.mxu0 %v1864
  %3003 = vmatpush.bf16.msra.mxu0 %v1856
  %3004 = vmatpush.bf16.msra.mxu0 %v1848
  %3005 = vmatmul.bf16.gmra.mxu0 %v425
  %v3006 = vpop.f32.mrf.mxu0
  %v3007 = vadd.f32 %v2993, %v3006
  %v3008 = vpop.f32.mrf.mxu0
  %v3009 = vadd.f32 %v2995, %v3008
  %3010 = vdwg.mxu0
  %3011 = vmatpush.bf16.msra.mxu0 %v1968
  %3012 = vmatpush.bf16.msra.mxu0 %v1960
  %3013 = vmatpush.bf16.msra.mxu0 %v1952
  %3014 = vmatpush.bf16.msra.mxu0 %v1944
  %3015 = vmatpush.bf16.msra.mxu0 %v1936
  %3016 = vmatpush.bf16.msra.mxu0 %v1928
  %3017 = vmatpush.bf16.msra.mxu0 %v1920
  %3018 = vmatpush.bf16.msra.mxu0 %v1912
  %3019 = vmatmul.bf16.gmra.mxu0 %v426
  %v3020 = vpop.f32.mrf.mxu0
  %v3021 = vadd.f32 %v3007, %v3020
  %v3022 = vpop.f32.mrf.mxu0
  %v3023 = vadd.f32 %v3009, %v3022
  %3024 = vdwg.mxu0
  %v3025 = vpack.c.bf16 %v2517, %v2433
  %v3026 = vpack.c.bf16 %v2685, %v2601
  %v3027 = vpack.c.bf16 %v2853, %v2769
  %v3028 = vpack.c.bf16 %v3021, %v2937
  %v3029 = vpack.c.bf16 %v2519, %v2435
  %v3030 = vpack.c.bf16 %v2687, %v2603
  %v3031 = vpack.c.bf16 %v2855, %v2771
  %v3032 = vpack.c.bf16 %v3023, %v2939
  %3033 = vst [vmem:[%s2] sm:$0xff] %v3025
  %3034 = vst [vmem:[%s2 + $0x8] sm:$0xff] %v3026
  %3035 = vst [vmem:[%s2 + $0x10] sm:$0xff] %v3027
  %3036 = vst [vmem:[%s2 + $0x18] sm:$0xff] %v3028
  %3037 = vst [vmem:[%s2 + $0x20] sm:$0xff] %v3029
  %3038 = vst [vmem:[%s2 + $0x28] sm:$0xff] %v3030
  %3039 = vst [vmem:[%s2 + $0x30] sm:$0xff] %v3031
  %3040 = vst [vmem:[%s2 + $0x38] sm:$0xff] %v3032
  %v3041 = vadd.f32 %v2433, %v2435
  %v3042 = vrot.slane %v3041, 4
  %v3043 = vadd.f32 %v3041, %v3042
  %v3044 = vrot.slane %v3043, 2
  %v3045 = vadd.f32 %v3043, %v3044
  %v3046 = vrot.slane %v3045, 1
  %v3047 = vadd.f32 %v3045, %v3046
  %v3048 = vadd.f32 %v2517, %v2519
  %v3049 = vrot.slane %v3048, 4
  %v3050 = vadd.f32 %v3048, %v3049
  %v3051 = vrot.slane %v3050, 2
  %v3052 = vadd.f32 %v3050, %v3051
  %v3053 = vrot.slane %v3052, 1
  %v3054 = vadd.f32 %v3052, %v3053
  %v3055 = vadd.f32 %v2601, %v2603
  %v3056 = vrot.slane %v3055, 4
  %v3057 = vadd.f32 %v3055, %v3056
  %v3058 = vrot.slane %v3057, 2
  %v3059 = vadd.f32 %v3057, %v3058
  %v3060 = vrot.slane %v3059, 1
  %v3061 = vadd.f32 %v3059, %v3060
  %v3062 = vadd.f32 %v2685, %v2687
  %v3063 = vrot.slane %v3062, 4
  %v3064 = vadd.f32 %v3062, %v3063
  %v3065 = vrot.slane %v3064, 2
  %v3066 = vadd.f32 %v3064, %v3065
  %v3067 = vrot.slane %v3066, 1
  %v3068 = vadd.f32 %v3066, %v3067
  %v3069 = vadd.f32 %v2769, %v2771
  %v3070 = vrot.slane %v3069, 4
  %v3071 = vadd.f32 %v3069, %v3070
  %v3072 = vrot.slane %v3071, 2
  %v3073 = vadd.f32 %v3071, %v3072
  %v3074 = vrot.slane %v3073, 1
  %v3075 = vadd.f32 %v3073, %v3074
  %v3076 = vadd.f32 %v2853, %v2855
  %v3077 = vrot.slane %v3076, 4
  %v3078 = vadd.f32 %v3076, %v3077
  %v3079 = vrot.slane %v3078, 2
  %v3080 = vadd.f32 %v3078, %v3079
  %v3081 = vrot.slane %v3080, 1
  %v3082 = vadd.f32 %v3080, %v3081
  %v3083 = vadd.f32 %v2937, %v2939
  %v3084 = vrot.slane %v3083, 4
  %v3085 = vadd.f32 %v3083, %v3084
  %v3086 = vrot.slane %v3085, 2
  %v3087 = vadd.f32 %v3085, %v3086
  %v3088 = vrot.slane %v3087, 1
  %v3089 = vadd.f32 %v3087, %v3088
  %v3090 = vadd.f32 %v3021, %v3023
  %v3091 = vrot.slane %v3090, 4
  %v3092 = vadd.f32 %v3090, %v3091
  %v3093 = vrot.slane %v3092, 2
  %v3094 = vadd.f32 %v3092, %v3093
  %v3095 = vrot.slane %v3094, 1
  %v3096 = vadd.f32 %v3094, %v3095
  %v3105 = vrot.slane %v3054, 7
  %v3106 = vrot.slane %v3061, 6
  %v3107 = vrot.slane %v3068, 5
  %v3108 = vrot.slane %v3075, 4
  %v3109 = vrot.slane %v3082, 3
  %v3110 = vrot.slane %v3089, 2
  %v3111 = vrot.slane %v3096, 1
  %vm3112 = vcmask 1040384
  %v3113 = vsel %vm3112, %v3047, %v3105
  %vm3114 = vcmask 1042434
  %v3115 = vsel %vm3114, %v3106, %v3107
  %vm3116 = vcmask 1041408
  %v3117 = vsel %vm3116, %v3113, %v3115
  %vm3118 = vcmask 1044484
  %v3119 = vsel %vm3118, %v3108, %v3109
  %vm3120 = vcmask 1046534
  %v3121 = vsel %vm3120, %v3110, %v3111
  %vm3122 = vcmask 1045508
  %v3123 = vsel %vm3122, %v3119, %v3121
  %vm3124 = vcmask 1043456
  %v3125 = vsel %vm3124, %v3117, %v3123
  %3127 = vst [vmem:[%s3] ss:$2 sm:$0xff] %v3125
  %v3128 = vmul.f32 %v2433, %v2433
  %v3129 = vmul.f32 %v2517, %v2517
  %v3130 = vmul.f32 %v2601, %v2601
  %v3131 = vmul.f32 %v2685, %v2685
  %v3132 = vmul.f32 %v2769, %v2769
  %v3133 = vmul.f32 %v2853, %v2853
  %v3134 = vmul.f32 %v2937, %v2937
  %v3135 = vmul.f32 %v3021, %v3021
  %v3136 = vmul.f32 %v2435, %v2435
  %v3137 = vmul.f32 %v2519, %v2519
  %v3138 = vmul.f32 %v2603, %v2603
  %v3139 = vmul.f32 %v2687, %v2687
  %v3140 = vmul.f32 %v2771, %v2771
  %v3141 = vmul.f32 %v2855, %v2855
  %v3142 = vmul.f32 %v2939, %v2939
  %v3143 = vmul.f32 %v3023, %v3023
  %v3144 = vadd.f32 %v3128, %v3136
  %v3145 = vrot.slane %v3144, 4
  %v3146 = vadd.f32 %v3144, %v3145
  %v3147 = vrot.slane %v3146, 2
  %v3148 = vadd.f32 %v3146, %v3147
  %v3149 = vrot.slane %v3148, 1
  %v3150 = vadd.f32 %v3148, %v3149
  %v3151 = vadd.f32 %v3129, %v3137
  %v3152 = vrot.slane %v3151, 4
  %v3153 = vadd.f32 %v3151, %v3152
  %v3154 = vrot.slane %v3153, 2
  %v3155 = vadd.f32 %v3153, %v3154
  %v3156 = vrot.slane %v3155, 1
  %v3157 = vadd.f32 %v3155, %v3156
  %v3158 = vadd.f32 %v3130, %v3138
  %v3159 = vrot.slane %v3158, 4
  %v3160 = vadd.f32 %v3158, %v3159
  %v3161 = vrot.slane %v3160, 2
  %v3162 = vadd.f32 %v3160, %v3161
  %v3163 = vrot.slane %v3162, 1
  %v3164 = vadd.f32 %v3162, %v3163
  %v3165 = vadd.f32 %v3131, %v3139
  %v3166 = vrot.slane %v3165, 4
  %v3167 = vadd.f32 %v3165, %v3166
  %v3168 = vrot.slane %v3167, 2
  %v3169 = vadd.f32 %v3167, %v3168
  %v3170 = vrot.slane %v3169, 1
  %v3171 = vadd.f32 %v3169, %v3170
  %v3172 = vadd.f32 %v3132, %v3140
  %v3173 = vrot.slane %v3172, 4
  %v3174 = vadd.f32 %v3172, %v3173
  %v3175 = vrot.slane %v3174, 2
  %v3176 = vadd.f32 %v3174, %v3175
  %v3177 = vrot.slane %v3176, 1
  %v3178 = vadd.f32 %v3176, %v3177
  %v3179 = vadd.f32 %v3133, %v3141
  %v3180 = vrot.slane %v3179, 4
  %v3181 = vadd.f32 %v3179, %v3180
  %v3182 = vrot.slane %v3181, 2
  %v3183 = vadd.f32 %v3181, %v3182
  %v3184 = vrot.slane %v3183, 1
  %v3185 = vadd.f32 %v3183, %v3184
  %v3186 = vadd.f32 %v3134, %v3142
  %v3187 = vrot.slane %v3186, 4
  %v3188 = vadd.f32 %v3186, %v3187
  %v3189 = vrot.slane %v3188, 2
  %v3190 = vadd.f32 %v3188, %v3189
  %v3191 = vrot.slane %v3190, 1
  %v3192 = vadd.f32 %v3190, %v3191
  %v3193 = vadd.f32 %v3135, %v3143
  %v3194 = vrot.slane %v3193, 4
  %v3195 = vadd.f32 %v3193, %v3194
  %v3196 = vrot.slane %v3195, 2
  %v3197 = vadd.f32 %v3195, %v3196
  %v3198 = vrot.slane %v3197, 1
  %v3199 = vadd.f32 %v3197, %v3198
  %v3208 = vrot.slane %v3157, 7
  %v3209 = vrot.slane %v3164, 6
  %v3210 = vrot.slane %v3171, 5
  %v3211 = vrot.slane %v3178, 4
  %v3212 = vrot.slane %v3185, 3
  %v3213 = vrot.slane %v3192, 2
  %v3214 = vrot.slane %v3199, 1
  %v3215 = vsel %vm3112, %v3150, %v3208
  %v3216 = vsel %vm3114, %v3209, %v3210
  %v3217 = vsel %vm3116, %v3215, %v3216
  %v3218 = vsel %vm3118, %v3211, %v3212
  %v3219 = vsel %vm3120, %v3213, %v3214
  %v3220 = vsel %vm3122, %v3218, %v3219
  %v3221 = vsel %vm3124, %v3217, %v3220
  %s3223 = scalar_lea.vmem %s3, 1
  %3224 = vst [vmem:[%s3223] ss:$2 sm:$0xff] %v3221
  // Predicated region
  $region10: #{mlp_forward.2} parent=0 // pred_check
    _
  $region11: #{mlp_forward.2} parent=0 // pred_check_branch
    %3226 = sbr.rel (0) target = $region13
  $region12: #{mlp_forward.2} parent=0 // pred_region
    _
  $region13: #{mlp_forward.2} parent=0 // pred_fallthru
    _
  // Predicated region
  $region14: #{mlp_forward.2} parent=0 // pred_check
    _
  $region15: #{mlp_forward.2} parent=0 // pred_check_branch
    %3228 = sbr.rel (0) target = $region17
  $region16: #{mlp_forward.2} parent=0 // pred_region
    _
  $region17: #{mlp_forward.2} parent=0 // pred_fallthru
    _
  // Predicated region
  $region18: #{mlp_forward.2} parent=0 // pred_check
    _
  $region19: #{mlp_forward.2} parent=0 // pred_check_branch
    %3230 = sbr.rel (0) target = $region21
  $region20: #{mlp_forward.2} parent=0 // pred_region
    _
  $region21: #{mlp_forward.2} parent=0 // pred_fallthru
    _
  // Predicated region
  $region22: #{mlp_forward.2} parent=0 // pred_check
    _
  $region23: #{mlp_forward.2} parent=0 // pred_check_branch
    %3232 = sbr.rel (0) target = $region25
  $region24: #{mlp_forward.2} parent=0 // pred_region
    _
  $region25: #{mlp_forward.2} parent=0 // pred_fallthru
    _

</llo_original>
